<compile_context>
chip_gen: v5e
topology: v5e:2x2
jax: 0.10.0
libtpu: 0.0.40
codegen_flags: <defaults>
</compile_context>

<pallas_src>
import functools

import jax
import jax.numpy as jnp
from jax import lax
from jax.experimental import pallas as pl
from jax.experimental.pallas import tpu as pltpu


# --------------------------------------------------------------------------------------
# Hardware heuristics (cheap, pure Python; resolved once per process)
# --------------------------------------------------------------------------------------
def _device_kind():
    try:
        return jax.devices()[0].device_kind.lower()
    except Exception:
        return ""


def _num_tensorcores_per_chip():
    # v7x exposes one device with 2 TensorCores; the other targeted chips have 1.
    k = _device_kind()
    return 2 if ("v7" in k or "7x" in k) else 1


def _default_split_gru():
    # 128-deep MXU generations (<= v5): two K=H GRU matmuls beat one K=2H matmul whose
    # zero blocks waste 25% of the contraction.  256-deep MXU (v6e/v7x/unknown): keep fused.
    k = _device_kind()
    return any(tag in k for tag in ("v2", "v3", "v4", "v5"))


def _choose_blocking(B, N, target_rows=512):
    """Pick (batch_block, batch_pad): few fat ~target_rows-row steps, grid % n_TC == 0."""
    n_tc = _num_tensorcores_per_chip()
    b_blk_max = max(1, min(B, target_rows // max(N, 1)))
    grid = -(-B // b_blk_max)                      # ceil
    if n_tc > 1:
        grid = max(grid, n_tc)
        grid += (-grid) % n_tc                     # keep both TensorCores balanced
    b_blk = -(-B // grid)
    pad = grid * b_blk - B
    return b_blk, pad


# --------------------------------------------------------------------------------------
# Kernel
# --------------------------------------------------------------------------------------
def _sigmoid(x):
    # One tanh (EUP) + two VPU ops instead of exp + reciprocal: exact identity, half the
    # EUP pushes in the gate epilogue.
    return 0.5 * (jnp.tanh(0.5 * x) + 1.0)


def _make_kernel(num_iterations, split_gru):
    def kernel(a_ref, h_ref, w1t_ref, b1_ref, w2t_ref, b2_ref, *rest):
        if split_gru:
            wih_ref, bih_ref, whh_ref, bhh_ref, out_ref = rest
        else:
            wcat_ref, bcat_ref, out_ref = rest

        b_blk, n_nodes, H = h_ref.shape
        rows = b_blk * n_nodes

        # Loop-invariant loads (weights DMA'd once per grid step; hoisted out of the loop).
        a_bf = a_ref[...].astype(jnp.bfloat16)          # no-op: A is already bf16
        w1t = w1t_ref[...]
        b1 = b1_ref[...]
        w2t = w2t_ref[...]
        b2 = b2_ref[...]
        if split_gru:
            wih, bih = wih_ref[...], bih_ref[...]
            whh, bhh = whh_ref[...], bhh_ref[...]
        else:
            wcat, bcat = wcat_ref[...], bcat_ref[...]

        def one_iteration(hf):
            # hf: (rows, H) f32 state, kept resident in VMEM across iterations.
            h_bf = hf.astype(jnp.bfloat16)

            # ---- message embedding: 2-layer MLP with ReLU (bf16 in, f32 accumulate) ----
            m = jnp.dot(h_bf, w1t, preferred_element_type=jnp.float32) + b1
            m = jnp.maximum(m, 0.0)
            m = jnp.dot(m.astype(jnp.bfloat16), w2t,
                        preferred_element_type=jnp.float32) + b2
            m = jnp.maximum(m, 0.0)                      # (rows, H) f32

            # ---- message = act(A @ message(h)) : block-diagonal over the batch ----
            m3 = m.astype(jnp.bfloat16).reshape(b_blk, n_nodes, H)
            msg = jnp.einsum('bij,bjh->bih', a_bf, m3,
                             preferred_element_type=jnp.float32)
            msg = jnp.maximum(msg, 0.0).reshape(rows, H)
            msg_bf = msg.astype(jnp.bfloat16)

            # ---- vertex update: GRU cell (PyTorch gate order r, z, n) ----
            if split_gru:
                # Two native K=H matmuls (128-deep MXU chips).
                gi = jnp.dot(msg_bf, wih, preferred_element_type=jnp.float32) + bih
                gh = jnp.dot(h_bf, whh, preferred_element_type=jnp.float32) + bhh
                r = _sigmoid(gi[:, 0 * H:1 * H] + gh[:, 0 * H:1 * H])
                z = _sigmoid(gi[:, 1 * H:2 * H] + gh[:, 1 * H:2 * H])
                ngate = jnp.tanh(gi[:, 2 * H:3 * H] + r * gh[:, 2 * H:3 * H])
            else:
                # One fused K=2H matmul: columns of g = [ r_sum | z_sum | gi_n | gh_n ].
                cat = jnp.concatenate([msg_bf, h_bf], axis=-1)        # (rows, 2H) bf16
                g = jnp.dot(cat, wcat, preferred_element_type=jnp.float32) + bcat
                r = _sigmoid(g[:, 0 * H:1 * H])
                z = _sigmoid(g[:, 1 * H:2 * H])
                ngate = jnp.tanh(g[:, 2 * H:3 * H] + r * g[:, 3 * H:4 * H])

            # == (1 - z) * n + z * h with one fewer VALU op; blend stays f32.
            return ngate + z * (hf - ngate)

        hf = h_ref[...].reshape(rows, H)                 # f32
        if num_iterations == 1:
            hf = one_iteration(hf)
        else:
            hf = lax.fori_loop(0, num_iterations, lambda _, s: one_iteration(s), hf)

        out_ref[...] = hf.reshape(b_blk, n_nodes, H)

    return kernel


# --------------------------------------------------------------------------------------
# One-time parameter preparation (hoisted OUT of the per-call path)
# --------------------------------------------------------------------------------------
def prepare_params(params, *, split_gru=None):
    """Fuse / bf16-cast the weights ONCE at setup.  Returns (split_gru, prepared_tuple)."""
    if split_gru is None:
        split_gru = _default_split_gru()
    w1t, b1, w2t, b2, wiht, bih, whht, bhh = params
    H = w1t.shape[0]
    bf = jnp.bfloat16
    common = (w1t.astype(bf), b1, w2t.astype(bf), b2)
    if split_gru:
        gru = (wiht.astype(bf), bih, whht.astype(bf), bhh)
    else:
        zeros = jnp.zeros((H, H), wiht.dtype)
        # W_cat (2H, 4H): rows 0:H multiply msg (W_ih^T), rows H:2H multiply h (W_hh^T).
        top = jnp.concatenate([wiht, zeros], axis=1)                              # [r|z|n|0]
        bot = jnp.concatenate([whht[:, :2 * H], zeros, whht[:, 2 * H:]], axis=1)  # [r|z|0|n]
        wcat = jnp.concatenate([top, bot], axis=0).astype(bf)                     # (2H, 4H)
        bcat = jnp.concatenate([bih[:, :2 * H] + bhh[:, :2 * H],
                                bih[:, 2 * H:], bhh[:, 2 * H:]], axis=1)          # (1, 4H)
        gru = (wcat, bcat)
    prepared = jax.block_until_ready(common + gru)
    return split_gru, prepared


# --------------------------------------------------------------------------------------
# Cached pallas_call wrapper
# --------------------------------------------------------------------------------------
@functools.partial(jax.jit,
                   static_argnames=("b_blk", "pad", "num_iterations", "split_gru"))
def _mp_forward(A, h, prepared, *, b_blk, pad, num_iterations, split_gru):
    B, N, H = h.shape
    if pad:
        A = jnp.pad(A, ((0, pad), (0, 0), (0, 0)))
        h = jnp.pad(h, ((0, pad), (0, 0), (0, 0)))
    Bp = B + pad
    grid = Bp // b_blk

    # Constant-index weight specs: Pallas DMAs them once per kernel.  At H=128 the extra
    # double-buffer is < 0.4 MiB, so we skip pipeline_mode=pl.Buffered(1); single-buffer
    # them (and set vmem_limit_bytes) only if H is ever scaled up.
    full = lambda shape: pl.BlockSpec(shape, lambda b: (0,) * len(shape))
    if split_gru:
        gru_specs = [full((H, 3 * H)), full((1, 3 * H)),
                     full((H, 3 * H)), full((1, 3 * H))]
    else:
        gru_specs = [full((2 * H, 4 * H)), full((1, 4 * H))]

    out = pl.pallas_call(
        _make_kernel(num_iterations, split_gru),
        out_shape=jax.ShapeDtypeStruct((Bp, N, H), jnp.float32),
        grid_spec=pltpu.PrefetchScalarGridSpec(
            num_scalar_prefetch=0,
            grid=(grid,),
            in_specs=[
                pl.BlockSpec((b_blk, N, N), lambda b: (b, 0, 0)),   # A (bf16)
                pl.BlockSpec((b_blk, N, H), lambda b: (b, 0, 0)),   # h (f32)
                full((H, H)), full((1, H)),                         # message layer 1
                full((H, H)), full((1, H)),                         # message layer 2
            ] + gru_specs,                                          # GRU weights / biases
            out_specs=pl.BlockSpec((b_blk, N, H), lambda b: (b, 0, 0)),
        ),
        input_output_aliases={1: 0},                                # h updated in place
        compiler_params=pltpu.CompilerParams(dimension_semantics=("parallel",)),
    )(A, h, *prepared)

    return out[:B] if pad else out


def message_passing_layer(A, h, prepared_params, *, num_iterations=1, target_rows=512):
    """A: (B, N, N) (bf16 preferred), h: (B, N, H) f32, prepared_params from prepare_params().

    num_iterations > 1 applies the (weight-tied) layer that many times with h kept in VMEM.
    """
    split_gru, prepared = prepared_params
    B, N, _ = h.shape
    b_blk, pad = _choose_blocking(B, N, target_rows)
    return _mp_forward(A, h, prepared, b_blk=b_blk, pad=pad,
                       num_iterations=num_iterations, split_gru=split_gru)


# --------------------------------------------------------------------------------------
# Pure-JAX reference (f32, original unfused params) and param init
# --------------------------------------------------------------------------------------
def _reference(A, h, params):
    (w1t, b1, w2t, b2, wiht, bih, whht, bhh) = params
    H = h.shape[-1]
    m = jnp.maximum(h @ w1t + b1, 0.0)
    m = jnp.maximum(m @ w2t + b2, 0.0)
    msg = jnp.maximum(jnp.einsum('bij,bjh->bih', A, m), 0.0)
    gi = msg @ wiht + bih
    gh = h @ whht + bhh
    r = jax.nn.sigmoid(gi[..., :H] + gh[..., :H])
    z = jax.nn.sigmoid(gi[..., H:2 * H] + gh[..., H:2 * H])
    n = jnp.tanh(gi[..., 2 * H:] + r * gh[..., 2 * H:])
    return (1.0 - z) * n + z * h


def init_params(key, hidden):
    ks = jax.random.split(key, 8)
    s = 0.1
    # message MLP (weights stored pre-transposed: (in, out))
    w1t = s * jax.random.normal(ks[0], (hidden, hidden), jnp.float32)
    b1 = s * jax.random.normal(ks[1], (1, hidden), jnp.float32)
    w2t = s * jax.random.normal(ks[2], (hidden, hidden), jnp.float32)
    b2 = s * jax.random.normal(ks[3], (1, hidden), jnp.float32)
    # GRU cell (PyTorch layout is (3H, H), gate order r,z,n; stored transposed as (H, 3H))
    wiht = s * jax.random.normal(ks[4], (hidden, 3 * hidden), jnp.float32)
    bih = s * jax.random.normal(ks[5], (1, 3 * hidden), jnp.float32)
    whht = s * jax.random.normal(ks[6], (hidden, 3 * hidden), jnp.float32)
    bhh = s * jax.random.normal(ks[7], (1, 3 * hidden), jnp.float32)
    return (w1t, b1, w2t, b2, wiht, bih, whht, bhh)


if __name__ == "__main__":
    B, N, H = 16, 32, 128     # batch, nodes (jet constituents), hidden

    key = jax.random.PRNGKey(0)
    kh, ka, kp = jax.random.split(key, 3)

    h = jax.random.normal(kh, (B, N, H), jnp.float32)
    # TODO(synk): get_adjacency_matrix is abstract (`pass`) in the base class; subclasses
    # compute A from kinematics.  Here A is supplied directly as a row-stochastic adjacency,
    # pre-cast to bf16 ONCE (halves its DMA; the MXU consumes bf16 anyway).
    A_f32 = jax.nn.softmax(jax.random.normal(ka, (B, N, N), jnp.float32), axis=-1)
    A = A_f32.astype(jnp.bfloat16)

    params = init_params(kp, H)
    prepared = prepare_params(params)     # one-time: fuse + bf16-cast the weights

    # ---- single iteration: matches the PyTorch module's forward exactly ----
    out = message_passing_layer(A, h, prepared, num_iterations=1)
    out = jax.block_until_ready(out)
    ref = _reference(A_f32, h, params)
    assert out.shape == (B, N, H) and out.dtype == jnp.float32
    # bf16 matmul inputs (f32 accumulation) => relax tolerance vs. the f32 reference.
    assert jnp.allclose(out, ref, atol=5e-2, rtol=5e-2), "mismatch vs. pure-JAX reference"

    # ---- fused multi-iteration mode: h stays resident in VMEM across T rounds ----
    T = 3
    out_t = jax.block_until_ready(message_passing_layer(A, h, prepared, num_iterations=T))
    ref_t = h
    for _ in range(T):
        ref_t = _reference(A_f32, ref_t, params)
    assert jnp.allclose(out_t, ref_t, atol=1e-1, rtol=1e-1), "mismatch (fused iterations)"

    print("KERNEL_OK")
</pallas_src>

<mosaic_0001>
module attributes {stable_mosaic.version = 11 : i64} {
  func.func @kernel(%arg0: i32, %arg1: memref<16x32x32xbf16, #tpu.memory_space<vmem>>, %arg2: memref<16x32x128xf32, #tpu.memory_space<vmem>>, %arg3: memref<128x128xbf16, #tpu.memory_space<vmem>>, %arg4: memref<1x128xf32, #tpu.memory_space<vmem>>, %arg5: memref<128x128xbf16, #tpu.memory_space<vmem>>, %arg6: memref<1x128xf32, #tpu.memory_space<vmem>>, %arg7: memref<256x512xbf16, #tpu.memory_space<vmem>>, %arg8: memref<1x512xf32, #tpu.memory_space<vmem>>, %arg9: memref<16x32x128xf32, #tpu.memory_space<vmem>>) attributes {dimension_semantics = [#tpu.dimension_semantics<parallel>], iteration_bounds = array<i64: 1>, scalar_prefetch = 0 : i64, scratch_operands = 0 : i64, tpu.core_type = #tpu.core_type<tc>, window_params = [{transform_indices = @transform_0, window_bounds = array<i64: 16, 32, 32>}, {transform_indices = @transform_1, window_bounds = array<i64: 16, 32, 128>}, {pipeline_mode = #tpu.pipeline_mode<synchronous>, transform_indices = @transform_2, window_bounds = array<i64: 128, 128>}, {pipeline_mode = #tpu.pipeline_mode<synchronous>, transform_indices = @transform_3, window_bounds = array<i64: 1, 128>}, {pipeline_mode = #tpu.pipeline_mode<synchronous>, transform_indices = @transform_4, window_bounds = array<i64: 128, 128>}, {pipeline_mode = #tpu.pipeline_mode<synchronous>, transform_indices = @transform_5, window_bounds = array<i64: 1, 128>}, {pipeline_mode = #tpu.pipeline_mode<synchronous>, transform_indices = @transform_6, window_bounds = array<i64: 256, 512>}, {pipeline_mode = #tpu.pipeline_mode<synchronous>, transform_indices = @transform_7, window_bounds = array<i64: 1, 512>}, {transform_indices = @transform_8, window_bounds = array<i64: 16, 32, 128>}]} {
    %c0 = arith.constant 0 : index
    %c0_0 = arith.constant 0 : index
    %c0_1 = arith.constant 0 : index
    %0 = vector.load %arg1[%c0, %c0_0, %c0_1] : memref<16x32x32xbf16, #tpu.memory_space<vmem>>, vector<16x32x32xbf16>
    %c0_2 = arith.constant 0 : index
    %c0_3 = arith.constant 0 : index
    %1 = vector.load %arg3[%c0_2, %c0_3] : memref<128x128xbf16, #tpu.memory_space<vmem>>, vector<128x128xbf16>
    %c0_4 = arith.constant 0 : index
    %c0_5 = arith.constant 0 : index
    %2 = vector.load %arg4[%c0_4, %c0_5] : memref<1x128xf32, #tpu.memory_space<vmem>>, vector<1x128xf32>
    %c0_6 = arith.constant 0 : index
    %c0_7 = arith.constant 0 : index
    %3 = vector.load %arg5[%c0_6, %c0_7] : memref<128x128xbf16, #tpu.memory_space<vmem>>, vector<128x128xbf16>
    %c0_8 = arith.constant 0 : index
    %c0_9 = arith.constant 0 : index
    %4 = vector.load %arg6[%c0_8, %c0_9] : memref<1x128xf32, #tpu.memory_space<vmem>>, vector<1x128xf32>
    %c0_10 = arith.constant 0 : index
    %c0_11 = arith.constant 0 : index
    %5 = vector.load %arg7[%c0_10, %c0_11] : memref<256x512xbf16, #tpu.memory_space<vmem>>, vector<256x512xbf16>
    %c0_12 = arith.constant 0 : index
    %c0_13 = arith.constant 0 : index
    %6 = vector.load %arg8[%c0_12, %c0_13] : memref<1x512xf32, #tpu.memory_space<vmem>>, vector<1x512xf32>
    %c0_14 = arith.constant 0 : index
    %c0_15 = arith.constant 0 : index
    %c0_16 = arith.constant 0 : index
    %7 = vector.load %arg2[%c0_14, %c0_15, %c0_16] : memref<16x32x128xf32, #tpu.memory_space<vmem>>, vector<16x32x128xf32>
    %8 = vector.shape_cast %7 : vector<16x32x128xf32> to vector<512x128xf32>
    %9 = arith.truncf %8 : vector<512x128xf32> to vector<512x128xbf16>
    %cst = arith.constant dense<0.000000e+00> : vector<512x128xf32>
    %10 = tpu.matmul %9, %1, %cst {dimension_numbers = #tpu.dot_dimension_numbers<[1], [0], [0], [1], [0, 0, 1, 1], [], []>} : vector<512x128xbf16>, vector<128x128xbf16>, vector<512x128xf32> -> vector<512x128xf32>
    %11 = vector.broadcast %2 : vector<1x128xf32> to vector<512x128xf32>
    %12 = arith.addf %10, %11 : vector<512x128xf32>
    %cst_17 = arith.constant 0.000000e+00 : f32
    %13 = vector.broadcast %cst_17 : f32 to vector<512x128xf32>
    %14 = arith.maximumf %12, %13 : vector<512x128xf32>
    %15 = arith.truncf %14 : vector<512x128xf32> to vector<512x128xbf16>
    %cst_18 = arith.constant dense<0.000000e+00> : vector<512x128xf32>
    %16 = tpu.matmul %15, %3, %cst_18 {dimension_numbers = #tpu.dot_dimension_numbers<[1], [0], [0], [1], [0, 0, 1, 1], [], []>} : vector<512x128xbf16>, vector<128x128xbf16>, vector<512x128xf32> -> vector<512x128xf32>
    %17 = vector.broadcast %4 : vector<1x128xf32> to vector<512x128xf32>
    %18 = arith.addf %16, %17 : vector<512x128xf32>
    %cst_19 = arith.constant 0.000000e+00 : f32
    %19 = vector.broadcast %cst_19 : f32 to vector<512x128xf32>
    %20 = arith.maximumf %18, %19 : vector<512x128xf32>
    %21 = arith.truncf %20 : vector<512x128xf32> to vector<512x128xbf16>
    %22 = vector.shape_cast %21 : vector<512x128xbf16> to vector<16x32x128xbf16>
    "tpu.trace_start"() <{level = 10 : i32, message = "bij,bjh->bih"}> : () -> ()
    %cst_20 = arith.constant dense<0.000000e+00> : vector<16x32x128xf32>
    %23 = tpu.matmul %0, %22, %cst_20 {dimension_numbers = #tpu.dot_dimension_numbers<[2], [1], [1], [2], [0, 0, 0, 1, 1, 2], [0], [0]>} : vector<16x32x32xbf16>, vector<16x32x128xbf16>, vector<16x32x128xf32> -> vector<16x32x128xf32>
    "tpu.trace_stop"() : () -> ()
    %cst_21 = arith.constant 0.000000e+00 : f32
    %24 = vector.broadcast %cst_21 : f32 to vector<16x32x128xf32>
    %25 = arith.maximumf %23, %24 : vector<16x32x128xf32>
    %26 = vector.shape_cast %25 : vector<16x32x128xf32> to vector<512x128xf32>
    %27 = arith.truncf %26 : vector<512x128xf32> to vector<512x128xbf16>
    %28 = tpu.concatenate %27, %9 in 1 : vector<512x128xbf16>, vector<512x128xbf16> -> vector<512x256xbf16>
    %cst_22 = arith.constant dense<0.000000e+00> : vector<512x512xf32>
    %29 = tpu.matmul %28, %5, %cst_22 {dimension_numbers = #tpu.dot_dimension_numbers<[1], [0], [0], [1], [0, 0, 1, 1], [], []>} : vector<512x256xbf16>, vector<256x512xbf16>, vector<512x512xf32> -> vector<512x512xf32>
    %30 = vector.broadcast %6 : vector<1x512xf32> to vector<512x512xf32>
    %31 = arith.addf %29, %30 : vector<512x512xf32>
    %32 = vector.extract_strided_slice %31 {offsets = [0, 0], sizes = [512, 128], strides = [1, 1]} : vector<512x512xf32> to vector<512x128xf32>
    %cst_23 = arith.constant 5.000000e-01 : f32
    %33 = vector.broadcast %cst_23 : f32 to vector<512x128xf32>
    %34 = arith.mulf %33, %32 : vector<512x128xf32>
    %35 = math.tanh %34 : vector<512x128xf32>
    %cst_24 = arith.constant 1.000000e+00 : f32
    %36 = vector.broadcast %cst_24 : f32 to vector<512x128xf32>
    %37 = arith.addf %35, %36 : vector<512x128xf32>
    %cst_25 = arith.constant 5.000000e-01 : f32
    %38 = vector.broadcast %cst_25 : f32 to vector<512x128xf32>
    %39 = arith.mulf %38, %37 : vector<512x128xf32>
    %40 = vector.extract_strided_slice %31 {offsets = [0, 128], sizes = [512, 128], strides = [1, 1]} : vector<512x512xf32> to vector<512x128xf32>
    %cst_26 = arith.constant 5.000000e-01 : f32
    %41 = vector.broadcast %cst_26 : f32 to vector<512x128xf32>
    %42 = arith.mulf %41, %40 : vector<512x128xf32>
    %43 = math.tanh %42 : vector<512x128xf32>
    %cst_27 = arith.constant 1.000000e+00 : f32
    %44 = vector.broadcast %cst_27 : f32 to vector<512x128xf32>
    %45 = arith.addf %43, %44 : vector<512x128xf32>
    %cst_28 = arith.constant 5.000000e-01 : f32
    %46 = vector.broadcast %cst_28 : f32 to vector<512x128xf32>
    %47 = arith.mulf %46, %45 : vector<512x128xf32>
    %48 = vector.extract_strided_slice %31 {offsets = [0, 256], sizes = [512, 128], strides = [1, 1]} : vector<512x512xf32> to vector<512x128xf32>
    %49 = vector.extract_strided_slice %31 {offsets = [0, 384], sizes = [512, 128], strides = [1, 1]} : vector<512x512xf32> to vector<512x128xf32>
    %50 = arith.mulf %39, %49 : vector<512x128xf32>
    %51 = arith.addf %48, %50 : vector<512x128xf32>
    %52 = math.tanh %51 : vector<512x128xf32>
    %53 = arith.subf %8, %52 : vector<512x128xf32>
    %54 = arith.mulf %47, %53 : vector<512x128xf32>
    %55 = arith.addf %52, %54 : vector<512x128xf32>
    %56 = vector.shape_cast %55 : vector<512x128xf32> to vector<16x32x128xf32>
    %c0_29 = arith.constant 0 : index
    %c0_30 = arith.constant 0 : index
    %c0_31 = arith.constant 0 : index
    %57 = vector.load %arg9[%c0_29, %c0_30, %c0_31] : memref<16x32x128xf32, #tpu.memory_space<vmem>>, vector<16x32x128xf32>
    tpu.vector_store %arg9[%c0_29, %c0_30, %c0_31], %56 {strides = array<i32>} : memref<16x32x128xf32, #tpu.memory_space<vmem>>, vector<16x32x128xf32>,
    return
  }
  func.func @transform_0(%arg0: i32) -> (i32, i32, i32) {
    %c0_i32 = arith.constant 0 : i32
    %c0_i32_0 = arith.constant 0 : i32
    %c0_i32_1 = arith.constant 0 : i32
    return %arg0, %c0_i32, %c0_i32_0 : i32, i32, i32
  }
  func.func @transform_1(%arg0: i32) -> (i32, i32, i32) {
    %c0_i32 = arith.constant 0 : i32
    %c0_i32_0 = arith.constant 0 : i32
    %c0_i32_1 = arith.constant 0 : i32
    return %arg0, %c0_i32, %c0_i32_0 : i32, i32, i32
  }
  func.func @transform_2(%arg0: i32) -> (i32, i32) {
    %c0_i32 = arith.constant 0 : i32
    %c0_i32_0 = arith.constant 0 : i32
    %c0_i32_1 = arith.constant 0 : i32
    return %c0_i32, %c0_i32_0 : i32, i32
  }
  func.func @transform_3(%arg0: i32) -> (i32, i32) {
    %c0_i32 = arith.constant 0 : i32
    %c0_i32_0 = arith.constant 0 : i32
    %c0_i32_1 = arith.constant 0 : i32
    return %c0_i32, %c0_i32_0 : i32, i32
  }
  func.func @transform_4(%arg0: i32) -> (i32, i32) {
    %c0_i32 = arith.constant 0 : i32
    %c0_i32_0 = arith.constant 0 : i32
    %c0_i32_1 = arith.constant 0 : i32
    return %c0_i32, %c0_i32_0 : i32, i32
  }
  func.func @transform_5(%arg0: i32) -> (i32, i32) {
    %c0_i32 = arith.constant 0 : i32
    %c0_i32_0 = arith.constant 0 : i32
    %c0_i32_1 = arith.constant 0 : i32
    return %c0_i32, %c0_i32_0 : i32, i32
  }
  func.func @transform_6(%arg0: i32) -> (i32, i32) {
    %c0_i32 = arith.constant 0 : i32
    %c0_i32_0 = arith.constant 0 : i32
    %c0_i32_1 = arith.constant 0 : i32
    return %c0_i32, %c0_i32_0 : i32, i32
  }
  func.func @transform_7(%arg0: i32) -> (i32, i32) {
    %c0_i32 = arith.constant 0 : i32
    %c0_i32_0 = arith.constant 0 : i32
    %c0_i32_1 = arith.constant 0 : i32
    return %c0_i32, %c0_i32_0 : i32, i32
  }
  func.func @transform_8(%arg0: i32) -> (i32, i32, i32) {
    %c0_i32 = arith.constant 0 : i32
    %c0_i32_0 = arith.constant 0 : i32
    %c0_i32_1 = arith.constant 0 : i32
    return %arg0, %c0_i32, %c0_i32_0 : i32, i32, i32
  }
}

</mosaic_0001>

<llo_original>
// kernel: _mp_forward.1
$region0: #{_mp_forward.1}
  #allocation0 [shape = 'u32[]', space=smem, size = 0x4, offset = 0x4, fixed_abs, tag = 'smem constant byte address 0x4 - core index']
  #allocation1 [shape = 'u32[72,128]{1,0:T(1,128)}', space=vmem, size = 0x9000, scoped, tag = 'internal scratch']
  %s0 = inlined_call_operand.vmem [shape: bf16[16,32,32], index: 0, kind: input, shape index: {}]
  %s1 = inlined_call_operand.hbm [shape: f32[16,32,128], index: 1, kind: input, shape index: {}, may-alias: {1,8}]
  %s2 = inlined_call_operand.vmem [shape: bf16[128,128], index: 2, kind: input, shape index: {}]
  %s3 = inlined_call_operand.vmem [shape: f32[1,128], index: 3, kind: input, shape index: {}]
  %s4 = inlined_call_operand.vmem [shape: bf16[128,128], index: 4, kind: input, shape index: {}]
  %s5 = inlined_call_operand.vmem [shape: f32[1,128], index: 5, kind: input, shape index: {}]
  %s6 = inlined_call_operand.vmem [shape: bf16[256,512], index: 6, kind: input, shape index: {}]
  %s7 = inlined_call_operand.vmem [shape: f32[1,512], index: 7, kind: input, shape index: {}]
  %s8 = inlined_call_operand.hbm [shape: f32[16,32,128], index: 8, kind: output, shape index: {}, may-alias: {1,8}]
  %s9 = sld [smem:[#allocation0]]
  $region46: #{_mp_forward.1} parent=0
    _
  %s11 = ssub.s32 1, %s9
  %s12 = scalar_select 0, %s11, %s9
  $region1: #{_mp_forward.1} parent=0
    #allocation2 [shape = 'u8[262144]{0}', space=vmem, size = 0x40000, scoped, tag = 'input window, operand 1, single buffered']
    #allocation3 [shape = 's32[1]{0}', space=sflag, size = 0x4, scoped, tag = 'scoped memory for _mp_forward.1']
    #allocation4 [shape = 's32[1]{0}', space=sflag, size = 0x4, scoped, tag = 'scoped memory for _mp_forward.1']
    #allocation5 [shape = 'u8[262144]{0}', space=vmem, size = 0x40000, scoped, tag = 'output window, operand 0, single buffered']
    %13 = vsyncpa [#allocation3], 0
    %14 = vsyncpa [#allocation4], 0
    // Predicated region
    $region2: #{_mp_forward.1} parent=1 // pred_check
      _
    $region3: #{_mp_forward.1} parent=1 // pred_check_branch
      %16 = sbr.rel (0) target = $region5
    $region4: #{_mp_forward.1} parent=1 // pred_region
      _
    $region5: #{_mp_forward.1} parent=1 // pred_fallthru
      _
    // Predicated region
    $region6: #{_mp_forward.1} parent=1 // pred_check
      _
    $region7: #{_mp_forward.1} parent=1 // pred_check_branch
      %18 = sbr.rel (0) target = $region9
    $region8: #{_mp_forward.1} parent=1 // pred_region
      %20 = vsyncadd [#allocation3], 0
      %s21 = sshll.u32 %s1, 4
      %s22 = int_to_ptr.hbm [resolvable:$true] %s21
      %s23 = sshll.u32 [#allocation2], 4
      %s24 = int_to_ptr.vmem [resolvable:$true] %s23
      %29 = dma.hbm_to_vmem [thread:$0]  %s22, 8192, %s24, [#allocation3], 128, 128, 8
    $region9: #{_mp_forward.1} parent=1 // pred_fallthru
      _
    // Predicated region
    $region10: #{_mp_forward.1} parent=1 // pred_check
      _
    $region11: #{_mp_forward.1} parent=1 // pred_check_branch
      %31 = sbr.rel (0) target = $region13
    $region12: #{_mp_forward.1} parent=1 // pred_region
      _
    $region13: #{_mp_forward.1} parent=1 // pred_fallthru
      _
    // Predicated region
    $region14: #{_mp_forward.1} parent=1 // pred_check
      _
    $region15: #{_mp_forward.1} parent=1 // pred_check_branch
      %33 = sbr.rel (0) target = $region17
    $region16: #{_mp_forward.1} parent=1 // pred_region
      _
    $region17: #{_mp_forward.1} parent=1 // pred_fallthru
      _
    // Predicated region
    $region18: #{_mp_forward.1} parent=1 // pred_check
      _
    $region19: #{_mp_forward.1} parent=1 // pred_check_branch
      %35 = sbr.rel (0) target = $region21
    $region20: #{_mp_forward.1} parent=1 // pred_region
      _
    $region21: #{_mp_forward.1} parent=1 // pred_fallthru
      _
    // Predicated region
    $region22: #{_mp_forward.1} parent=1 // pred_check
      _
    $region23: #{_mp_forward.1} parent=1 // pred_check_branch
      %37 = sbr.rel (0) target = $region25
    $region24: #{_mp_forward.1} parent=1 // pred_region
      _
    $region25: #{_mp_forward.1} parent=1 // pred_fallthru
      _
    // Predicated region
    $region26: #{_mp_forward.1} parent=1 // pred_check
      _
    $region27: #{_mp_forward.1} parent=1 // pred_check_branch
      %39 = sbr.rel (0) target = $region29
    $region28: #{_mp_forward.1} parent=1 // pred_region
      _
    $region29: #{_mp_forward.1} parent=1 // pred_fallthru
      _
    // Predicated region
    $region30: #{_mp_forward.1} parent=1 // pred_check
      _
    $region31: #{_mp_forward.1} parent=1 // pred_check_branch
      %41 = sbr.rel (0) target = $region33
    $region32: #{_mp_forward.1} parent=1 // pred_region
      _
    $region33: #{_mp_forward.1} parent=1 // pred_fallthru
      _
    // Predicated region
    $region34: #{_mp_forward.1} parent=1 // pred_check
      _
    $region35: #{_mp_forward.1} parent=1 // pred_check_branch
      %43 = sbr.rel (0) target = $region37
    $region36: #{_mp_forward.1} parent=1 // pred_region
      %45 = dma.done [#allocation3], 8192
    $region37: #{_mp_forward.1} parent=1 // pred_fallthru
      _
    %v47 = vld [vmem:[%s0] sm:$0xf]
    %v48 = vld [vmem:[%s0 + $0x4] sm:$0xf]
    %v49 = vld [vmem:[%s0 + $0x8] sm:$0xf]
    %v50 = vld [vmem:[%s0 + $0xc] sm:$0xf]
    %v51 = vld [vmem:[%s0 + $0x10] sm:$0xf]
    %v52 = vld [vmem:[%s0 + $0x14] sm:$0xf]
    %v53 = vld [vmem:[%s0 + $0x18] sm:$0xf]
    %v54 = vld [vmem:[%s0 + $0x1c] sm:$0xf]
    %v55 = vld [vmem:[%s0 + $0x20] sm:$0xf]
    %v56 = vld [vmem:[%s0 + $0x24] sm:$0xf]
    %v57 = vld [vmem:[%s0 + $0x28] sm:$0xf]
    %v58 = vld [vmem:[%s0 + $0x2c] sm:$0xf]
    %v59 = vld [vmem:[%s0 + $0x30] sm:$0xf]
    %v60 = vld [vmem:[%s0 + $0x34] sm:$0xf]
    %v61 = vld [vmem:[%s0 + $0x38] sm:$0xf]
    %v62 = vld [vmem:[%s0 + $0x3c] sm:$0xf]
    %v63 = vld [vmem:[%s0 + $0x40] sm:$0xf]
    %v64 = vld [vmem:[%s0 + $0x44] sm:$0xf]
    %v65 = vld [vmem:[%s0 + $0x48] sm:$0xf]
    %v66 = vld [vmem:[%s0 + $0x4c] sm:$0xf]
    %v67 = vld [vmem:[%s0 + $0x50] sm:$0xf]
    %v68 = vld [vmem:[%s0 + $0x54] sm:$0xf]
    %v69 = vld [vmem:[%s0 + $0x58] sm:$0xf]
    %v70 = vld [vmem:[%s0 + $0x5c] sm:$0xf]
    %v71 = vld [vmem:[%s0 + $0x60] sm:$0xf]
    %v72 = vld [vmem:[%s0 + $0x64] sm:$0xf]
    %v73 = vld [vmem:[%s0 + $0x68] sm:$0xf]
    %v74 = vld [vmem:[%s0 + $0x6c] sm:$0xf]
    %v75 = vld [vmem:[%s0 + $0x70] sm:$0xf]
    %v76 = vld [vmem:[%s0 + $0x74] sm:$0xf]
    %v77 = vld [vmem:[%s0 + $0x78] sm:$0xf]
    %v78 = vld [vmem:[%s0 + $0x7c] sm:$0xf]
    %v79 = vld [vmem:[%s0 + $0x80] sm:$0xf]
    %v80 = vld [vmem:[%s0 + $0x84] sm:$0xf]
    %v81 = vld [vmem:[%s0 + $0x88] sm:$0xf]
    %v82 = vld [vmem:[%s0 + $0x8c] sm:$0xf]
    %v83 = vld [vmem:[%s0 + $0x90] sm:$0xf]
    %v84 = vld [vmem:[%s0 + $0x94] sm:$0xf]
    %v85 = vld [vmem:[%s0 + $0x98] sm:$0xf]
    %v86 = vld [vmem:[%s0 + $0x9c] sm:$0xf]
    %v87 = vld [vmem:[%s0 + $0xa0] sm:$0xf]
    %v88 = vld [vmem:[%s0 + $0xa4] sm:$0xf]
    %v89 = vld [vmem:[%s0 + $0xa8] sm:$0xf]
    %v90 = vld [vmem:[%s0 + $0xac] sm:$0xf]
    %v91 = vld [vmem:[%s0 + $0xb0] sm:$0xf]
    %v92 = vld [vmem:[%s0 + $0xb4] sm:$0xf]
    %v93 = vld [vmem:[%s0 + $0xb8] sm:$0xf]
    %v94 = vld [vmem:[%s0 + $0xbc] sm:$0xf]
    %v95 = vld [vmem:[%s0 + $0xc0] sm:$0xf]
    %v96 = vld [vmem:[%s0 + $0xc4] sm:$0xf]
    %v97 = vld [vmem:[%s0 + $0xc8] sm:$0xf]
    %v98 = vld [vmem:[%s0 + $0xcc] sm:$0xf]
    %v99 = vld [vmem:[%s0 + $0xd0] sm:$0xf]
    %v100 = vld [vmem:[%s0 + $0xd4] sm:$0xf]
    %v101 = vld [vmem:[%s0 + $0xd8] sm:$0xf]
    %v102 = vld [vmem:[%s0 + $0xdc] sm:$0xf]
    %v103 = vld [vmem:[%s0 + $0xe0] sm:$0xf]
    %v104 = vld [vmem:[%s0 + $0xe4] sm:$0xf]
    %v105 = vld [vmem:[%s0 + $0xe8] sm:$0xf]
    %v106 = vld [vmem:[%s0 + $0xec] sm:$0xf]
    %v107 = vld [vmem:[%s0 + $0xf0] sm:$0xf]
    %v108 = vld [vmem:[%s0 + $0xf4] sm:$0xf]
    %v109 = vld [vmem:[%s0 + $0xf8] sm:$0xf]
    %v110 = vld [vmem:[%s0 + $0xfc] sm:$0xf]
    %v111 = vld [vmem:[%s2] sm:$0xf]
    %v112 = vld [vmem:[%s2 + $0x4] sm:$0xf]
    %v113 = vld [vmem:[%s2 + $0x8] sm:$0xf]
    %v114 = vld [vmem:[%s2 + $0xc] sm:$0xf]
    %v115 = vld [vmem:[%s2 + $0x10] sm:$0xf]
    %v116 = vld [vmem:[%s2 + $0x14] sm:$0xf]
    %v117 = vld [vmem:[%s2 + $0x18] sm:$0xf]
    %v118 = vld [vmem:[%s2 + $0x1c] sm:$0xf]
    %v119 = vld [vmem:[%s2 + $0x20] sm:$0xf]
    %v120 = vld [vmem:[%s2 + $0x24] sm:$0xf]
    %v121 = vld [vmem:[%s2 + $0x28] sm:$0xf]
    %v122 = vld [vmem:[%s2 + $0x2c] sm:$0xf]
    %v123 = vld [vmem:[%s2 + $0x30] sm:$0xf]
    %v124 = vld [vmem:[%s2 + $0x34] sm:$0xf]
    %v125 = vld [vmem:[%s2 + $0x38] sm:$0xf]
    %v126 = vld [vmem:[%s2 + $0x3c] sm:$0xf]
    %v127 = vld [vmem:[%s3] sm:$0x1]
    %v128 = vld [vmem:[%s4] sm:$0xf]
    %v129 = vld [vmem:[%s4 + $0x4] sm:$0xf]
    %v130 = vld [vmem:[%s4 + $0x8] sm:$0xf]
    %v131 = vld [vmem:[%s4 + $0xc] sm:$0xf]
    %v132 = vld [vmem:[%s4 + $0x10] sm:$0xf]
    %v133 = vld [vmem:[%s4 + $0x14] sm:$0xf]
    %v134 = vld [vmem:[%s4 + $0x18] sm:$0xf]
    %v135 = vld [vmem:[%s4 + $0x1c] sm:$0xf]
    %v136 = vld [vmem:[%s4 + $0x20] sm:$0xf]
    %v137 = vld [vmem:[%s4 + $0x24] sm:$0xf]
    %v138 = vld [vmem:[%s4 + $0x28] sm:$0xf]
    %v139 = vld [vmem:[%s4 + $0x2c] sm:$0xf]
    %v140 = vld [vmem:[%s4 + $0x30] sm:$0xf]
    %v141 = vld [vmem:[%s4 + $0x34] sm:$0xf]
    %v142 = vld [vmem:[%s4 + $0x38] sm:$0xf]
    %v143 = vld [vmem:[%s4 + $0x3c] sm:$0xf]
    %v144 = vld [vmem:[%s5] sm:$0x1]
    %v145 = vld [vmem:[%s6] sm:$0xff]
    %v146 = vld [vmem:[%s6 + $0x8] sm:$0xff]
    %v147 = vld [vmem:[%s6 + $0x10] sm:$0xff]
    %v148 = vld [vmem:[%s6 + $0x18] sm:$0xff]
    %v149 = vld [vmem:[%s6 + $0x20] sm:$0xff]
    %v150 = vld [vmem:[%s6 + $0x28] sm:$0xff]
    %v151 = vld [vmem:[%s6 + $0x30] sm:$0xff]
    %v152 = vld [vmem:[%s6 + $0x38] sm:$0xff]
    %v153 = vld [vmem:[%s6 + $0x40] sm:$0xff]
    %v154 = vld [vmem:[%s6 + $0x48] sm:$0xff]
    %v155 = vld [vmem:[%s6 + $0x50] sm:$0xff]
    %v156 = vld [vmem:[%s6 + $0x58] sm:$0xff]
    %v157 = vld [vmem:[%s6 + $0x60] sm:$0xff]
    %v158 = vld [vmem:[%s6 + $0x68] sm:$0xff]
    %v159 = vld [vmem:[%s6 + $0x70] sm:$0xff]
    %v160 = vld [vmem:[%s6 + $0x78] sm:$0xff]
    %v161 = vld [vmem:[%s6 + $0x80] sm:$0xff]
    %v162 = vld [vmem:[%s6 + $0x88] sm:$0xff]
    %v163 = vld [vmem:[%s6 + $0x90] sm:$0xff]
    %v164 = vld [vmem:[%s6 + $0x98] sm:$0xff]
    %v165 = vld [vmem:[%s6 + $0xa0] sm:$0xff]
    %v166 = vld [vmem:[%s6 + $0xa8] sm:$0xff]
    %v167 = vld [vmem:[%s6 + $0xb0] sm:$0xff]
    %v168 = vld [vmem:[%s6 + $0xb8] sm:$0xff]
    %v169 = vld [vmem:[%s6 + $0xc0] sm:$0xff]
    %v170 = vld [vmem:[%s6 + $0xc8] sm:$0xff]
    %v171 = vld [vmem:[%s6 + $0xd0] sm:$0xff]
    %v172 = vld [vmem:[%s6 + $0xd8] sm:$0xff]
    %v173 = vld [vmem:[%s6 + $0xe0] sm:$0xff]
    %v174 = vld [vmem:[%s6 + $0xe8] sm:$0xff]
    %v175 = vld [vmem:[%s6 + $0xf0] sm:$0xff]
    %v176 = vld [vmem:[%s6 + $0xf8] sm:$0xff]
    %v177 = vld [vmem:[%s6 + $0x100] sm:$0xff]
    %v178 = vld [vmem:[%s6 + $0x108] sm:$0xff]
    %v179 = vld [vmem:[%s6 + $0x110] sm:$0xff]
    %v180 = vld [vmem:[%s6 + $0x118] sm:$0xff]
    %v181 = vld [vmem:[%s6 + $0x120] sm:$0xff]
    %v182 = vld [vmem:[%s6 + $0x128] sm:$0xff]
    %v183 = vld [vmem:[%s6 + $0x130] sm:$0xff]
    %v184 = vld [vmem:[%s6 + $0x138] sm:$0xff]
    %v185 = vld [vmem:[%s6 + $0x140] sm:$0xff]
    %v186 = vld [vmem:[%s6 + $0x148] sm:$0xff]
    %v187 = vld [vmem:[%s6 + $0x150] sm:$0xff]
    %v188 = vld [vmem:[%s6 + $0x158] sm:$0xff]
    %v189 = vld [vmem:[%s6 + $0x160] sm:$0xff]
    %v190 = vld [vmem:[%s6 + $0x168] sm:$0xff]
    %v191 = vld [vmem:[%s6 + $0x170] sm:$0xff]
    %v192 = vld [vmem:[%s6 + $0x178] sm:$0xff]
    %v193 = vld [vmem:[%s6 + $0x180] sm:$0xff]
    %v194 = vld [vmem:[%s6 + $0x188] sm:$0xff]
    %v195 = vld [vmem:[%s6 + $0x190] sm:$0xff]
    %v196 = vld [vmem:[%s6 + $0x198] sm:$0xff]
    %v197 = vld [vmem:[%s6 + $0x1a0] sm:$0xff]
    %v198 = vld [vmem:[%s6 + $0x1a8] sm:$0xff]
    %v199 = vld [vmem:[%s6 + $0x1b0] sm:$0xff]
    %v200 = vld [vmem:[%s6 + $0x1b8] sm:$0xff]
    %v201 = vld [vmem:[%s6 + $0x1c0] sm:$0xff]
    %v202 = vld [vmem:[%s6 + $0x1c8] sm:$0xff]
    %v203 = vld [vmem:[%s6 + $0x1d0] sm:$0xff]
    %v204 = vld [vmem:[%s6 + $0x1d8] sm:$0xff]
    %v205 = vld [vmem:[%s6 + $0x1e0] sm:$0xff]
    %v206 = vld [vmem:[%s6 + $0x1e8] sm:$0xff]
    %v207 = vld [vmem:[%s6 + $0x1f0] sm:$0xff]
    %v208 = vld [vmem:[%s6 + $0x1f8] sm:$0xff]
    %v209 = vld [vmem:[%s7] sm:$0xf]
    %v210 = vld [vmem:[#allocation2] sm:$0xff]
    %v211 = vld [vmem:[#allocation2 + $0x8] sm:$0xff]
    %v212 = vld [vmem:[#allocation2 + $0x10] sm:$0xff]
    %v213 = vld [vmem:[#allocation2 + $0x18] sm:$0xff]
    %v214 = vld [vmem:[#allocation2 + $0x20] sm:$0xff]
    %v215 = vld [vmem:[#allocation2 + $0x28] sm:$0xff]
    %v216 = vld [vmem:[#allocation2 + $0x30] sm:$0xff]
    %v217 = vld [vmem:[#allocation2 + $0x38] sm:$0xff]
    %v218 = vld [vmem:[#allocation2 + $0x40] sm:$0xff]
    %v219 = vld [vmem:[#allocation2 + $0x48] sm:$0xff]
    %v220 = vld [vmem:[#allocation2 + $0x50] sm:$0xff]
    %v221 = vld [vmem:[#allocation2 + $0x58] sm:$0xff]
    %v222 = vld [vmem:[#allocation2 + $0x60] sm:$0xff]
    %v223 = vld [vmem:[#allocation2 + $0x68] sm:$0xff]
    %v224 = vld [vmem:[#allocation2 + $0x70] sm:$0xff]
    %v225 = vld [vmem:[#allocation2 + $0x78] sm:$0xff]
    %v226 = vld [vmem:[#allocation2 + $0x80] sm:$0xff]
    %v227 = vld [vmem:[#allocation2 + $0x88] sm:$0xff]
    %v228 = vld [vmem:[#allocation2 + $0x90] sm:$0xff]
    %v229 = vld [vmem:[#allocation2 + $0x98] sm:$0xff]
    %v230 = vld [vmem:[#allocation2 + $0xa0] sm:$0xff]
    %v231 = vld [vmem:[#allocation2 + $0xa8] sm:$0xff]
    %v232 = vld [vmem:[#allocation2 + $0xb0] sm:$0xff]
    %v233 = vld [vmem:[#allocation2 + $0xb8] sm:$0xff]
    %v234 = vld [vmem:[#allocation2 + $0xc0] sm:$0xff]
    %v235 = vld [vmem:[#allocation2 + $0xc8] sm:$0xff]
    %v236 = vld [vmem:[#allocation2 + $0xd0] sm:$0xff]
    %v237 = vld [vmem:[#allocation2 + $0xd8] sm:$0xff]
    %v238 = vld [vmem:[#allocation2 + $0xe0] sm:$0xff]
    %v239 = vld [vmem:[#allocation2 + $0xe8] sm:$0xff]
    %v240 = vld [vmem:[#allocation2 + $0xf0] sm:$0xff]
    %v241 = vld [vmem:[#allocation2 + $0xf8] sm:$0xff]
    %v242 = vld [vmem:[#allocation2 + $0x100] sm:$0xff]
    %v243 = vld [vmem:[#allocation2 + $0x108] sm:$0xff]
    %v244 = vld [vmem:[#allocation2 + $0x110] sm:$0xff]
    %v245 = vld [vmem:[#allocation2 + $0x118] sm:$0xff]
    %v246 = vld [vmem:[#allocation2 + $0x120] sm:$0xff]
    %v247 = vld [vmem:[#allocation2 + $0x128] sm:$0xff]
    %v248 = vld [vmem:[#allocation2 + $0x130] sm:$0xff]
    %v249 = vld [vmem:[#allocation2 + $0x138] sm:$0xff]
    %v250 = vld [vmem:[#allocation2 + $0x140] sm:$0xff]
    %v251 = vld [vmem:[#allocation2 + $0x148] sm:$0xff]
    %v252 = vld [vmem:[#allocation2 + $0x150] sm:$0xff]
    %v253 = vld [vmem:[#allocation2 + $0x158] sm:$0xff]
    %v254 = vld [vmem:[#allocation2 + $0x160] sm:$0xff]
    %v255 = vld [vmem:[#allocation2 + $0x168] sm:$0xff]
    %v256 = vld [vmem:[#allocation2 + $0x170] sm:$0xff]
    %v257 = vld [vmem:[#allocation2 + $0x178] sm:$0xff]
    %v258 = vld [vmem:[#allocation2 + $0x180] sm:$0xff]
    %v259 = vld [vmem:[#allocation2 + $0x188] sm:$0xff]
    %v260 = vld [vmem:[#allocation2 + $0x190] sm:$0xff]
    %v261 = vld [vmem:[#allocation2 + $0x198] sm:$0xff]
    %v262 = vld [vmem:[#allocation2 + $0x1a0] sm:$0xff]
    %v263 = vld [vmem:[#allocation2 + $0x1a8] sm:$0xff]
    %v264 = vld [vmem:[#allocation2 + $0x1b0] sm:$0xff]
    %v265 = vld [vmem:[#allocation2 + $0x1b8] sm:$0xff]
    %v266 = vld [vmem:[#allocation2 + $0x1c0] sm:$0xff]
    %v267 = vld [vmem:[#allocation2 + $0x1c8] sm:$0xff]
    %v268 = vld [vmem:[#allocation2 + $0x1d0] sm:$0xff]
    %v269 = vld [vmem:[#allocation2 + $0x1d8] sm:$0xff]
    %v270 = vld [vmem:[#allocation2 + $0x1e0] sm:$0xff]
    %v271 = vld [vmem:[#allocation2 + $0x1e8] sm:$0xff]
    %v272 = vld [vmem:[#allocation2 + $0x1f0] sm:$0xff]
    %v273 = vld [vmem:[#allocation2 + $0x1f8] sm:$0xff]
    %v274 = vpack.c.bf16 %v210, %v210
    %v275 = vpack.c.bf16 %v211, %v211
    %v276 = vpack.c.bf16 %v212, %v212
    %v277 = vpack.c.bf16 %v213, %v213
    %v278 = vpack.c.bf16 %v214, %v214
    %v279 = vpack.c.bf16 %v215, %v215
    %v280 = vpack.c.bf16 %v216, %v216
    %v281 = vpack.c.bf16 %v217, %v217
    %v282 = vpack.c.bf16 %v218, %v218
    %v283 = vpack.c.bf16 %v219, %v219
    %v284 = vpack.c.bf16 %v220, %v220
    %v285 = vpack.c.bf16 %v221, %v221
    %v286 = vpack.c.bf16 %v222, %v222
    %v287 = vpack.c.bf16 %v223, %v223
    %v288 = vpack.c.bf16 %v224, %v224
    %v289 = vpack.c.bf16 %v225, %v225
    %v290 = vpack.c.bf16 %v226, %v226
    %v291 = vpack.c.bf16 %v227, %v227
    %v292 = vpack.c.bf16 %v228, %v228
    %v293 = vpack.c.bf16 %v229, %v229
    %v294 = vpack.c.bf16 %v230, %v230
    %v295 = vpack.c.bf16 %v231, %v231
    %v296 = vpack.c.bf16 %v232, %v232
    %v297 = vpack.c.bf16 %v233, %v233
    %v298 = vpack.c.bf16 %v234, %v234
    %v299 = vpack.c.bf16 %v235, %v235
    %v300 = vpack.c.bf16 %v236, %v236
    %v301 = vpack.c.bf16 %v237, %v237
    %v302 = vpack.c.bf16 %v238, %v238
    %v303 = vpack.c.bf16 %v239, %v239
    %v304 = vpack.c.bf16 %v240, %v240
    %v305 = vpack.c.bf16 %v241, %v241
    %v306 = vpack.c.bf16 %v242, %v242
    %v307 = vpack.c.bf16 %v243, %v243
    %v308 = vpack.c.bf16 %v244, %v244
    %v309 = vpack.c.bf16 %v245, %v245
    %v310 = vpack.c.bf16 %v246, %v246
    %v311 = vpack.c.bf16 %v247, %v247
    %v312 = vpack.c.bf16 %v248, %v248
    %v313 = vpack.c.bf16 %v249, %v249
    %v314 = vpack.c.bf16 %v250, %v250
    %v315 = vpack.c.bf16 %v251, %v251
    %v316 = vpack.c.bf16 %v252, %v252
    %v317 = vpack.c.bf16 %v253, %v253
    %v318 = vpack.c.bf16 %v254, %v254
    %v319 = vpack.c.bf16 %v255, %v255
    %v320 = vpack.c.bf16 %v256, %v256
    %v321 = vpack.c.bf16 %v257, %v257
    %v322 = vpack.c.bf16 %v258, %v258
    %v323 = vpack.c.bf16 %v259, %v259
    %v324 = vpack.c.bf16 %v260, %v260
    %v325 = vpack.c.bf16 %v261, %v261
    %v326 = vpack.c.bf16 %v262, %v262
    %v327 = vpack.c.bf16 %v263, %v263
    %v328 = vpack.c.bf16 %v264, %v264
    %v329 = vpack.c.bf16 %v265, %v265
    %v330 = vpack.c.bf16 %v266, %v266
    %v331 = vpack.c.bf16 %v267, %v267
    %v332 = vpack.c.bf16 %v268, %v268
    %v333 = vpack.c.bf16 %v269, %v269
    %v334 = vpack.c.bf16 %v270, %v270
    %v335 = vpack.c.bf16 %v271, %v271
    %v336 = vpack.c.bf16 %v272, %v272
    %v337 = vpack.c.bf16 %v273, %v273
    %v339 = vperm.slane %v127, 0
    %v405 = vunpack.c.l.b16 %v274
    %v406 = vunpack.c.l.b16 %v275
    %v407 = vunpack.c.l.b16 %v276
    %v408 = vunpack.c.l.b16 %v277
    %v409 = vunpack.c.l.b16 %v278
    %v410 = vunpack.c.l.b16 %v279
    %v411 = vunpack.c.l.b16 %v280
    %v412 = vunpack.c.l.b16 %v281
    %v413 = vunpack.c.l.b16 %v282
    %v414 = vunpack.c.l.b16 %v283
    %v415 = vunpack.c.l.b16 %v284
    %v416 = vunpack.c.l.b16 %v285
    %v417 = vunpack.c.l.b16 %v286
    %v418 = vunpack.c.l.b16 %v287
    %v419 = vunpack.c.l.b16 %v288
    %v420 = vunpack.c.l.b16 %v289
    %v421 = vunpack.c.l.b16 %v290
    %v422 = vunpack.c.l.b16 %v291
    %v423 = vunpack.c.l.b16 %v292
    %v424 = vunpack.c.l.b16 %v293
    %v425 = vunpack.c.l.b16 %v294
    %v426 = vunpack.c.l.b16 %v295
    %v427 = vunpack.c.l.b16 %v296
    %v428 = vunpack.c.l.b16 %v297
    %v429 = vunpack.c.l.b16 %v298
    %v430 = vunpack.c.l.b16 %v299
    %v431 = vunpack.c.l.b16 %v300
    %v432 = vunpack.c.l.b16 %v301
    %v433 = vunpack.c.l.b16 %v302
    %v434 = vunpack.c.l.b16 %v303
    %v435 = vunpack.c.l.b16 %v304
    %v436 = vunpack.c.l.b16 %v305
    %v437 = vunpack.c.l.b16 %v306
    %v438 = vunpack.c.l.b16 %v307
    %v439 = vunpack.c.l.b16 %v308
    %v440 = vunpack.c.l.b16 %v309
    %v441 = vunpack.c.l.b16 %v310
    %v442 = vunpack.c.l.b16 %v311
    %v443 = vunpack.c.l.b16 %v312
    %v444 = vunpack.c.l.b16 %v313
    %v445 = vunpack.c.l.b16 %v314
    %v446 = vunpack.c.l.b16 %v315
    %v447 = vunpack.c.l.b16 %v316
    %v448 = vunpack.c.l.b16 %v317
    %v449 = vunpack.c.l.b16 %v318
    %v450 = vunpack.c.l.b16 %v319
    %v451 = vunpack.c.l.b16 %v320
    %v452 = vunpack.c.l.b16 %v321
    %v453 = vunpack.c.l.b16 %v322
    %v454 = vunpack.c.l.b16 %v323
    %v455 = vunpack.c.l.b16 %v324
    %v456 = vunpack.c.l.b16 %v325
    %v457 = vunpack.c.l.b16 %v326
    %v458 = vunpack.c.l.b16 %v327
    %v459 = vunpack.c.l.b16 %v328
    %v460 = vunpack.c.l.b16 %v329
    %v461 = vunpack.c.l.b16 %v330
    %v462 = vunpack.c.l.b16 %v331
    %v463 = vunpack.c.l.b16 %v332
    %v464 = vunpack.c.l.b16 %v333
    %v465 = vunpack.c.l.b16 %v334
    %v466 = vunpack.c.l.b16 %v335
    %v467 = vunpack.c.l.b16 %v336
    %v468 = vunpack.c.l.b16 %v337
    %v469 = vpack.c.b16 %v406, %v405
    %v470 = vpack.c.b16 %v408, %v407
    %v471 = vpack.c.b16 %v410, %v409
    %v472 = vpack.c.b16 %v412, %v411
    %v473 = vpack.c.b16 %v414, %v413
    %v474 = vpack.c.b16 %v416, %v415
    %v475 = vpack.c.b16 %v418, %v417
    %v476 = vpack.c.b16 %v420, %v419
    %v477 = vpack.c.b16 %v422, %v421
    %v478 = vpack.c.b16 %v424, %v423
    %v479 = vpack.c.b16 %v426, %v425
    %v480 = vpack.c.b16 %v428, %v427
    %v481 = vpack.c.b16 %v430, %v429
    %v482 = vpack.c.b16 %v432, %v431
    %v483 = vpack.c.b16 %v434, %v433
    %v484 = vpack.c.b16 %v436, %v435
    %v485 = vpack.c.b16 %v438, %v437
    %v486 = vpack.c.b16 %v440, %v439
    %v487 = vpack.c.b16 %v442, %v441
    %v488 = vpack.c.b16 %v444, %v443
    %v489 = vpack.c.b16 %v446, %v445
    %v490 = vpack.c.b16 %v448, %v447
    %v491 = vpack.c.b16 %v450, %v449
    %v492 = vpack.c.b16 %v452, %v451
    %v493 = vpack.c.b16 %v454, %v453
    %v494 = vpack.c.b16 %v456, %v455
    %v495 = vpack.c.b16 %v458, %v457
    %v496 = vpack.c.b16 %v460, %v459
    %v497 = vpack.c.b16 %v462, %v461
    %v498 = vpack.c.b16 %v464, %v463
    %v499 = vpack.c.b16 %v466, %v465
    %v500 = vpack.c.b16 %v468, %v467
    %v549 = vunpack.c.l.b16 %v111
    %v550 = vunpack.c.l.b16 %v112
    %v551 = vunpack.c.l.b16 %v113
    %v552 = vunpack.c.l.b16 %v114
    %v553 = vunpack.c.l.b16 %v115
    %v554 = vunpack.c.l.b16 %v116
    %v555 = vunpack.c.l.b16 %v117
    %v556 = vunpack.c.l.b16 %v118
    %v557 = vunpack.c.l.b16 %v119
    %v558 = vunpack.c.l.b16 %v120
    %v559 = vunpack.c.l.b16 %v121
    %v560 = vunpack.c.l.b16 %v122
    %v561 = vunpack.c.l.b16 %v123
    %v562 = vunpack.c.l.b16 %v124
    %v563 = vunpack.c.l.b16 %v125
    %v564 = vunpack.c.l.b16 %v126
    %v565 = vpack.c.b16 %v550, %v549
    %v566 = vpack.c.b16 %v552, %v551
    %v567 = vpack.c.b16 %v554, %v553
    %v568 = vpack.c.b16 %v556, %v555
    %v569 = vpack.c.b16 %v558, %v557
    %v570 = vpack.c.b16 %v560, %v559
    %v571 = vpack.c.b16 %v562, %v561
    %v572 = vpack.c.b16 %v564, %v563
    %581 = vmatpush.bf16.msra.mxu0 %v572
    %582 = vmatpush.bf16.msra.mxu0 %v571
    %583 = vmatpush.bf16.msra.mxu0 %v570
    %584 = vmatpush.bf16.msra.mxu0 %v569
    %585 = vmatpush.bf16.msra.mxu0 %v568
    %586 = vmatpush.bf16.msra.mxu0 %v567
    %587 = vmatpush.bf16.msra.mxu0 %v566
    %588 = vmatpush.bf16.msra.mxu0 %v565
    %589 = vmatmul.bf16.gmra.mxu0 %v469
    %v590 = vpop.f32.mrf.mxu0
    %v591 = vadd.f32 %v339, %v590
    %v592 = vpop.f32.mrf.mxu0
    %v593 = vadd.f32 %v339, %v592
    %594 = vmatmul.bf16.gmra.mxu0 %v470
    %v595 = vpop.f32.mrf.mxu0
    %v596 = vadd.f32 %v339, %v595
    %v597 = vpop.f32.mrf.mxu0
    %v598 = vadd.f32 %v339, %v597
    %599 = vmatmul.bf16.gmra.mxu0 %v471
    %v600 = vpop.f32.mrf.mxu0
    %v601 = vadd.f32 %v339, %v600
    %v602 = vpop.f32.mrf.mxu0
    %v603 = vadd.f32 %v339, %v602
    %604 = vmatmul.bf16.gmra.mxu0 %v472
    %v605 = vpop.f32.mrf.mxu0
    %v606 = vadd.f32 %v339, %v605
    %v607 = vpop.f32.mrf.mxu0
    %v608 = vadd.f32 %v339, %v607
    %609 = vmatmul.bf16.gmra.mxu0 %v473
    %v610 = vpop.f32.mrf.mxu0
    %v611 = vadd.f32 %v339, %v610
    %v612 = vpop.f32.mrf.mxu0
    %v613 = vadd.f32 %v339, %v612
    %614 = vmatmul.bf16.gmra.mxu0 %v474
    %v615 = vpop.f32.mrf.mxu0
    %v616 = vadd.f32 %v339, %v615
    %v617 = vpop.f32.mrf.mxu0
    %v618 = vadd.f32 %v339, %v617
    %619 = vmatmul.bf16.gmra.mxu0 %v475
    %v620 = vpop.f32.mrf.mxu0
    %v621 = vadd.f32 %v339, %v620
    %v622 = vpop.f32.mrf.mxu0
    %v623 = vadd.f32 %v339, %v622
    %624 = vmatmul.bf16.gmra.mxu0 %v476
    %v625 = vpop.f32.mrf.mxu0
    %v626 = vadd.f32 %v339, %v625
    %v627 = vpop.f32.mrf.mxu0
    %v628 = vadd.f32 %v339, %v627
    %629 = vmatmul.bf16.gmra.mxu0 %v477
    %v630 = vpop.f32.mrf.mxu0
    %v631 = vadd.f32 %v339, %v630
    %v632 = vpop.f32.mrf.mxu0
    %v633 = vadd.f32 %v339, %v632
    %634 = vmatmul.bf16.gmra.mxu0 %v478
    %v635 = vpop.f32.mrf.mxu0
    %v636 = vadd.f32 %v339, %v635
    %v637 = vpop.f32.mrf.mxu0
    %v638 = vadd.f32 %v339, %v637
    %639 = vmatmul.bf16.gmra.mxu0 %v479
    %v640 = vpop.f32.mrf.mxu0
    %v641 = vadd.f32 %v339, %v640
    %v642 = vpop.f32.mrf.mxu0
    %v643 = vadd.f32 %v339, %v642
    %644 = vmatmul.bf16.gmra.mxu0 %v480
    %v645 = vpop.f32.mrf.mxu0
    %v646 = vadd.f32 %v339, %v645
    %v647 = vpop.f32.mrf.mxu0
    %v648 = vadd.f32 %v339, %v647
    %649 = vmatmul.bf16.gmra.mxu0 %v481
    %v650 = vpop.f32.mrf.mxu0
    %v651 = vadd.f32 %v339, %v650
    %v652 = vpop.f32.mrf.mxu0
    %v653 = vadd.f32 %v339, %v652
    %654 = vmatmul.bf16.gmra.mxu0 %v482
    %v655 = vpop.f32.mrf.mxu0
    %v656 = vadd.f32 %v339, %v655
    %v657 = vpop.f32.mrf.mxu0
    %v658 = vadd.f32 %v339, %v657
    %659 = vmatmul.bf16.gmra.mxu0 %v483
    %v660 = vpop.f32.mrf.mxu0
    %v661 = vadd.f32 %v339, %v660
    %v662 = vpop.f32.mrf.mxu0
    %v663 = vadd.f32 %v339, %v662
    %664 = vmatmul.bf16.gmra.mxu0 %v484
    %v665 = vpop.f32.mrf.mxu0
    %v666 = vadd.f32 %v339, %v665
    %v667 = vpop.f32.mrf.mxu0
    %v668 = vadd.f32 %v339, %v667
    %669 = vmatmul.bf16.gmra.mxu0 %v485
    %v670 = vpop.f32.mrf.mxu0
    %v671 = vadd.f32 %v339, %v670
    %v672 = vpop.f32.mrf.mxu0
    %v673 = vadd.f32 %v339, %v672
    %674 = vmatmul.bf16.gmra.mxu0 %v486
    %v675 = vpop.f32.mrf.mxu0
    %v676 = vadd.f32 %v339, %v675
    %v677 = vpop.f32.mrf.mxu0
    %v678 = vadd.f32 %v339, %v677
    %679 = vmatmul.bf16.gmra.mxu0 %v487
    %v680 = vpop.f32.mrf.mxu0
    %v681 = vadd.f32 %v339, %v680
    %v682 = vpop.f32.mrf.mxu0
    %v683 = vadd.f32 %v339, %v682
    %684 = vmatmul.bf16.gmra.mxu0 %v488
    %v685 = vpop.f32.mrf.mxu0
    %v686 = vadd.f32 %v339, %v685
    %v687 = vpop.f32.mrf.mxu0
    %v688 = vadd.f32 %v339, %v687
    %689 = vmatmul.bf16.gmra.mxu0 %v489
    %v690 = vpop.f32.mrf.mxu0
    %v691 = vadd.f32 %v339, %v690
    %v692 = vpop.f32.mrf.mxu0
    %v693 = vadd.f32 %v339, %v692
    %694 = vmatmul.bf16.gmra.mxu0 %v490
    %v695 = vpop.f32.mrf.mxu0
    %v696 = vadd.f32 %v339, %v695
    %v697 = vpop.f32.mrf.mxu0
    %v698 = vadd.f32 %v339, %v697
    %699 = vmatmul.bf16.gmra.mxu0 %v491
    %v700 = vpop.f32.mrf.mxu0
    %v701 = vadd.f32 %v339, %v700
    %v702 = vpop.f32.mrf.mxu0
    %v703 = vadd.f32 %v339, %v702
    %704 = vmatmul.bf16.gmra.mxu0 %v492
    %v705 = vpop.f32.mrf.mxu0
    %v706 = vadd.f32 %v339, %v705
    %v707 = vpop.f32.mrf.mxu0
    %v708 = vadd.f32 %v339, %v707
    %709 = vmatmul.bf16.gmra.mxu0 %v493
    %v710 = vpop.f32.mrf.mxu0
    %v711 = vadd.f32 %v339, %v710
    %v712 = vpop.f32.mrf.mxu0
    %v713 = vadd.f32 %v339, %v712
    %714 = vmatmul.bf16.gmra.mxu0 %v494
    %v715 = vpop.f32.mrf.mxu0
    %v716 = vadd.f32 %v339, %v715
    %v717 = vpop.f32.mrf.mxu0
    %v718 = vadd.f32 %v339, %v717
    %719 = vmatmul.bf16.gmra.mxu0 %v495
    %v720 = vpop.f32.mrf.mxu0
    %v721 = vadd.f32 %v339, %v720
    %v722 = vpop.f32.mrf.mxu0
    %v723 = vadd.f32 %v339, %v722
    %724 = vmatmul.bf16.gmra.mxu0 %v496
    %v725 = vpop.f32.mrf.mxu0
    %v726 = vadd.f32 %v339, %v725
    %v727 = vpop.f32.mrf.mxu0
    %v728 = vadd.f32 %v339, %v727
    %729 = vmatmul.bf16.gmra.mxu0 %v497
    %v730 = vpop.f32.mrf.mxu0
    %v731 = vadd.f32 %v339, %v730
    %v732 = vpop.f32.mrf.mxu0
    %v733 = vadd.f32 %v339, %v732
    %734 = vmatmul.bf16.gmra.mxu0 %v498
    %v735 = vpop.f32.mrf.mxu0
    %v736 = vadd.f32 %v339, %v735
    %v737 = vpop.f32.mrf.mxu0
    %v738 = vadd.f32 %v339, %v737
    %739 = vmatmul.bf16.gmra.mxu0 %v499
    %v740 = vpop.f32.mrf.mxu0
    %v741 = vadd.f32 %v339, %v740
    %v742 = vpop.f32.mrf.mxu0
    %v743 = vadd.f32 %v339, %v742
    %744 = vmatmul.bf16.gmra.mxu0 %v500
    %v745 = vpop.f32.mrf.mxu0
    %v746 = vadd.f32 %v339, %v745
    %v747 = vpop.f32.mrf.mxu0
    %v748 = vadd.f32 %v339, %v747
    %749 = vdwg.mxu0
    %v750 = vmax.f32 %v591, 0.0
    %v751 = vmax.f32 %v593, 0.0
    %v752 = vmax.f32 %v596, 0.0
    %v753 = vmax.f32 %v598, 0.0
    %v754 = vmax.f32 %v601, 0.0
    %v755 = vmax.f32 %v603, 0.0
    %v756 = vmax.f32 %v606, 0.0
    %v757 = vmax.f32 %v608, 0.0
    %v758 = vmax.f32 %v611, 0.0
    %v759 = vmax.f32 %v613, 0.0
    %v760 = vmax.f32 %v616, 0.0
    %v761 = vmax.f32 %v618, 0.0
    %v762 = vmax.f32 %v621, 0.0
    %v763 = vmax.f32 %v623, 0.0
    %v764 = vmax.f32 %v626, 0.0
    %v765 = vmax.f32 %v628, 0.0
    %v766 = vmax.f32 %v631, 0.0
    %v767 = vmax.f32 %v633, 0.0
    %v768 = vmax.f32 %v636, 0.0
    %v769 = vmax.f32 %v638, 0.0
    %v770 = vmax.f32 %v641, 0.0
    %v771 = vmax.f32 %v643, 0.0
    %v772 = vmax.f32 %v646, 0.0
    %v773 = vmax.f32 %v648, 0.0
    %v774 = vmax.f32 %v651, 0.0
    %v775 = vmax.f32 %v653, 0.0
    %v776 = vmax.f32 %v656, 0.0
    %v777 = vmax.f32 %v658, 0.0
    %v778 = vmax.f32 %v661, 0.0
    %v779 = vmax.f32 %v663, 0.0
    %v780 = vmax.f32 %v666, 0.0
    %v781 = vmax.f32 %v668, 0.0
    %v782 = vmax.f32 %v671, 0.0
    %v783 = vmax.f32 %v673, 0.0
    %v784 = vmax.f32 %v676, 0.0
    %v785 = vmax.f32 %v678, 0.0
    %v786 = vmax.f32 %v681, 0.0
    %v787 = vmax.f32 %v683, 0.0
    %v788 = vmax.f32 %v686, 0.0
    %v789 = vmax.f32 %v688, 0.0
    %v790 = vmax.f32 %v691, 0.0
    %v791 = vmax.f32 %v693, 0.0
    %v792 = vmax.f32 %v696, 0.0
    %v793 = vmax.f32 %v698, 0.0
    %v794 = vmax.f32 %v701, 0.0
    %v795 = vmax.f32 %v703, 0.0
    %v796 = vmax.f32 %v706, 0.0
    %v797 = vmax.f32 %v708, 0.0
    %v798 = vmax.f32 %v711, 0.0
    %v799 = vmax.f32 %v713, 0.0
    %v800 = vmax.f32 %v716, 0.0
    %v801 = vmax.f32 %v718, 0.0
    %v802 = vmax.f32 %v721, 0.0
    %v803 = vmax.f32 %v723, 0.0
    %v804 = vmax.f32 %v726, 0.0
    %v805 = vmax.f32 %v728, 0.0
    %v806 = vmax.f32 %v731, 0.0
    %v807 = vmax.f32 %v733, 0.0
    %v808 = vmax.f32 %v736, 0.0
    %v809 = vmax.f32 %v738, 0.0
    %v810 = vmax.f32 %v741, 0.0
    %v811 = vmax.f32 %v743, 0.0
    %v812 = vmax.f32 %v746, 0.0
    %v813 = vmax.f32 %v748, 0.0
    %v814 = vpack.c.bf16 %v751, %v750
    %v815 = vpack.c.bf16 %v753, %v752
    %v816 = vpack.c.bf16 %v755, %v754
    %v817 = vpack.c.bf16 %v757, %v756
    %v818 = vpack.c.bf16 %v759, %v758
    %v819 = vpack.c.bf16 %v761, %v760
    %v820 = vpack.c.bf16 %v763, %v762
    %v821 = vpack.c.bf16 %v765, %v764
    %v822 = vpack.c.bf16 %v767, %v766
    %v823 = vpack.c.bf16 %v769, %v768
    %v824 = vpack.c.bf16 %v771, %v770
    %v825 = vpack.c.bf16 %v773, %v772
    %v826 = vpack.c.bf16 %v775, %v774
    %v827 = vpack.c.bf16 %v777, %v776
    %v828 = vpack.c.bf16 %v779, %v778
    %v829 = vpack.c.bf16 %v781, %v780
    %v830 = vpack.c.bf16 %v783, %v782
    %v831 = vpack.c.bf16 %v785, %v784
    %v832 = vpack.c.bf16 %v787, %v786
    %v833 = vpack.c.bf16 %v789, %v788
    %v834 = vpack.c.bf16 %v791, %v790
    %v835 = vpack.c.bf16 %v793, %v792
    %v836 = vpack.c.bf16 %v795, %v794
    %v837 = vpack.c.bf16 %v797, %v796
    %v838 = vpack.c.bf16 %v799, %v798
    %v839 = vpack.c.bf16 %v801, %v800
    %v840 = vpack.c.bf16 %v803, %v802
    %v841 = vpack.c.bf16 %v805, %v804
    %v842 = vpack.c.bf16 %v807, %v806
    %v843 = vpack.c.bf16 %v809, %v808
    %v844 = vpack.c.bf16 %v811, %v810
    %v845 = vpack.c.bf16 %v813, %v812
    %v847 = vperm.slane %v144, 0
    %v865 = vunpack.c.l.b16 %v128
    %v866 = vunpack.c.l.b16 %v129
    %v867 = vunpack.c.l.b16 %v130
    %v868 = vunpack.c.l.b16 %v131
    %v869 = vunpack.c.l.b16 %v132
    %v870 = vunpack.c.l.b16 %v133
    %v871 = vunpack.c.l.b16 %v134
    %v872 = vunpack.c.l.b16 %v135
    %v873 = vunpack.c.l.b16 %v136
    %v874 = vunpack.c.l.b16 %v137
    %v875 = vunpack.c.l.b16 %v138
    %v876 = vunpack.c.l.b16 %v139
    %v877 = vunpack.c.l.b16 %v140
    %v878 = vunpack.c.l.b16 %v141
    %v879 = vunpack.c.l.b16 %v142
    %v880 = vunpack.c.l.b16 %v143
    %v881 = vpack.c.b16 %v866, %v865
    %v882 = vpack.c.b16 %v868, %v867
    %v883 = vpack.c.b16 %v870, %v869
    %v884 = vpack.c.b16 %v872, %v871
    %v885 = vpack.c.b16 %v874, %v873
    %v886 = vpack.c.b16 %v876, %v875
    %v887 = vpack.c.b16 %v878, %v877
    %v888 = vpack.c.b16 %v880, %v879
    %897 = vmatpush.bf16.msra.mxu0 %v888
    %898 = vmatpush.bf16.msra.mxu0 %v887
    %899 = vmatpush.bf16.msra.mxu0 %v886
    %900 = vmatpush.bf16.msra.mxu0 %v885
    %901 = vmatpush.bf16.msra.mxu0 %v884
    %902 = vmatpush.bf16.msra.mxu0 %v883
    %903 = vmatpush.bf16.msra.mxu0 %v882
    %904 = vmatpush.bf16.msra.mxu0 %v881
    %905 = vmatmul.bf16.gmra.mxu0 %v814
    %v906 = vpop.f32.mrf.mxu0
    %v907 = vadd.f32 %v847, %v906
    %v908 = vpop.f32.mrf.mxu0
    %v909 = vadd.f32 %v847, %v908
    %910 = vmatmul.bf16.gmra.mxu0 %v815
    %v911 = vpop.f32.mrf.mxu0
    %v912 = vadd.f32 %v847, %v911
    %v913 = vpop.f32.mrf.mxu0
    %v914 = vadd.f32 %v847, %v913
    %915 = vmatmul.bf16.gmra.mxu0 %v816
    %v916 = vpop.f32.mrf.mxu0
    %v917 = vadd.f32 %v847, %v916
    %v918 = vpop.f32.mrf.mxu0
    %v919 = vadd.f32 %v847, %v918
    %920 = vmatmul.bf16.gmra.mxu0 %v817
    %v921 = vpop.f32.mrf.mxu0
    %v922 = vadd.f32 %v847, %v921
    %v923 = vpop.f32.mrf.mxu0
    %v924 = vadd.f32 %v847, %v923
    %925 = vmatmul.bf16.gmra.mxu0 %v818
    %v926 = vpop.f32.mrf.mxu0
    %v927 = vadd.f32 %v847, %v926
    %v928 = vpop.f32.mrf.mxu0
    %v929 = vadd.f32 %v847, %v928
    %930 = vmatmul.bf16.gmra.mxu0 %v819
    %v931 = vpop.f32.mrf.mxu0
    %v932 = vadd.f32 %v847, %v931
    %v933 = vpop.f32.mrf.mxu0
    %v934 = vadd.f32 %v847, %v933
    %935 = vmatmul.bf16.gmra.mxu0 %v820
    %v936 = vpop.f32.mrf.mxu0
    %v937 = vadd.f32 %v847, %v936
    %v938 = vpop.f32.mrf.mxu0
    %v939 = vadd.f32 %v847, %v938
    %940 = vmatmul.bf16.gmra.mxu0 %v821
    %v941 = vpop.f32.mrf.mxu0
    %v942 = vadd.f32 %v847, %v941
    %v943 = vpop.f32.mrf.mxu0
    %v944 = vadd.f32 %v847, %v943
    %945 = vmatmul.bf16.gmra.mxu0 %v822
    %v946 = vpop.f32.mrf.mxu0
    %v947 = vadd.f32 %v847, %v946
    %v948 = vpop.f32.mrf.mxu0
    %v949 = vadd.f32 %v847, %v948
    %950 = vmatmul.bf16.gmra.mxu0 %v823
    %v951 = vpop.f32.mrf.mxu0
    %v952 = vadd.f32 %v847, %v951
    %v953 = vpop.f32.mrf.mxu0
    %v954 = vadd.f32 %v847, %v953
    %955 = vmatmul.bf16.gmra.mxu0 %v824
    %v956 = vpop.f32.mrf.mxu0
    %v957 = vadd.f32 %v847, %v956
    %v958 = vpop.f32.mrf.mxu0
    %v959 = vadd.f32 %v847, %v958
    %960 = vmatmul.bf16.gmra.mxu0 %v825
    %v961 = vpop.f32.mrf.mxu0
    %v962 = vadd.f32 %v847, %v961
    %v963 = vpop.f32.mrf.mxu0
    %v964 = vadd.f32 %v847, %v963
    %965 = vmatmul.bf16.gmra.mxu0 %v826
    %v966 = vpop.f32.mrf.mxu0
    %v967 = vadd.f32 %v847, %v966
    %v968 = vpop.f32.mrf.mxu0
    %v969 = vadd.f32 %v847, %v968
    %970 = vmatmul.bf16.gmra.mxu0 %v827
    %v971 = vpop.f32.mrf.mxu0
    %v972 = vadd.f32 %v847, %v971
    %v973 = vpop.f32.mrf.mxu0
    %v974 = vadd.f32 %v847, %v973
    %975 = vmatmul.bf16.gmra.mxu0 %v828
    %v976 = vpop.f32.mrf.mxu0
    %v977 = vadd.f32 %v847, %v976
    %v978 = vpop.f32.mrf.mxu0
    %v979 = vadd.f32 %v847, %v978
    %980 = vmatmul.bf16.gmra.mxu0 %v829
    %v981 = vpop.f32.mrf.mxu0
    %v982 = vadd.f32 %v847, %v981
    %v983 = vpop.f32.mrf.mxu0
    %v984 = vadd.f32 %v847, %v983
    %985 = vmatmul.bf16.gmra.mxu0 %v830
    %v986 = vpop.f32.mrf.mxu0
    %v987 = vadd.f32 %v847, %v986
    %v988 = vpop.f32.mrf.mxu0
    %v989 = vadd.f32 %v847, %v988
    %990 = vmatmul.bf16.gmra.mxu0 %v831
    %v991 = vpop.f32.mrf.mxu0
    %v992 = vadd.f32 %v847, %v991
    %v993 = vpop.f32.mrf.mxu0
    %v994 = vadd.f32 %v847, %v993
    %995 = vmatmul.bf16.gmra.mxu0 %v832
    %v996 = vpop.f32.mrf.mxu0
    %v997 = vadd.f32 %v847, %v996
    %v998 = vpop.f32.mrf.mxu0
    %v999 = vadd.f32 %v847, %v998
    %1000 = vmatmul.bf16.gmra.mxu0 %v833
    %v1001 = vpop.f32.mrf.mxu0
    %v1002 = vadd.f32 %v847, %v1001
    %v1003 = vpop.f32.mrf.mxu0
    %v1004 = vadd.f32 %v847, %v1003
    %1005 = vmatmul.bf16.gmra.mxu0 %v834
    %v1006 = vpop.f32.mrf.mxu0
    %v1007 = vadd.f32 %v847, %v1006
    %v1008 = vpop.f32.mrf.mxu0
    %v1009 = vadd.f32 %v847, %v1008
    %1010 = vmatmul.bf16.gmra.mxu0 %v835
    %v1011 = vpop.f32.mrf.mxu0
    %v1012 = vadd.f32 %v847, %v1011
    %v1013 = vpop.f32.mrf.mxu0
    %v1014 = vadd.f32 %v847, %v1013
    %1015 = vmatmul.bf16.gmra.mxu0 %v836
    %v1016 = vpop.f32.mrf.mxu0
    %v1017 = vadd.f32 %v847, %v1016
    %v1018 = vpop.f32.mrf.mxu0
    %v1019 = vadd.f32 %v847, %v1018
    %1020 = vmatmul.bf16.gmra.mxu0 %v837
    %v1021 = vpop.f32.mrf.mxu0
    %v1022 = vadd.f32 %v847, %v1021
    %v1023 = vpop.f32.mrf.mxu0
    %v1024 = vadd.f32 %v847, %v1023
    %1025 = vmatmul.bf16.gmra.mxu0 %v838
    %v1026 = vpop.f32.mrf.mxu0
    %v1027 = vadd.f32 %v847, %v1026
    %v1028 = vpop.f32.mrf.mxu0
    %v1029 = vadd.f32 %v847, %v1028
    %1030 = vmatmul.bf16.gmra.mxu0 %v839
    %v1031 = vpop.f32.mrf.mxu0
    %v1032 = vadd.f32 %v847, %v1031
    %v1033 = vpop.f32.mrf.mxu0
    %v1034 = vadd.f32 %v847, %v1033
    %1035 = vmatmul.bf16.gmra.mxu0 %v840
    %v1036 = vpop.f32.mrf.mxu0
    %v1037 = vadd.f32 %v847, %v1036
    %v1038 = vpop.f32.mrf.mxu0
    %v1039 = vadd.f32 %v847, %v1038
    %1040 = vmatmul.bf16.gmra.mxu0 %v841
    %v1041 = vpop.f32.mrf.mxu0
    %v1042 = vadd.f32 %v847, %v1041
    %v1043 = vpop.f32.mrf.mxu0
    %v1044 = vadd.f32 %v847, %v1043
    %1045 = vmatmul.bf16.gmra.mxu0 %v842
    %v1046 = vpop.f32.mrf.mxu0
    %v1047 = vadd.f32 %v847, %v1046
    %v1048 = vpop.f32.mrf.mxu0
    %v1049 = vadd.f32 %v847, %v1048
    %1050 = vmatmul.bf16.gmra.mxu0 %v843
    %v1051 = vpop.f32.mrf.mxu0
    %v1052 = vadd.f32 %v847, %v1051
    %v1053 = vpop.f32.mrf.mxu0
    %v1054 = vadd.f32 %v847, %v1053
    %1055 = vmatmul.bf16.gmra.mxu0 %v844
    %v1056 = vpop.f32.mrf.mxu0
    %v1057 = vadd.f32 %v847, %v1056
    %v1058 = vpop.f32.mrf.mxu0
    %v1059 = vadd.f32 %v847, %v1058
    %1060 = vmatmul.bf16.gmra.mxu0 %v845
    %v1061 = vpop.f32.mrf.mxu0
    %v1062 = vadd.f32 %v847, %v1061
    %v1063 = vpop.f32.mrf.mxu0
    %v1064 = vadd.f32 %v847, %v1063
    %1065 = vdwg.mxu0
    %v1066 = vmax.f32 %v907, 0.0
    %v1067 = vmax.f32 %v909, 0.0
    %v1068 = vmax.f32 %v912, 0.0
    %v1069 = vmax.f32 %v914, 0.0
    %v1070 = vmax.f32 %v917, 0.0
    %v1071 = vmax.f32 %v919, 0.0
    %v1072 = vmax.f32 %v922, 0.0
    %v1073 = vmax.f32 %v924, 0.0
    %v1074 = vmax.f32 %v927, 0.0
    %v1075 = vmax.f32 %v929, 0.0
    %v1076 = vmax.f32 %v932, 0.0
    %v1077 = vmax.f32 %v934, 0.0
    %v1078 = vmax.f32 %v937, 0.0
    %v1079 = vmax.f32 %v939, 0.0
    %v1080 = vmax.f32 %v942, 0.0
    %v1081 = vmax.f32 %v944, 0.0
    %v1082 = vmax.f32 %v947, 0.0
    %v1083 = vmax.f32 %v949, 0.0
    %v1084 = vmax.f32 %v952, 0.0
    %v1085 = vmax.f32 %v954, 0.0
    %v1086 = vmax.f32 %v957, 0.0
    %v1087 = vmax.f32 %v959, 0.0
    %v1088 = vmax.f32 %v962, 0.0
    %v1089 = vmax.f32 %v964, 0.0
    %v1090 = vmax.f32 %v967, 0.0
    %v1091 = vmax.f32 %v969, 0.0
    %v1092 = vmax.f32 %v972, 0.0
    %v1093 = vmax.f32 %v974, 0.0
    %v1094 = vmax.f32 %v977, 0.0
    %v1095 = vmax.f32 %v979, 0.0
    %v1096 = vmax.f32 %v982, 0.0
    %v1097 = vmax.f32 %v984, 0.0
    %v1098 = vmax.f32 %v987, 0.0
    %v1099 = vmax.f32 %v989, 0.0
    %v1100 = vmax.f32 %v992, 0.0
    %v1101 = vmax.f32 %v994, 0.0
    %v1102 = vmax.f32 %v997, 0.0
    %v1103 = vmax.f32 %v999, 0.0
    %v1104 = vmax.f32 %v1002, 0.0
    %v1105 = vmax.f32 %v1004, 0.0
    %v1106 = vmax.f32 %v1007, 0.0
    %v1107 = vmax.f32 %v1009, 0.0
    %v1108 = vmax.f32 %v1012, 0.0
    %v1109 = vmax.f32 %v1014, 0.0
    %v1110 = vmax.f32 %v1017, 0.0
    %v1111 = vmax.f32 %v1019, 0.0
    %v1112 = vmax.f32 %v1022, 0.0
    %v1113 = vmax.f32 %v1024, 0.0
    %v1114 = vmax.f32 %v1027, 0.0
    %v1115 = vmax.f32 %v1029, 0.0
    %v1116 = vmax.f32 %v1032, 0.0
    %v1117 = vmax.f32 %v1034, 0.0
    %v1118 = vmax.f32 %v1037, 0.0
    %v1119 = vmax.f32 %v1039, 0.0
    %v1120 = vmax.f32 %v1042, 0.0
    %v1121 = vmax.f32 %v1044, 0.0
    %v1122 = vmax.f32 %v1047, 0.0
    %v1123 = vmax.f32 %v1049, 0.0
    %v1124 = vmax.f32 %v1052, 0.0
    %v1125 = vmax.f32 %v1054, 0.0
    %v1126 = vmax.f32 %v1057, 0.0
    %v1127 = vmax.f32 %v1059, 0.0
    %v1128 = vmax.f32 %v1062, 0.0
    %v1129 = vmax.f32 %v1064, 0.0
    %v1130 = vpack.c.bf16 %v1066, %v1066
    %v1131 = vpack.c.bf16 %v1067, %v1067
    %v1132 = vpack.c.bf16 %v1068, %v1068
    %v1133 = vpack.c.bf16 %v1069, %v1069
    %v1134 = vpack.c.bf16 %v1070, %v1070
    %v1135 = vpack.c.bf16 %v1071, %v1071
    %v1136 = vpack.c.bf16 %v1072, %v1072
    %v1137 = vpack.c.bf16 %v1073, %v1073
    %v1138 = vpack.c.bf16 %v1074, %v1074
    %v1139 = vpack.c.bf16 %v1075, %v1075
    %v1140 = vpack.c.bf16 %v1076, %v1076
    %v1141 = vpack.c.bf16 %v1077, %v1077
    %v1142 = vpack.c.bf16 %v1078, %v1078
    %v1143 = vpack.c.bf16 %v1079, %v1079
    %v1144 = vpack.c.bf16 %v1080, %v1080
    %v1145 = vpack.c.bf16 %v1081, %v1081
    %v1146 = vpack.c.bf16 %v1082, %v1082
    %v1147 = vpack.c.bf16 %v1083, %v1083
    %v1148 = vpack.c.bf16 %v1084, %v1084
    %v1149 = vpack.c.bf16 %v1085, %v1085
    %v1150 = vpack.c.bf16 %v1086, %v1086
    %v1151 = vpack.c.bf16 %v1087, %v1087
    %v1152 = vpack.c.bf16 %v1088, %v1088
    %v1153 = vpack.c.bf16 %v1089, %v1089
    %v1154 = vpack.c.bf16 %v1090, %v1090
    %v1155 = vpack.c.bf16 %v1091, %v1091
    %v1156 = vpack.c.bf16 %v1092, %v1092
    %v1157 = vpack.c.bf16 %v1093, %v1093
    %v1158 = vpack.c.bf16 %v1094, %v1094
    %v1159 = vpack.c.bf16 %v1095, %v1095
    %v1160 = vpack.c.bf16 %v1096, %v1096
    %v1161 = vpack.c.bf16 %v1097, %v1097
    %v1162 = vpack.c.bf16 %v1098, %v1098
    %v1163 = vpack.c.bf16 %v1099, %v1099
    %v1164 = vpack.c.bf16 %v1100, %v1100
    %v1165 = vpack.c.bf16 %v1101, %v1101
    %v1166 = vpack.c.bf16 %v1102, %v1102
    %v1167 = vpack.c.bf16 %v1103, %v1103
    %v1168 = vpack.c.bf16 %v1104, %v1104
    %v1169 = vpack.c.bf16 %v1105, %v1105
    %v1170 = vpack.c.bf16 %v1106, %v1106
    %v1171 = vpack.c.bf16 %v1107, %v1107
    %v1172 = vpack.c.bf16 %v1108, %v1108
    %v1173 = vpack.c.bf16 %v1109, %v1109
    %v1174 = vpack.c.bf16 %v1110, %v1110
    %v1175 = vpack.c.bf16 %v1111, %v1111
    %v1176 = vpack.c.bf16 %v1112, %v1112
    %v1177 = vpack.c.bf16 %v1113, %v1113
    %v1178 = vpack.c.bf16 %v1114, %v1114
    %v1179 = vpack.c.bf16 %v1115, %v1115
    %v1180 = vpack.c.bf16 %v1116, %v1116
    %v1181 = vpack.c.bf16 %v1117, %v1117
    %v1182 = vpack.c.bf16 %v1118, %v1118
    %v1183 = vpack.c.bf16 %v1119, %v1119
    %v1184 = vpack.c.bf16 %v1120, %v1120
    %v1185 = vpack.c.bf16 %v1121, %v1121
    %v1186 = vpack.c.bf16 %v1122, %v1122
    %v1187 = vpack.c.bf16 %v1123, %v1123
    %v1188 = vpack.c.bf16 %v1124, %v1124
    %v1189 = vpack.c.bf16 %v1125, %v1125
    %v1190 = vpack.c.bf16 %v1126, %v1126
    %v1191 = vpack.c.bf16 %v1127, %v1127
    %v1192 = vpack.c.bf16 %v1128, %v1128
    %v1193 = vpack.c.bf16 %v1129, %v1129
    %v1198 = vunpack.c.l.b16 %v47
    %v1199 = vunpack.c.l.b16 %v48
    %v1200 = vunpack.c.l.b16 %v49
    %v1201 = vunpack.c.l.b16 %v50
    %v1202 = vpack.c.b16 %v1199, %v1198
    %v1203 = vpack.c.b16 %v1201, %v1200
    %v1208 = vunpack.c.l.b16 %v1130
    %v1209 = vunpack.c.l.b16 %v1131
    %v1210 = vunpack.c.l.b16 %v1132
    %v1211 = vunpack.c.l.b16 %v1133
    %v1212 = vpack.c.b16 %v1209, %v1208
    %v1213 = vpack.c.b16 %v1211, %v1210
    %vm1216 = vcmask 261120
    %v1218 = vsel %vm1216, %v1202, 0
    %v1221 = vsel %vm1216, %v1203, 0
    %1223 = vmatpush.bf16.msra.mxu0 0
    %1224 = vmatpush.bf16.msra.mxu0 0
    %1225 = vmatpush.bf16.msra.mxu0 0
    %1226 = vmatpush.bf16.msra.mxu0 0
    %1227 = vmatpush.bf16.msra.mxu0 0
    %1228 = vmatpush.bf16.msra.mxu0 0
    %1229 = vmatpush.bf16.msra.mxu0 %v1213
    %1230 = vmatpush.bf16.msra.mxu0 %v1212
    %1231 = vmatmul.bf16.gmra.mxu0 %v1218
    %v1232 = vpop.f32.mrf.mxu0
    %v1233 = vadd.f32 0.0, %v1232
    %v1234 = vpop.f32.mrf.mxu0
    %v1235 = vadd.f32 0.0, %v1234
    %1236 = vmatmul.bf16.gmra.mxu0 %v1221
    %v1237 = vpop.f32.mrf.mxu0
    %v1238 = vadd.f32 0.0, %v1237
    %v1239 = vpop.f32.mrf.mxu0
    %v1240 = vadd.f32 0.0, %v1239
    %1241 = vdwg.mxu0
    %v1246 = vunpack.c.l.b16 %v51
    %v1247 = vunpack.c.l.b16 %v52
    %v1248 = vunpack.c.l.b16 %v53
    %v1249 = vunpack.c.l.b16 %v54
    %v1250 = vpack.c.b16 %v1247, %v1246
    %v1251 = vpack.c.b16 %v1249, %v1248
    %v1256 = vunpack.c.l.b16 %v1134
    %v1257 = vunpack.c.l.b16 %v1135
    %v1258 = vunpack.c.l.b16 %v1136
    %v1259 = vunpack.c.l.b16 %v1137
    %v1260 = vpack.c.b16 %v1257, %v1256
    %v1261 = vpack.c.b16 %v1259, %v1258
    %v1265 = vsel %vm1216, %v1250, 0
    %v1268 = vsel %vm1216, %v1251, 0
    %1270 = vmatpush.bf16.msra.mxu0 0
    %1271 = vmatpush.bf16.msra.mxu0 0
    %1272 = vmatpush.bf16.msra.mxu0 0
    %1273 = vmatpush.bf16.msra.mxu0 0
    %1274 = vmatpush.bf16.msra.mxu0 0
    %1275 = vmatpush.bf16.msra.mxu0 0
    %1276 = vmatpush.bf16.msra.mxu0 %v1261
    %1277 = vmatpush.bf16.msra.mxu0 %v1260
    %1278 = vmatmul.bf16.gmra.mxu0 %v1265
    %v1279 = vpop.f32.mrf.mxu0
    %v1280 = vadd.f32 0.0, %v1279
    %v1281 = vpop.f32.mrf.mxu0
    %v1282 = vadd.f32 0.0, %v1281
    %1283 = vmatmul.bf16.gmra.mxu0 %v1268
    %v1284 = vpop.f32.mrf.mxu0
    %v1285 = vadd.f32 0.0, %v1284
    %v1286 = vpop.f32.mrf.mxu0
    %v1287 = vadd.f32 0.0, %v1286
    %1288 = vdwg.mxu0
    %v1293 = vunpack.c.l.b16 %v55
    %v1294 = vunpack.c.l.b16 %v56
    %v1295 = vunpack.c.l.b16 %v57
    %v1296 = vunpack.c.l.b16 %v58
    %v1297 = vpack.c.b16 %v1294, %v1293
    %v1298 = vpack.c.b16 %v1296, %v1295
    %v1303 = vunpack.c.l.b16 %v1138
    %v1304 = vunpack.c.l.b16 %v1139
    %v1305 = vunpack.c.l.b16 %v1140
    %v1306 = vunpack.c.l.b16 %v1141
    %v1307 = vpack.c.b16 %v1304, %v1303
    %v1308 = vpack.c.b16 %v1306, %v1305
    %v1312 = vsel %vm1216, %v1297, 0
    %v1315 = vsel %vm1216, %v1298, 0
    %1317 = vmatpush.bf16.msra.mxu0 0
    %1318 = vmatpush.bf16.msra.mxu0 0
    %1319 = vmatpush.bf16.msra.mxu0 0
    %1320 = vmatpush.bf16.msra.mxu0 0
    %1321 = vmatpush.bf16.msra.mxu0 0
    %1322 = vmatpush.bf16.msra.mxu0 0
    %1323 = vmatpush.bf16.msra.mxu0 %v1308
    %1324 = vmatpush.bf16.msra.mxu0 %v1307
    %1325 = vmatmul.bf16.gmra.mxu0 %v1312
    %v1326 = vpop.f32.mrf.mxu0
    %v1327 = vadd.f32 0.0, %v1326
    %v1328 = vpop.f32.mrf.mxu0
    %v1329 = vadd.f32 0.0, %v1328
    %1330 = vmatmul.bf16.gmra.mxu0 %v1315
    %v1331 = vpop.f32.mrf.mxu0
    %v1332 = vadd.f32 0.0, %v1331
    %v1333 = vpop.f32.mrf.mxu0
    %v1334 = vadd.f32 0.0, %v1333
    %1335 = vdwg.mxu0
    %v1340 = vunpack.c.l.b16 %v59
    %v1341 = vunpack.c.l.b16 %v60
    %v1342 = vunpack.c.l.b16 %v61
    %v1343 = vunpack.c.l.b16 %v62
    %v1344 = vpack.c.b16 %v1341, %v1340
    %v1345 = vpack.c.b16 %v1343, %v1342
    %v1350 = vunpack.c.l.b16 %v1142
    %v1351 = vunpack.c.l.b16 %v1143
    %v1352 = vunpack.c.l.b16 %v1144
    %v1353 = vunpack.c.l.b16 %v1145
    %v1354 = vpack.c.b16 %v1351, %v1350
    %v1355 = vpack.c.b16 %v1353, %v1352
    %v1359 = vsel %vm1216, %v1344, 0
    %v1362 = vsel %vm1216, %v1345, 0
    %1364 = vmatpush.bf16.msra.mxu0 0
    %1365 = vmatpush.bf16.msra.mxu0 0
    %1366 = vmatpush.bf16.msra.mxu0 0
    %1367 = vmatpush.bf16.msra.mxu0 0
    %1368 = vmatpush.bf16.msra.mxu0 0
    %1369 = vmatpush.bf16.msra.mxu0 0
    %1370 = vmatpush.bf16.msra.mxu0 %v1355
    %1371 = vmatpush.bf16.msra.mxu0 %v1354
    %1372 = vmatmul.bf16.gmra.mxu0 %v1359
    %v1373 = vpop.f32.mrf.mxu0
    %v1374 = vadd.f32 0.0, %v1373
    %v1375 = vpop.f32.mrf.mxu0
    %v1376 = vadd.f32 0.0, %v1375
    %1377 = vmatmul.bf16.gmra.mxu0 %v1362
    %v1378 = vpop.f32.mrf.mxu0
    %v1379 = vadd.f32 0.0, %v1378
    %v1380 = vpop.f32.mrf.mxu0
    %v1381 = vadd.f32 0.0, %v1380
    %1382 = vdwg.mxu0
    %v1387 = vunpack.c.l.b16 %v63
    %v1388 = vunpack.c.l.b16 %v64
    %v1389 = vunpack.c.l.b16 %v65
    %v1390 = vunpack.c.l.b16 %v66
    %v1391 = vpack.c.b16 %v1388, %v1387
    %v1392 = vpack.c.b16 %v1390, %v1389
    %v1397 = vunpack.c.l.b16 %v1146
    %v1398 = vunpack.c.l.b16 %v1147
    %v1399 = vunpack.c.l.b16 %v1148
    %v1400 = vunpack.c.l.b16 %v1149
    %v1401 = vpack.c.b16 %v1398, %v1397
    %v1402 = vpack.c.b16 %v1400, %v1399
    %v1406 = vsel %vm1216, %v1391, 0
    %v1409 = vsel %vm1216, %v1392, 0
    %1411 = vmatpush.bf16.msra.mxu0 0
    %1412 = vmatpush.bf16.msra.mxu0 0
    %1413 = vmatpush.bf16.msra.mxu0 0
    %1414 = vmatpush.bf16.msra.mxu0 0
    %1415 = vmatpush.bf16.msra.mxu0 0
    %1416 = vmatpush.bf16.msra.mxu0 0
    %1417 = vmatpush.bf16.msra.mxu0 %v1402
    %1418 = vmatpush.bf16.msra.mxu0 %v1401
    %1419 = vmatmul.bf16.gmra.mxu0 %v1406
    %v1420 = vpop.f32.mrf.mxu0
    %v1421 = vadd.f32 0.0, %v1420
    %v1422 = vpop.f32.mrf.mxu0
    %v1423 = vadd.f32 0.0, %v1422
    %1424 = vmatmul.bf16.gmra.mxu0 %v1409
    %v1425 = vpop.f32.mrf.mxu0
    %v1426 = vadd.f32 0.0, %v1425
    %v1427 = vpop.f32.mrf.mxu0
    %v1428 = vadd.f32 0.0, %v1427
    %1429 = vdwg.mxu0
    %v1434 = vunpack.c.l.b16 %v67
    %v1435 = vunpack.c.l.b16 %v68
    %v1436 = vunpack.c.l.b16 %v69
    %v1437 = vunpack.c.l.b16 %v70
    %v1438 = vpack.c.b16 %v1435, %v1434
    %v1439 = vpack.c.b16 %v1437, %v1436
    %v1444 = vunpack.c.l.b16 %v1150
    %v1445 = vunpack.c.l.b16 %v1151
    %v1446 = vunpack.c.l.b16 %v1152
    %v1447 = vunpack.c.l.b16 %v1153
    %v1448 = vpack.c.b16 %v1445, %v1444
    %v1449 = vpack.c.b16 %v1447, %v1446
    %v1453 = vsel %vm1216, %v1438, 0
    %v1456 = vsel %vm1216, %v1439, 0
    %1458 = vmatpush.bf16.msra.mxu0 0
    %1459 = vmatpush.bf16.msra.mxu0 0
    %1460 = vmatpush.bf16.msra.mxu0 0
    %1461 = vmatpush.bf16.msra.mxu0 0
    %1462 = vmatpush.bf16.msra.mxu0 0
    %1463 = vmatpush.bf16.msra.mxu0 0
    %1464 = vmatpush.bf16.msra.mxu0 %v1449
    %1465 = vmatpush.bf16.msra.mxu0 %v1448
    %1466 = vmatmul.bf16.gmra.mxu0 %v1453
    %v1467 = vpop.f32.mrf.mxu0
    %v1468 = vadd.f32 0.0, %v1467
    %v1469 = vpop.f32.mrf.mxu0
    %v1470 = vadd.f32 0.0, %v1469
    %1471 = vmatmul.bf16.gmra.mxu0 %v1456
    %v1472 = vpop.f32.mrf.mxu0
    %v1473 = vadd.f32 0.0, %v1472
    %v1474 = vpop.f32.mrf.mxu0
    %v1475 = vadd.f32 0.0, %v1474
    %1476 = vdwg.mxu0
    %v1481 = vunpack.c.l.b16 %v71
    %v1482 = vunpack.c.l.b16 %v72
    %v1483 = vunpack.c.l.b16 %v73
    %v1484 = vunpack.c.l.b16 %v74
    %v1485 = vpack.c.b16 %v1482, %v1481
    %v1486 = vpack.c.b16 %v1484, %v1483
    %v1491 = vunpack.c.l.b16 %v1154
    %v1492 = vunpack.c.l.b16 %v1155
    %v1493 = vunpack.c.l.b16 %v1156
    %v1494 = vunpack.c.l.b16 %v1157
    %v1495 = vpack.c.b16 %v1492, %v1491
    %v1496 = vpack.c.b16 %v1494, %v1493
    %v1500 = vsel %vm1216, %v1485, 0
    %v1503 = vsel %vm1216, %v1486, 0
    %1505 = vmatpush.bf16.msra.mxu0 0
    %1506 = vmatpush.bf16.msra.mxu0 0
    %1507 = vmatpush.bf16.msra.mxu0 0
    %1508 = vmatpush.bf16.msra.mxu0 0
    %1509 = vmatpush.bf16.msra.mxu0 0
    %1510 = vmatpush.bf16.msra.mxu0 0
    %1511 = vmatpush.bf16.msra.mxu0 %v1496
    %1512 = vmatpush.bf16.msra.mxu0 %v1495
    %1513 = vmatmul.bf16.gmra.mxu0 %v1500
    %v1514 = vpop.f32.mrf.mxu0
    %v1515 = vadd.f32 0.0, %v1514
    %v1516 = vpop.f32.mrf.mxu0
    %v1517 = vadd.f32 0.0, %v1516
    %1518 = vmatmul.bf16.gmra.mxu0 %v1503
    %v1519 = vpop.f32.mrf.mxu0
    %v1520 = vadd.f32 0.0, %v1519
    %v1521 = vpop.f32.mrf.mxu0
    %v1522 = vadd.f32 0.0, %v1521
    %1523 = vdwg.mxu0
    %v1528 = vunpack.c.l.b16 %v75
    %v1529 = vunpack.c.l.b16 %v76
    %v1530 = vunpack.c.l.b16 %v77
    %v1531 = vunpack.c.l.b16 %v78
    %v1532 = vpack.c.b16 %v1529, %v1528
    %v1533 = vpack.c.b16 %v1531, %v1530
    %v1538 = vunpack.c.l.b16 %v1158
    %v1539 = vunpack.c.l.b16 %v1159
    %v1540 = vunpack.c.l.b16 %v1160
    %v1541 = vunpack.c.l.b16 %v1161
    %v1542 = vpack.c.b16 %v1539, %v1538
    %v1543 = vpack.c.b16 %v1541, %v1540
    %v1547 = vsel %vm1216, %v1532, 0
    %v1550 = vsel %vm1216, %v1533, 0
    %1552 = vmatpush.bf16.msra.mxu0 0
    %1553 = vmatpush.bf16.msra.mxu0 0
    %1554 = vmatpush.bf16.msra.mxu0 0
    %1555 = vmatpush.bf16.msra.mxu0 0
    %1556 = vmatpush.bf16.msra.mxu0 0
    %1557 = vmatpush.bf16.msra.mxu0 0
    %1558 = vmatpush.bf16.msra.mxu0 %v1543
    %1559 = vmatpush.bf16.msra.mxu0 %v1542
    %1560 = vmatmul.bf16.gmra.mxu0 %v1547
    %v1561 = vpop.f32.mrf.mxu0
    %v1562 = vadd.f32 0.0, %v1561
    %v1563 = vpop.f32.mrf.mxu0
    %v1564 = vadd.f32 0.0, %v1563
    %1565 = vmatmul.bf16.gmra.mxu0 %v1550
    %v1566 = vpop.f32.mrf.mxu0
    %v1567 = vadd.f32 0.0, %v1566
    %v1568 = vpop.f32.mrf.mxu0
    %v1569 = vadd.f32 0.0, %v1568
    %1570 = vdwg.mxu0
    %v1575 = vunpack.c.l.b16 %v79
    %v1576 = vunpack.c.l.b16 %v80
    %v1577 = vunpack.c.l.b16 %v81
    %v1578 = vunpack.c.l.b16 %v82
    %v1579 = vpack.c.b16 %v1576, %v1575
    %v1580 = vpack.c.b16 %v1578, %v1577
    %v1585 = vunpack.c.l.b16 %v1162
    %v1586 = vunpack.c.l.b16 %v1163
    %v1587 = vunpack.c.l.b16 %v1164
    %v1588 = vunpack.c.l.b16 %v1165
    %v1589 = vpack.c.b16 %v1586, %v1585
    %v1590 = vpack.c.b16 %v1588, %v1587
    %v1594 = vsel %vm1216, %v1579, 0
    %v1597 = vsel %vm1216, %v1580, 0
    %1599 = vmatpush.bf16.msra.mxu0 0
    %1600 = vmatpush.bf16.msra.mxu0 0
    %1601 = vmatpush.bf16.msra.mxu0 0
    %1602 = vmatpush.bf16.msra.mxu0 0
    %1603 = vmatpush.bf16.msra.mxu0 0
    %1604 = vmatpush.bf16.msra.mxu0 0
    %1605 = vmatpush.bf16.msra.mxu0 %v1590
    %1606 = vmatpush.bf16.msra.mxu0 %v1589
    %1607 = vmatmul.bf16.gmra.mxu0 %v1594
    %v1608 = vpop.f32.mrf.mxu0
    %v1609 = vadd.f32 0.0, %v1608
    %v1610 = vpop.f32.mrf.mxu0
    %v1611 = vadd.f32 0.0, %v1610
    %1612 = vmatmul.bf16.gmra.mxu0 %v1597
    %v1613 = vpop.f32.mrf.mxu0
    %v1614 = vadd.f32 0.0, %v1613
    %v1615 = vpop.f32.mrf.mxu0
    %v1616 = vadd.f32 0.0, %v1615
    %1617 = vdwg.mxu0
    %v1622 = vunpack.c.l.b16 %v83
    %v1623 = vunpack.c.l.b16 %v84
    %v1624 = vunpack.c.l.b16 %v85
    %v1625 = vunpack.c.l.b16 %v86
    %v1626 = vpack.c.b16 %v1623, %v1622
    %v1627 = vpack.c.b16 %v1625, %v1624
    %v1632 = vunpack.c.l.b16 %v1166
    %v1633 = vunpack.c.l.b16 %v1167
    %v1634 = vunpack.c.l.b16 %v1168
    %v1635 = vunpack.c.l.b16 %v1169
    %v1636 = vpack.c.b16 %v1633, %v1632
    %v1637 = vpack.c.b16 %v1635, %v1634
    %v1641 = vsel %vm1216, %v1626, 0
    %v1644 = vsel %vm1216, %v1627, 0
    %1646 = vmatpush.bf16.msra.mxu0 0
    %1647 = vmatpush.bf16.msra.mxu0 0
    %1648 = vmatpush.bf16.msra.mxu0 0
    %1649 = vmatpush.bf16.msra.mxu0 0
    %1650 = vmatpush.bf16.msra.mxu0 0
    %1651 = vmatpush.bf16.msra.mxu0 0
    %1652 = vmatpush.bf16.msra.mxu0 %v1637
    %1653 = vmatpush.bf16.msra.mxu0 %v1636
    %1654 = vmatmul.bf16.gmra.mxu0 %v1641
    %v1655 = vpop.f32.mrf.mxu0
    %v1656 = vadd.f32 0.0, %v1655
    %v1657 = vpop.f32.mrf.mxu0
    %v1658 = vadd.f32 0.0, %v1657
    %1659 = vmatmul.bf16.gmra.mxu0 %v1644
    %v1660 = vpop.f32.mrf.mxu0
    %v1661 = vadd.f32 0.0, %v1660
    %v1662 = vpop.f32.mrf.mxu0
    %v1663 = vadd.f32 0.0, %v1662
    %1664 = vdwg.mxu0
    %v1669 = vunpack.c.l.b16 %v87
    %v1670 = vunpack.c.l.b16 %v88
    %v1671 = vunpack.c.l.b16 %v89
    %v1672 = vunpack.c.l.b16 %v90
    %v1673 = vpack.c.b16 %v1670, %v1669
    %v1674 = vpack.c.b16 %v1672, %v1671
    %v1679 = vunpack.c.l.b16 %v1170
    %v1680 = vunpack.c.l.b16 %v1171
    %v1681 = vunpack.c.l.b16 %v1172
    %v1682 = vunpack.c.l.b16 %v1173
    %v1683 = vpack.c.b16 %v1680, %v1679
    %v1684 = vpack.c.b16 %v1682, %v1681
    %v1688 = vsel %vm1216, %v1673, 0
    %v1691 = vsel %vm1216, %v1674, 0
    %1693 = vmatpush.bf16.msra.mxu0 0
    %1694 = vmatpush.bf16.msra.mxu0 0
    %1695 = vmatpush.bf16.msra.mxu0 0
    %1696 = vmatpush.bf16.msra.mxu0 0
    %1697 = vmatpush.bf16.msra.mxu0 0
    %1698 = vmatpush.bf16.msra.mxu0 0
    %1699 = vmatpush.bf16.msra.mxu0 %v1684
    %1700 = vmatpush.bf16.msra.mxu0 %v1683
    %1701 = vmatmul.bf16.gmra.mxu0 %v1688
    %v1702 = vpop.f32.mrf.mxu0
    %v1703 = vadd.f32 0.0, %v1702
    %v1704 = vpop.f32.mrf.mxu0
    %v1705 = vadd.f32 0.0, %v1704
    %1706 = vmatmul.bf16.gmra.mxu0 %v1691
    %v1707 = vpop.f32.mrf.mxu0
    %v1708 = vadd.f32 0.0, %v1707
    %v1709 = vpop.f32.mrf.mxu0
    %v1710 = vadd.f32 0.0, %v1709
    %1711 = vdwg.mxu0
    %v1716 = vunpack.c.l.b16 %v91
    %v1717 = vunpack.c.l.b16 %v92
    %v1718 = vunpack.c.l.b16 %v93
    %v1719 = vunpack.c.l.b16 %v94
    %v1720 = vpack.c.b16 %v1717, %v1716
    %v1721 = vpack.c.b16 %v1719, %v1718
    %v1726 = vunpack.c.l.b16 %v1174
    %v1727 = vunpack.c.l.b16 %v1175
    %v1728 = vunpack.c.l.b16 %v1176
    %v1729 = vunpack.c.l.b16 %v1177
    %v1730 = vpack.c.b16 %v1727, %v1726
    %v1731 = vpack.c.b16 %v1729, %v1728
    %v1735 = vsel %vm1216, %v1720, 0
    %v1738 = vsel %vm1216, %v1721, 0
    %1740 = vmatpush.bf16.msra.mxu0 0
    %1741 = vmatpush.bf16.msra.mxu0 0
    %1742 = vmatpush.bf16.msra.mxu0 0
    %1743 = vmatpush.bf16.msra.mxu0 0
    %1744 = vmatpush.bf16.msra.mxu0 0
    %1745 = vmatpush.bf16.msra.mxu0 0
    %1746 = vmatpush.bf16.msra.mxu0 %v1731
    %1747 = vmatpush.bf16.msra.mxu0 %v1730
    %1748 = vmatmul.bf16.gmra.mxu0 %v1735
    %v1749 = vpop.f32.mrf.mxu0
    %v1750 = vadd.f32 0.0, %v1749
    %v1751 = vpop.f32.mrf.mxu0
    %v1752 = vadd.f32 0.0, %v1751
    %1753 = vmatmul.bf16.gmra.mxu0 %v1738
    %v1754 = vpop.f32.mrf.mxu0
    %v1755 = vadd.f32 0.0, %v1754
    %v1756 = vpop.f32.mrf.mxu0
    %v1757 = vadd.f32 0.0, %v1756
    %1758 = vdwg.mxu0
    %v1763 = vunpack.c.l.b16 %v95
    %v1764 = vunpack.c.l.b16 %v96
    %v1765 = vunpack.c.l.b16 %v97
    %v1766 = vunpack.c.l.b16 %v98
    %v1767 = vpack.c.b16 %v1764, %v1763
    %v1768 = vpack.c.b16 %v1766, %v1765
    %v1773 = vunpack.c.l.b16 %v1178
    %v1774 = vunpack.c.l.b16 %v1179
    %v1775 = vunpack.c.l.b16 %v1180
    %v1776 = vunpack.c.l.b16 %v1181
    %v1777 = vpack.c.b16 %v1774, %v1773
    %v1778 = vpack.c.b16 %v1776, %v1775
    %v1782 = vsel %vm1216, %v1767, 0
    %v1785 = vsel %vm1216, %v1768, 0
    %1787 = vmatpush.bf16.msra.mxu0 0
    %1788 = vmatpush.bf16.msra.mxu0 0
    %1789 = vmatpush.bf16.msra.mxu0 0
    %1790 = vmatpush.bf16.msra.mxu0 0
    %1791 = vmatpush.bf16.msra.mxu0 0
    %1792 = vmatpush.bf16.msra.mxu0 0
    %1793 = vmatpush.bf16.msra.mxu0 %v1778
    %1794 = vmatpush.bf16.msra.mxu0 %v1777
    %1795 = vmatmul.bf16.gmra.mxu0 %v1782
    %v1796 = vpop.f32.mrf.mxu0
    %v1797 = vadd.f32 0.0, %v1796
    %v1798 = vpop.f32.mrf.mxu0
    %v1799 = vadd.f32 0.0, %v1798
    %1800 = vmatmul.bf16.gmra.mxu0 %v1785
    %v1801 = vpop.f32.mrf.mxu0
    %v1802 = vadd.f32 0.0, %v1801
    %v1803 = vpop.f32.mrf.mxu0
    %v1804 = vadd.f32 0.0, %v1803
    %1805 = vdwg.mxu0
    %v1810 = vunpack.c.l.b16 %v99
    %v1811 = vunpack.c.l.b16 %v100
    %v1812 = vunpack.c.l.b16 %v101
    %v1813 = vunpack.c.l.b16 %v102
    %v1814 = vpack.c.b16 %v1811, %v1810
    %v1815 = vpack.c.b16 %v1813, %v1812
    %v1820 = vunpack.c.l.b16 %v1182
    %v1821 = vunpack.c.l.b16 %v1183
    %v1822 = vunpack.c.l.b16 %v1184
    %v1823 = vunpack.c.l.b16 %v1185
    %v1824 = vpack.c.b16 %v1821, %v1820
    %v1825 = vpack.c.b16 %v1823, %v1822
    %v1829 = vsel %vm1216, %v1814, 0
    %v1832 = vsel %vm1216, %v1815, 0
    %1834 = vmatpush.bf16.msra.mxu0 0
    %1835 = vmatpush.bf16.msra.mxu0 0
    %1836 = vmatpush.bf16.msra.mxu0 0
    %1837 = vmatpush.bf16.msra.mxu0 0
    %1838 = vmatpush.bf16.msra.mxu0 0
    %1839 = vmatpush.bf16.msra.mxu0 0
    %1840 = vmatpush.bf16.msra.mxu0 %v1825
    %1841 = vmatpush.bf16.msra.mxu0 %v1824
    %1842 = vmatmul.bf16.gmra.mxu0 %v1829
    %v1843 = vpop.f32.mrf.mxu0
    %v1844 = vadd.f32 0.0, %v1843
    %v1845 = vpop.f32.mrf.mxu0
    %v1846 = vadd.f32 0.0, %v1845
    %1847 = vmatmul.bf16.gmra.mxu0 %v1832
    %v1848 = vpop.f32.mrf.mxu0
    %v1849 = vadd.f32 0.0, %v1848
    %v1850 = vpop.f32.mrf.mxu0
    %v1851 = vadd.f32 0.0, %v1850
    %1852 = vdwg.mxu0
    %v1857 = vunpack.c.l.b16 %v103
    %v1858 = vunpack.c.l.b16 %v104
    %v1859 = vunpack.c.l.b16 %v105
    %v1860 = vunpack.c.l.b16 %v106
    %v1861 = vpack.c.b16 %v1858, %v1857
    %v1862 = vpack.c.b16 %v1860, %v1859
    %v1867 = vunpack.c.l.b16 %v1186
    %v1868 = vunpack.c.l.b16 %v1187
    %v1869 = vunpack.c.l.b16 %v1188
    %v1870 = vunpack.c.l.b16 %v1189
    %v1871 = vpack.c.b16 %v1868, %v1867
    %v1872 = vpack.c.b16 %v1870, %v1869
    %v1876 = vsel %vm1216, %v1861, 0
    %v1879 = vsel %vm1216, %v1862, 0
    %1881 = vmatpush.bf16.msra.mxu0 0
    %1882 = vmatpush.bf16.msra.mxu0 0
    %1883 = vmatpush.bf16.msra.mxu0 0
    %1884 = vmatpush.bf16.msra.mxu0 0
    %1885 = vmatpush.bf16.msra.mxu0 0
    %1886 = vmatpush.bf16.msra.mxu0 0
    %1887 = vmatpush.bf16.msra.mxu0 %v1872
    %1888 = vmatpush.bf16.msra.mxu0 %v1871
    %1889 = vmatmul.bf16.gmra.mxu0 %v1876
    %v1890 = vpop.f32.mrf.mxu0
    %v1891 = vadd.f32 0.0, %v1890
    %v1892 = vpop.f32.mrf.mxu0
    %v1893 = vadd.f32 0.0, %v1892
    %1894 = vmatmul.bf16.gmra.mxu0 %v1879
    %v1895 = vpop.f32.mrf.mxu0
    %v1896 = vadd.f32 0.0, %v1895
    %v1897 = vpop.f32.mrf.mxu0
    %v1898 = vadd.f32 0.0, %v1897
    %1899 = vdwg.mxu0
    %v1904 = vunpack.c.l.b16 %v107
    %v1905 = vunpack.c.l.b16 %v108
    %v1906 = vunpack.c.l.b16 %v109
    %v1907 = vunpack.c.l.b16 %v110
    %v1908 = vpack.c.b16 %v1905, %v1904
    %v1909 = vpack.c.b16 %v1907, %v1906
    %v1914 = vunpack.c.l.b16 %v1190
    %v1915 = vunpack.c.l.b16 %v1191
    %v1916 = vunpack.c.l.b16 %v1192
    %v1917 = vunpack.c.l.b16 %v1193
    %v1918 = vpack.c.b16 %v1915, %v1914
    %v1919 = vpack.c.b16 %v1917, %v1916
    %v1923 = vsel %vm1216, %v1908, 0
    %v1926 = vsel %vm1216, %v1909, 0
    %1928 = vmatpush.bf16.msra.mxu0 0
    %1929 = vmatpush.bf16.msra.mxu0 0
    %1930 = vmatpush.bf16.msra.mxu0 0
    %1931 = vmatpush.bf16.msra.mxu0 0
    %1932 = vmatpush.bf16.msra.mxu0 0
    %1933 = vmatpush.bf16.msra.mxu0 0
    %1934 = vmatpush.bf16.msra.mxu0 %v1919
    %1935 = vmatpush.bf16.msra.mxu0 %v1918
    %1936 = vmatmul.bf16.gmra.mxu0 %v1923
    %v1937 = vpop.f32.mrf.mxu0
    %v1938 = vadd.f32 0.0, %v1937
    %v1939 = vpop.f32.mrf.mxu0
    %v1940 = vadd.f32 0.0, %v1939
    %1941 = vmatmul.bf16.gmra.mxu0 %v1926
    %v1942 = vpop.f32.mrf.mxu0
    %v1943 = vadd.f32 0.0, %v1942
    %v1944 = vpop.f32.mrf.mxu0
    %v1945 = vadd.f32 0.0, %v1944
    %1946 = vdwg.mxu0
    %v1947 = vmax.f32 %v1233, 0.0
    %v1948 = vmax.f32 %v1235, 0.0
    %v1949 = vmax.f32 %v1238, 0.0
    %v1950 = vmax.f32 %v1240, 0.0
    %v1951 = vmax.f32 %v1280, 0.0
    %v1952 = vmax.f32 %v1282, 0.0
    %v1953 = vmax.f32 %v1285, 0.0
    %v1954 = vmax.f32 %v1287, 0.0
    %v1955 = vmax.f32 %v1327, 0.0
    %v1956 = vmax.f32 %v1329, 0.0
    %v1957 = vmax.f32 %v1332, 0.0
    %v1958 = vmax.f32 %v1334, 0.0
    %v1959 = vmax.f32 %v1374, 0.0
    %v1960 = vmax.f32 %v1376, 0.0
    %v1961 = vmax.f32 %v1379, 0.0
    %v1962 = vmax.f32 %v1381, 0.0
    %v1963 = vmax.f32 %v1421, 0.0
    %v1964 = vmax.f32 %v1423, 0.0
    %v1965 = vmax.f32 %v1426, 0.0
    %v1966 = vmax.f32 %v1428, 0.0
    %v1967 = vmax.f32 %v1468, 0.0
    %v1968 = vmax.f32 %v1470, 0.0
    %v1969 = vmax.f32 %v1473, 0.0
    %v1970 = vmax.f32 %v1475, 0.0
    %v1971 = vmax.f32 %v1515, 0.0
    %v1972 = vmax.f32 %v1517, 0.0
    %v1973 = vmax.f32 %v1520, 0.0
    %v1974 = vmax.f32 %v1522, 0.0
    %v1975 = vmax.f32 %v1562, 0.0
    %v1976 = vmax.f32 %v1564, 0.0
    %v1977 = vmax.f32 %v1567, 0.0
    %v1978 = vmax.f32 %v1569, 0.0
    %v1979 = vmax.f32 %v1609, 0.0
    %v1980 = vmax.f32 %v1611, 0.0
    %v1981 = vmax.f32 %v1614, 0.0
    %v1982 = vmax.f32 %v1616, 0.0
    %v1983 = vmax.f32 %v1656, 0.0
    %v1984 = vmax.f32 %v1658, 0.0
    %v1985 = vmax.f32 %v1661, 0.0
    %v1986 = vmax.f32 %v1663, 0.0
    %v1987 = vmax.f32 %v1703, 0.0
    %v1988 = vmax.f32 %v1705, 0.0
    %v1989 = vmax.f32 %v1708, 0.0
    %v1990 = vmax.f32 %v1710, 0.0
    %v1991 = vmax.f32 %v1750, 0.0
    %v1992 = vmax.f32 %v1752, 0.0
    %v1993 = vmax.f32 %v1755, 0.0
    %v1994 = vmax.f32 %v1757, 0.0
    %v1995 = vmax.f32 %v1797, 0.0
    %v1996 = vmax.f32 %v1799, 0.0
    %v1997 = vmax.f32 %v1802, 0.0
    %v1998 = vmax.f32 %v1804, 0.0
    %v1999 = vmax.f32 %v1844, 0.0
    %v2000 = vmax.f32 %v1846, 0.0
    %v2001 = vmax.f32 %v1849, 0.0
    %v2002 = vmax.f32 %v1851, 0.0
    %v2003 = vmax.f32 %v1891, 0.0
    %v2004 = vmax.f32 %v1893, 0.0
    %v2005 = vmax.f32 %v1896, 0.0
    %v2006 = vmax.f32 %v1898, 0.0
    %v2007 = vmax.f32 %v1938, 0.0
    %v2008 = vmax.f32 %v1940, 0.0
    %v2009 = vmax.f32 %v1943, 0.0
    %v2010 = vmax.f32 %v1945, 0.0
    %v2011 = vpack.c.bf16 %v1947, %v1947
    %v2012 = vpack.c.bf16 %v1948, %v1948
    %v2013 = vpack.c.bf16 %v1949, %v1949
    %v2014 = vpack.c.bf16 %v1950, %v1950
    %v2015 = vpack.c.bf16 %v1951, %v1951
    %v2016 = vpack.c.bf16 %v1952, %v1952
    %v2017 = vpack.c.bf16 %v1953, %v1953
    %v2018 = vpack.c.bf16 %v1954, %v1954
    %v2019 = vpack.c.bf16 %v1955, %v1955
    %v2020 = vpack.c.bf16 %v1956, %v1956
    %v2021 = vpack.c.bf16 %v1957, %v1957
    %v2022 = vpack.c.bf16 %v1958, %v1958
    %v2023 = vpack.c.bf16 %v1959, %v1959
    %v2024 = vpack.c.bf16 %v1960, %v1960
    %v2025 = vpack.c.bf16 %v1961, %v1961
    %v2026 = vpack.c.bf16 %v1962, %v1962
    %v2027 = vpack.c.bf16 %v1963, %v1963
    %v2028 = vpack.c.bf16 %v1964, %v1964
    %v2029 = vpack.c.bf16 %v1965, %v1965
    %v2030 = vpack.c.bf16 %v1966, %v1966
    %v2031 = vpack.c.bf16 %v1967, %v1967
    %v2032 = vpack.c.bf16 %v1968, %v1968
    %v2033 = vpack.c.bf16 %v1969, %v1969
    %v2034 = vpack.c.bf16 %v1970, %v1970
    %v2035 = vpack.c.bf16 %v1971, %v1971
    %v2036 = vpack.c.bf16 %v1972, %v1972
    %v2037 = vpack.c.bf16 %v1973, %v1973
    %v2038 = vpack.c.bf16 %v1974, %v1974
    %v2039 = vpack.c.bf16 %v1975, %v1975
    %v2040 = vpack.c.bf16 %v1976, %v1976
    %v2041 = vpack.c.bf16 %v1977, %v1977
    %v2042 = vpack.c.bf16 %v1978, %v1978
    %v2043 = vpack.c.bf16 %v1979, %v1979
    %v2044 = vpack.c.bf16 %v1980, %v1980
    %v2045 = vpack.c.bf16 %v1981, %v1981
    %v2046 = vpack.c.bf16 %v1982, %v1982
    %v2047 = vpack.c.bf16 %v1983, %v1983
    %v2048 = vpack.c.bf16 %v1984, %v1984
    %v2049 = vpack.c.bf16 %v1985, %v1985
    %v2050 = vpack.c.bf16 %v1986, %v1986
    %v2051 = vpack.c.bf16 %v1987, %v1987
    %v2052 = vpack.c.bf16 %v1988, %v1988
    %v2053 = vpack.c.bf16 %v1989, %v1989
    %v2054 = vpack.c.bf16 %v1990, %v1990
    %v2055 = vpack.c.bf16 %v1991, %v1991
    %v2056 = vpack.c.bf16 %v1992, %v1992
    %v2057 = vpack.c.bf16 %v1993, %v1993
    %v2058 = vpack.c.bf16 %v1994, %v1994
    %v2059 = vpack.c.bf16 %v1995, %v1995
    %v2060 = vpack.c.bf16 %v1996, %v1996
    %v2061 = vpack.c.bf16 %v1997, %v1997
    %v2062 = vpack.c.bf16 %v1998, %v1998
    %v2063 = vpack.c.bf16 %v1999, %v1999
    %v2064 = vpack.c.bf16 %v2000, %v2000
    %v2065 = vpack.c.bf16 %v2001, %v2001
    %v2066 = vpack.c.bf16 %v2002, %v2002
    %v2067 = vpack.c.bf16 %v2003, %v2003
    %v2068 = vpack.c.bf16 %v2004, %v2004
    %v2069 = vpack.c.bf16 %v2005, %v2005
    %v2070 = vpack.c.bf16 %v2006, %v2006
    %v2071 = vpack.c.bf16 %v2007, %v2007
    %v2072 = vpack.c.bf16 %v2008, %v2008
    %v2073 = vpack.c.bf16 %v2009, %v2009
    %v2074 = vpack.c.bf16 %v2010, %v2010
    %v2139 = vunpack.c.l.b16 %v2011
    %v2140 = vunpack.c.l.b16 %v2012
    %v2141 = vunpack.c.l.b16 %v2013
    %v2142 = vunpack.c.l.b16 %v2014
    %v2143 = vunpack.c.l.b16 %v2015
    %v2144 = vunpack.c.l.b16 %v2016
    %v2145 = vunpack.c.l.b16 %v2017
    %v2146 = vunpack.c.l.b16 %v2018
    %v2147 = vunpack.c.l.b16 %v2019
    %v2148 = vunpack.c.l.b16 %v2020
    %v2149 = vunpack.c.l.b16 %v2021
    %v2150 = vunpack.c.l.b16 %v2022
    %v2151 = vunpack.c.l.b16 %v2023
    %v2152 = vunpack.c.l.b16 %v2024
    %v2153 = vunpack.c.l.b16 %v2025
    %v2154 = vunpack.c.l.b16 %v2026
    %v2155 = vunpack.c.l.b16 %v2027
    %v2156 = vunpack.c.l.b16 %v2028
    %v2157 = vunpack.c.l.b16 %v2029
    %v2158 = vunpack.c.l.b16 %v2030
    %v2159 = vunpack.c.l.b16 %v2031
    %v2160 = vunpack.c.l.b16 %v2032
    %v2161 = vunpack.c.l.b16 %v2033
    %v2162 = vunpack.c.l.b16 %v2034
    %v2163 = vunpack.c.l.b16 %v2035
    %v2164 = vunpack.c.l.b16 %v2036
    %v2165 = vunpack.c.l.b16 %v2037
    %v2166 = vunpack.c.l.b16 %v2038
    %v2167 = vunpack.c.l.b16 %v2039
    %v2168 = vunpack.c.l.b16 %v2040
    %v2169 = vunpack.c.l.b16 %v2041
    %v2170 = vunpack.c.l.b16 %v2042
    %v2171 = vunpack.c.l.b16 %v2043
    %v2172 = vunpack.c.l.b16 %v2044
    %v2173 = vunpack.c.l.b16 %v2045
    %v2174 = vunpack.c.l.b16 %v2046
    %v2175 = vunpack.c.l.b16 %v2047
    %v2176 = vunpack.c.l.b16 %v2048
    %v2177 = vunpack.c.l.b16 %v2049
    %v2178 = vunpack.c.l.b16 %v2050
    %v2179 = vunpack.c.l.b16 %v2051
    %v2180 = vunpack.c.l.b16 %v2052
    %v2181 = vunpack.c.l.b16 %v2053
    %v2182 = vunpack.c.l.b16 %v2054
    %v2183 = vunpack.c.l.b16 %v2055
    %v2184 = vunpack.c.l.b16 %v2056
    %v2185 = vunpack.c.l.b16 %v2057
    %v2186 = vunpack.c.l.b16 %v2058
    %v2187 = vunpack.c.l.b16 %v2059
    %v2188 = vunpack.c.l.b16 %v2060
    %v2189 = vunpack.c.l.b16 %v2061
    %v2190 = vunpack.c.l.b16 %v2062
    %v2191 = vunpack.c.l.b16 %v2063
    %v2192 = vunpack.c.l.b16 %v2064
    %v2193 = vunpack.c.l.b16 %v2065
    %v2194 = vunpack.c.l.b16 %v2066
    %v2195 = vunpack.c.l.b16 %v2067
    %v2196 = vunpack.c.l.b16 %v2068
    %v2197 = vunpack.c.l.b16 %v2069
    %v2198 = vunpack.c.l.b16 %v2070
    %v2199 = vunpack.c.l.b16 %v2071
    %v2200 = vunpack.c.l.b16 %v2072
    %v2201 = vunpack.c.l.b16 %v2073
    %v2202 = vunpack.c.l.b16 %v2074
    %v2203 = vpack.c.b16 %v2140, %v2139
    %v2204 = vpack.c.b16 %v2142, %v2141
    %v2205 = vpack.c.b16 %v2144, %v2143
    %v2206 = vpack.c.b16 %v2146, %v2145
    %v2207 = vpack.c.b16 %v2148, %v2147
    %v2208 = vpack.c.b16 %v2150, %v2149
    %v2209 = vpack.c.b16 %v2152, %v2151
    %v2210 = vpack.c.b16 %v2154, %v2153
    %v2211 = vpack.c.b16 %v2156, %v2155
    %v2212 = vpack.c.b16 %v2158, %v2157
    %v2213 = vpack.c.b16 %v2160, %v2159
    %v2214 = vpack.c.b16 %v2162, %v2161
    %v2215 = vpack.c.b16 %v2164, %v2163
    %v2216 = vpack.c.b16 %v2166, %v2165
    %v2217 = vpack.c.b16 %v2168, %v2167
    %v2218 = vpack.c.b16 %v2170, %v2169
    %v2219 = vpack.c.b16 %v2172, %v2171
    %v2220 = vpack.c.b16 %v2174, %v2173
    %v2221 = vpack.c.b16 %v2176, %v2175
    %v2222 = vpack.c.b16 %v2178, %v2177
    %v2223 = vpack.c.b16 %v2180, %v2179
    %v2224 = vpack.c.b16 %v2182, %v2181
    %v2225 = vpack.c.b16 %v2184, %v2183
    %v2226 = vpack.c.b16 %v2186, %v2185
    %v2227 = vpack.c.b16 %v2188, %v2187
    %v2228 = vpack.c.b16 %v2190, %v2189
    %v2229 = vpack.c.b16 %v2192, %v2191
    %v2230 = vpack.c.b16 %v2194, %v2193
    %v2231 = vpack.c.b16 %v2196, %v2195
    %v2232 = vpack.c.b16 %v2198, %v2197
    %v2233 = vpack.c.b16 %v2200, %v2199
    %v2234 = vpack.c.b16 %v2202, %v2201
    %v2268 = vperm.slane %v209, 0
    %v2269 = vperm.slane %v209, 1
    %v2270 = vperm.slane %v209, 2
    %v2271 = vperm.slane %v209, 3
    %v2340 = vunpack.c.l.b16 %v145
    %v2341 = vunpack.c.h.b16 %v145
    %v2342 = vunpack.c.l.b16 %v146
    %v2343 = vunpack.c.h.b16 %v146
    %v2344 = vunpack.c.l.b16 %v147
    %v2345 = vunpack.c.h.b16 %v147
    %v2346 = vunpack.c.l.b16 %v148
    %v2347 = vunpack.c.h.b16 %v148
    %v2348 = vunpack.c.l.b16 %v149
    %v2349 = vunpack.c.h.b16 %v149
    %v2350 = vunpack.c.l.b16 %v150
    %v2351 = vunpack.c.h.b16 %v150
    %v2352 = vunpack.c.l.b16 %v151
    %v2353 = vunpack.c.h.b16 %v151
    %v2354 = vunpack.c.l.b16 %v152
    %v2355 = vunpack.c.h.b16 %v152
    %v2356 = vunpack.c.l.b16 %v153
    %v2357 = vunpack.c.h.b16 %v153
    %v2358 = vunpack.c.l.b16 %v154
    %v2359 = vunpack.c.h.b16 %v154
    %v2360 = vunpack.c.l.b16 %v155
    %v2361 = vunpack.c.h.b16 %v155
    %v2362 = vunpack.c.l.b16 %v156
    %v2363 = vunpack.c.h.b16 %v156
    %v2364 = vunpack.c.l.b16 %v157
    %v2365 = vunpack.c.h.b16 %v157
    %v2366 = vunpack.c.l.b16 %v158
    %v2367 = vunpack.c.h.b16 %v158
    %v2368 = vunpack.c.l.b16 %v159
    %v2369 = vunpack.c.h.b16 %v159
    %v2370 = vunpack.c.l.b16 %v160
    %v2371 = vunpack.c.h.b16 %v160
    %v2372 = vunpack.c.l.b16 %v161
    %v2373 = vunpack.c.h.b16 %v161
    %v2374 = vunpack.c.l.b16 %v162
    %v2375 = vunpack.c.h.b16 %v162
    %v2376 = vunpack.c.l.b16 %v163
    %v2377 = vunpack.c.h.b16 %v163
    %v2378 = vunpack.c.l.b16 %v164
    %v2379 = vunpack.c.h.b16 %v164
    %v2380 = vunpack.c.l.b16 %v165
    %v2381 = vunpack.c.h.b16 %v165
    %v2382 = vunpack.c.l.b16 %v166
    %v2383 = vunpack.c.h.b16 %v166
    %v2384 = vunpack.c.l.b16 %v167
    %v2385 = vunpack.c.h.b16 %v167
    %v2386 = vunpack.c.l.b16 %v168
    %v2387 = vunpack.c.h.b16 %v168
    %v2388 = vunpack.c.l.b16 %v169
    %v2389 = vunpack.c.h.b16 %v169
    %v2390 = vunpack.c.l.b16 %v170
    %v2391 = vunpack.c.h.b16 %v170
    %v2392 = vunpack.c.l.b16 %v171
    %v2393 = vunpack.c.h.b16 %v171
    %v2394 = vunpack.c.l.b16 %v172
    %v2395 = vunpack.c.h.b16 %v172
    %v2396 = vunpack.c.l.b16 %v173
    %v2397 = vunpack.c.h.b16 %v173
    %v2398 = vunpack.c.l.b16 %v174
    %v2399 = vunpack.c.h.b16 %v174
    %v2400 = vunpack.c.l.b16 %v175
    %v2401 = vunpack.c.h.b16 %v175
    %v2402 = vunpack.c.l.b16 %v176
    %v2403 = vunpack.c.h.b16 %v176
    %v2404 = vunpack.c.l.b16 %v177
    %v2405 = vunpack.c.h.b16 %v177
    %v2406 = vunpack.c.l.b16 %v178
    %v2407 = vunpack.c.h.b16 %v178
    %v2408 = vunpack.c.l.b16 %v179
    %v2409 = vunpack.c.h.b16 %v179
    %v2410 = vunpack.c.l.b16 %v180
    %v2411 = vunpack.c.h.b16 %v180
    %v2412 = vunpack.c.l.b16 %v181
    %v2413 = vunpack.c.h.b16 %v181
    %v2414 = vunpack.c.l.b16 %v182
    %v2415 = vunpack.c.h.b16 %v182
    %v2416 = vunpack.c.l.b16 %v183
    %v2417 = vunpack.c.h.b16 %v183
    %v2418 = vunpack.c.l.b16 %v184
    %v2419 = vunpack.c.h.b16 %v184
    %v2420 = vunpack.c.l.b16 %v185
    %v2421 = vunpack.c.h.b16 %v185
    %v2422 = vunpack.c.l.b16 %v186
    %v2423 = vunpack.c.h.b16 %v186
    %v2424 = vunpack.c.l.b16 %v187
    %v2425 = vunpack.c.h.b16 %v187
    %v2426 = vunpack.c.l.b16 %v188
    %v2427 = vunpack.c.h.b16 %v188
    %v2428 = vunpack.c.l.b16 %v189
    %v2429 = vunpack.c.h.b16 %v189
    %v2430 = vunpack.c.l.b16 %v190
    %v2431 = vunpack.c.h.b16 %v190
    %v2432 = vunpack.c.l.b16 %v191
    %v2433 = vunpack.c.h.b16 %v191
    %v2434 = vunpack.c.l.b16 %v192
    %v2435 = vunpack.c.h.b16 %v192
    %v2436 = vunpack.c.l.b16 %v193
    %v2437 = vunpack.c.h.b16 %v193
    %v2438 = vunpack.c.l.b16 %v194
    %v2439 = vunpack.c.h.b16 %v194
    %v2440 = vunpack.c.l.b16 %v195
    %v2441 = vunpack.c.h.b16 %v195
    %v2442 = vunpack.c.l.b16 %v196
    %v2443 = vunpack.c.h.b16 %v196
    %v2444 = vunpack.c.l.b16 %v197
    %v2445 = vunpack.c.h.b16 %v197
    %v2446 = vunpack.c.l.b16 %v198
    %v2447 = vunpack.c.h.b16 %v198
    %v2448 = vunpack.c.l.b16 %v199
    %v2449 = vunpack.c.h.b16 %v199
    %v2450 = vunpack.c.l.b16 %v200
    %v2451 = vunpack.c.h.b16 %v200
    %v2452 = vunpack.c.l.b16 %v201
    %v2453 = vunpack.c.h.b16 %v201
    %v2454 = vunpack.c.l.b16 %v202
    %v2455 = vunpack.c.h.b16 %v202
    %v2456 = vunpack.c.l.b16 %v203
    %v2457 = vunpack.c.h.b16 %v203
    %v2458 = vunpack.c.l.b16 %v204
    %v2459 = vunpack.c.h.b16 %v204
    %v2460 = vunpack.c.l.b16 %v205
    %v2461 = vunpack.c.h.b16 %v205
    %v2462 = vunpack.c.l.b16 %v206
    %v2463 = vunpack.c.h.b16 %v206
    %v2464 = vunpack.c.l.b16 %v207
    %v2465 = vunpack.c.h.b16 %v207
    %v2466 = vunpack.c.l.b16 %v208
    %v2467 = vunpack.c.h.b16 %v208
    %v2468 = vpack.c.b16 %v2344, %v2340
    %v2469 = vpack.c.b16 %v2345, %v2341
    %v2470 = vpack.c.b16 %v2346, %v2342
    %v2471 = vpack.c.b16 %v2347, %v2343
    %v2472 = vpack.c.b16 %v2352, %v2348
    %v2473 = vpack.c.b16 %v2353, %v2349
    %v2474 = vpack.c.b16 %v2354, %v2350
    %v2475 = vpack.c.b16 %v2355, %v2351
    %v2476 = vpack.c.b16 %v2360, %v2356
    %v2477 = vpack.c.b16 %v2361, %v2357
    %v2478 = vpack.c.b16 %v2362, %v2358
    %v2479 = vpack.c.b16 %v2363, %v2359
    %v2480 = vpack.c.b16 %v2368, %v2364
    %v2481 = vpack.c.b16 %v2369, %v2365
    %v2482 = vpack.c.b16 %v2370, %v2366
    %v2483 = vpack.c.b16 %v2371, %v2367
    %v2484 = vpack.c.b16 %v2376, %v2372
    %v2485 = vpack.c.b16 %v2377, %v2373
    %v2486 = vpack.c.b16 %v2378, %v2374
    %v2487 = vpack.c.b16 %v2379, %v2375
    %v2488 = vpack.c.b16 %v2384, %v2380
    %v2489 = vpack.c.b16 %v2385, %v2381
    %v2490 = vpack.c.b16 %v2386, %v2382
    %v2491 = vpack.c.b16 %v2387, %v2383
    %v2492 = vpack.c.b16 %v2392, %v2388
    %v2493 = vpack.c.b16 %v2393, %v2389
    %v2494 = vpack.c.b16 %v2394, %v2390
    %v2495 = vpack.c.b16 %v2395, %v2391
    %v2496 = vpack.c.b16 %v2400, %v2396
    %v2497 = vpack.c.b16 %v2401, %v2397
    %v2498 = vpack.c.b16 %v2402, %v2398
    %v2499 = vpack.c.b16 %v2403, %v2399
    %v2500 = vpack.c.b16 %v2408, %v2404
    %v2501 = vpack.c.b16 %v2409, %v2405
    %v2502 = vpack.c.b16 %v2410, %v2406
    %v2503 = vpack.c.b16 %v2411, %v2407
    %v2504 = vpack.c.b16 %v2416, %v2412
    %v2505 = vpack.c.b16 %v2417, %v2413
    %v2506 = vpack.c.b16 %v2418, %v2414
    %v2507 = vpack.c.b16 %v2419, %v2415
    %v2508 = vpack.c.b16 %v2424, %v2420
    %v2509 = vpack.c.b16 %v2425, %v2421
    %v2510 = vpack.c.b16 %v2426, %v2422
    %v2511 = vpack.c.b16 %v2427, %v2423
    %v2512 = vpack.c.b16 %v2432, %v2428
    %v2513 = vpack.c.b16 %v2433, %v2429
    %v2514 = vpack.c.b16 %v2434, %v2430
    %v2515 = vpack.c.b16 %v2435, %v2431
    %v2516 = vpack.c.b16 %v2440, %v2436
    %v2517 = vpack.c.b16 %v2441, %v2437
    %v2518 = vpack.c.b16 %v2442, %v2438
    %v2519 = vpack.c.b16 %v2443, %v2439
    %v2520 = vpack.c.b16 %v2448, %v2444
    %v2521 = vpack.c.b16 %v2449, %v2445
    %v2522 = vpack.c.b16 %v2450, %v2446
    %v2523 = vpack.c.b16 %v2451, %v2447
    %v2524 = vpack.c.b16 %v2456, %v2452
    %v2525 = vpack.c.b16 %v2457, %v2453
    %v2526 = vpack.c.b16 %v2458, %v2454
    %v2527 = vpack.c.b16 %v2459, %v2455
    %v2528 = vpack.c.b16 %v2464, %v2460
    %v2529 = vpack.c.b16 %v2465, %v2461
    %v2530 = vpack.c.b16 %v2466, %v2462
    %v2531 = vpack.c.b16 %v2467, %v2463
    %2596 = vmatpush.bf16.msra.mxu0 %v2496
    %2597 = vmatpush.bf16.msra.mxu0 %v2492
    %2598 = vmatpush.bf16.msra.mxu0 %v2488
    %2599 = vmatpush.bf16.msra.mxu0 %v2484
    %2600 = vmatpush.bf16.msra.mxu0 %v2480
    %2601 = vmatpush.bf16.msra.mxu0 %v2476
    %2602 = vmatpush.bf16.msra.mxu0 %v2472
    %2603 = vmatpush.bf16.msra.mxu0 %v2468
    %2604 = vmatmul.bf16.gmra.mxu0 %v2203
    %v2605 = vpop.f32.mrf.mxu0
    %v2606 = vadd.f32 %v2268, %v2605
    %v2607 = vpop.f32.mrf.mxu0
    %v2608 = vadd.f32 %v2268, %v2607
    %2609 = vmatmul.bf16.gmra.mxu0 %v2204
    %v2610 = vpop.f32.mrf.mxu0
    %v2611 = vadd.f32 %v2268, %v2610
    %v2612 = vpop.f32.mrf.mxu0
    %v2613 = vadd.f32 %v2268, %v2612
    %2614 = vmatmul.bf16.gmra.mxu0 %v2205
    %v2615 = vpop.f32.mrf.mxu0
    %v2616 = vadd.f32 %v2268, %v2615
    %v2617 = vpop.f32.mrf.mxu0
    %v2618 = vadd.f32 %v2268, %v2617
    %2619 = vmatmul.bf16.gmra.mxu0 %v2206
    %v2620 = vpop.f32.mrf.mxu0
    %v2621 = vadd.f32 %v2268, %v2620
    %v2622 = vpop.f32.mrf.mxu0
    %v2623 = vadd.f32 %v2268, %v2622
    %2624 = vmatmul.bf16.gmra.mxu0 %v2207
    %v2625 = vpop.f32.mrf.mxu0
    %v2626 = vadd.f32 %v2268, %v2625
    %v2627 = vpop.f32.mrf.mxu0
    %v2628 = vadd.f32 %v2268, %v2627
    %2629 = vmatmul.bf16.gmra.mxu0 %v2208
    %v2630 = vpop.f32.mrf.mxu0
    %v2631 = vadd.f32 %v2268, %v2630
    %v2632 = vpop.f32.mrf.mxu0
    %v2633 = vadd.f32 %v2268, %v2632
    %2634 = vmatmul.bf16.gmra.mxu0 %v2209
    %v2635 = vpop.f32.mrf.mxu0
    %v2636 = vadd.f32 %v2268, %v2635
    %v2637 = vpop.f32.mrf.mxu0
    %v2638 = vadd.f32 %v2268, %v2637
    %2639 = vmatmul.bf16.gmra.mxu0 %v2210
    %v2640 = vpop.f32.mrf.mxu0
    %v2641 = vadd.f32 %v2268, %v2640
    %v2642 = vpop.f32.mrf.mxu0
    %v2643 = vadd.f32 %v2268, %v2642
    %2644 = vmatmul.bf16.gmra.mxu0 %v2211
    %v2645 = vpop.f32.mrf.mxu0
    %v2646 = vadd.f32 %v2268, %v2645
    %v2647 = vpop.f32.mrf.mxu0
    %v2648 = vadd.f32 %v2268, %v2647
    %2649 = vmatmul.bf16.gmra.mxu0 %v2212
    %v2650 = vpop.f32.mrf.mxu0
    %v2651 = vadd.f32 %v2268, %v2650
    %v2652 = vpop.f32.mrf.mxu0
    %v2653 = vadd.f32 %v2268, %v2652
    %2654 = vmatmul.bf16.gmra.mxu0 %v2213
    %v2655 = vpop.f32.mrf.mxu0
    %v2656 = vadd.f32 %v2268, %v2655
    %v2657 = vpop.f32.mrf.mxu0
    %v2658 = vadd.f32 %v2268, %v2657
    %2659 = vmatmul.bf16.gmra.mxu0 %v2214
    %v2660 = vpop.f32.mrf.mxu0
    %v2661 = vadd.f32 %v2268, %v2660
    %v2662 = vpop.f32.mrf.mxu0
    %v2663 = vadd.f32 %v2268, %v2662
    %2664 = vmatmul.bf16.gmra.mxu0 %v2215
    %v2665 = vpop.f32.mrf.mxu0
    %v2666 = vadd.f32 %v2268, %v2665
    %v2667 = vpop.f32.mrf.mxu0
    %v2668 = vadd.f32 %v2268, %v2667
    %2669 = vmatmul.bf16.gmra.mxu0 %v2216
    %v2670 = vpop.f32.mrf.mxu0
    %v2671 = vadd.f32 %v2268, %v2670
    %v2672 = vpop.f32.mrf.mxu0
    %v2673 = vadd.f32 %v2268, %v2672
    %2674 = vmatmul.bf16.gmra.mxu0 %v2217
    %v2675 = vpop.f32.mrf.mxu0
    %v2676 = vadd.f32 %v2268, %v2675
    %v2677 = vpop.f32.mrf.mxu0
    %v2678 = vadd.f32 %v2268, %v2677
    %2679 = vmatmul.bf16.gmra.mxu0 %v2218
    %v2680 = vpop.f32.mrf.mxu0
    %v2681 = vadd.f32 %v2268, %v2680
    %v2682 = vpop.f32.mrf.mxu0
    %v2683 = vadd.f32 %v2268, %v2682
    %2684 = vmatmul.bf16.gmra.mxu0 %v2219
    %v2685 = vpop.f32.mrf.mxu0
    %v2686 = vadd.f32 %v2268, %v2685
    %v2687 = vpop.f32.mrf.mxu0
    %v2688 = vadd.f32 %v2268, %v2687
    %2689 = vmatmul.bf16.gmra.mxu0 %v2220
    %v2690 = vpop.f32.mrf.mxu0
    %v2691 = vadd.f32 %v2268, %v2690
    %v2692 = vpop.f32.mrf.mxu0
    %v2693 = vadd.f32 %v2268, %v2692
    %2694 = vmatmul.bf16.gmra.mxu0 %v2221
    %v2695 = vpop.f32.mrf.mxu0
    %v2696 = vadd.f32 %v2268, %v2695
    %v2697 = vpop.f32.mrf.mxu0
    %v2698 = vadd.f32 %v2268, %v2697
    %2699 = vmatmul.bf16.gmra.mxu0 %v2222
    %v2700 = vpop.f32.mrf.mxu0
    %v2701 = vadd.f32 %v2268, %v2700
    %v2702 = vpop.f32.mrf.mxu0
    %v2703 = vadd.f32 %v2268, %v2702
    %2704 = vmatmul.bf16.gmra.mxu0 %v2223
    %v2705 = vpop.f32.mrf.mxu0
    %v2706 = vadd.f32 %v2268, %v2705
    %v2707 = vpop.f32.mrf.mxu0
    %v2708 = vadd.f32 %v2268, %v2707
    %2709 = vmatmul.bf16.gmra.mxu0 %v2224
    %v2710 = vpop.f32.mrf.mxu0
    %v2711 = vadd.f32 %v2268, %v2710
    %v2712 = vpop.f32.mrf.mxu0
    %v2713 = vadd.f32 %v2268, %v2712
    %2714 = vmatmul.bf16.gmra.mxu0 %v2225
    %v2715 = vpop.f32.mrf.mxu0
    %v2716 = vadd.f32 %v2268, %v2715
    %v2717 = vpop.f32.mrf.mxu0
    %v2718 = vadd.f32 %v2268, %v2717
    %2719 = vmatmul.bf16.gmra.mxu0 %v2226
    %v2720 = vpop.f32.mrf.mxu0
    %v2721 = vadd.f32 %v2268, %v2720
    %v2722 = vpop.f32.mrf.mxu0
    %v2723 = vadd.f32 %v2268, %v2722
    %2724 = vmatmul.bf16.gmra.mxu0 %v2227
    %v2725 = vpop.f32.mrf.mxu0
    %v2726 = vadd.f32 %v2268, %v2725
    %v2727 = vpop.f32.mrf.mxu0
    %v2728 = vadd.f32 %v2268, %v2727
    %2729 = vmatmul.bf16.gmra.mxu0 %v2228
    %v2730 = vpop.f32.mrf.mxu0
    %v2731 = vadd.f32 %v2268, %v2730
    %v2732 = vpop.f32.mrf.mxu0
    %v2733 = vadd.f32 %v2268, %v2732
    %2734 = vmatmul.bf16.gmra.mxu0 %v2229
    %v2735 = vpop.f32.mrf.mxu0
    %v2736 = vadd.f32 %v2268, %v2735
    %v2737 = vpop.f32.mrf.mxu0
    %v2738 = vadd.f32 %v2268, %v2737
    %2739 = vmatmul.bf16.gmra.mxu0 %v2230
    %v2740 = vpop.f32.mrf.mxu0
    %v2741 = vadd.f32 %v2268, %v2740
    %v2742 = vpop.f32.mrf.mxu0
    %v2743 = vadd.f32 %v2268, %v2742
    %2744 = vmatmul.bf16.gmra.mxu0 %v2231
    %v2745 = vpop.f32.mrf.mxu0
    %v2746 = vadd.f32 %v2268, %v2745
    %v2747 = vpop.f32.mrf.mxu0
    %v2748 = vadd.f32 %v2268, %v2747
    %2749 = vmatmul.bf16.gmra.mxu0 %v2232
    %v2750 = vpop.f32.mrf.mxu0
    %v2751 = vadd.f32 %v2268, %v2750
    %v2752 = vpop.f32.mrf.mxu0
    %v2753 = vadd.f32 %v2268, %v2752
    %2754 = vmatmul.bf16.gmra.mxu0 %v2233
    %v2755 = vpop.f32.mrf.mxu0
    %v2756 = vadd.f32 %v2268, %v2755
    %v2757 = vpop.f32.mrf.mxu0
    %v2758 = vadd.f32 %v2268, %v2757
    %2759 = vmatmul.bf16.gmra.mxu0 %v2234
    %v2760 = vpop.f32.mrf.mxu0
    %v2761 = vadd.f32 %v2268, %v2760
    %v2762 = vpop.f32.mrf.mxu0
    %v2763 = vadd.f32 %v2268, %v2762
    %2764 = vdwg.mxu0
    %2765 = vmatpush.bf16.msra.mxu0 %v2528
    %2766 = vmatpush.bf16.msra.mxu0 %v2524
    %2767 = vmatpush.bf16.msra.mxu0 %v2520
    %2768 = vmatpush.bf16.msra.mxu0 %v2516
    %2769 = vmatpush.bf16.msra.mxu0 %v2512
    %2770 = vmatpush.bf16.msra.mxu0 %v2508
    %2771 = vmatpush.bf16.msra.mxu0 %v2504
    %2772 = vmatpush.bf16.msra.mxu0 %v2500
    %2773 = vmatmul.bf16.gmra.mxu0 %v469
    %v2774 = vpop.f32.mrf.mxu0
    %v2775 = vadd.f32 %v2606, %v2774
    %v2776 = vpop.f32.mrf.mxu0
    %v2777 = vadd.f32 %v2608, %v2776
    %2778 = vmatmul.bf16.gmra.mxu0 %v470
    %v2779 = vpop.f32.mrf.mxu0
    %v2780 = vadd.f32 %v2611, %v2779
    %v2781 = vpop.f32.mrf.mxu0
    %v2782 = vadd.f32 %v2613, %v2781
    %2783 = vmatmul.bf16.gmra.mxu0 %v471
    %v2784 = vpop.f32.mrf.mxu0
    %v2785 = vadd.f32 %v2616, %v2784
    %v2786 = vpop.f32.mrf.mxu0
    %v2787 = vadd.f32 %v2618, %v2786
    %2788 = vmatmul.bf16.gmra.mxu0 %v472
    %v2789 = vpop.f32.mrf.mxu0
    %v2790 = vadd.f32 %v2621, %v2789
    %v2791 = vpop.f32.mrf.mxu0
    %v2792 = vadd.f32 %v2623, %v2791
    %2793 = vmatmul.bf16.gmra.mxu0 %v473
    %v2794 = vpop.f32.mrf.mxu0
    %v2795 = vadd.f32 %v2626, %v2794
    %v2796 = vpop.f32.mrf.mxu0
    %v2797 = vadd.f32 %v2628, %v2796
    %2798 = vmatmul.bf16.gmra.mxu0 %v474
    %v2799 = vpop.f32.mrf.mxu0
    %v2800 = vadd.f32 %v2631, %v2799
    %v2801 = vpop.f32.mrf.mxu0
    %v2802 = vadd.f32 %v2633, %v2801
    %2803 = vmatmul.bf16.gmra.mxu0 %v475
    %v2804 = vpop.f32.mrf.mxu0
    %v2805 = vadd.f32 %v2636, %v2804
    %v2806 = vpop.f32.mrf.mxu0
    %v2807 = vadd.f32 %v2638, %v2806
    %2808 = vmatmul.bf16.gmra.mxu0 %v476
    %v2809 = vpop.f32.mrf.mxu0
    %v2810 = vadd.f32 %v2641, %v2809
    %v2811 = vpop.f32.mrf.mxu0
    %v2812 = vadd.f32 %v2643, %v2811
    %2813 = vmatmul.bf16.gmra.mxu0 %v477
    %v2814 = vpop.f32.mrf.mxu0
    %v2815 = vadd.f32 %v2646, %v2814
    %v2816 = vpop.f32.mrf.mxu0
    %v2817 = vadd.f32 %v2648, %v2816
    %2818 = vmatmul.bf16.gmra.mxu0 %v478
    %v2819 = vpop.f32.mrf.mxu0
    %v2820 = vadd.f32 %v2651, %v2819
    %v2821 = vpop.f32.mrf.mxu0
    %v2822 = vadd.f32 %v2653, %v2821
    %2823 = vmatmul.bf16.gmra.mxu0 %v479
    %v2824 = vpop.f32.mrf.mxu0
    %v2825 = vadd.f32 %v2656, %v2824
    %v2826 = vpop.f32.mrf.mxu0
    %v2827 = vadd.f32 %v2658, %v2826
    %2828 = vmatmul.bf16.gmra.mxu0 %v480
    %v2829 = vpop.f32.mrf.mxu0
    %v2830 = vadd.f32 %v2661, %v2829
    %v2831 = vpop.f32.mrf.mxu0
    %v2832 = vadd.f32 %v2663, %v2831
    %2833 = vmatmul.bf16.gmra.mxu0 %v481
    %v2834 = vpop.f32.mrf.mxu0
    %v2835 = vadd.f32 %v2666, %v2834
    %v2836 = vpop.f32.mrf.mxu0
    %v2837 = vadd.f32 %v2668, %v2836
    %2838 = vmatmul.bf16.gmra.mxu0 %v482
    %v2839 = vpop.f32.mrf.mxu0
    %v2840 = vadd.f32 %v2671, %v2839
    %v2841 = vpop.f32.mrf.mxu0
    %v2842 = vadd.f32 %v2673, %v2841
    %2843 = vmatmul.bf16.gmra.mxu0 %v483
    %v2844 = vpop.f32.mrf.mxu0
    %v2845 = vadd.f32 %v2676, %v2844
    %v2846 = vpop.f32.mrf.mxu0
    %v2847 = vadd.f32 %v2678, %v2846
    %2848 = vmatmul.bf16.gmra.mxu0 %v484
    %v2849 = vpop.f32.mrf.mxu0
    %v2850 = vadd.f32 %v2681, %v2849
    %v2851 = vpop.f32.mrf.mxu0
    %v2852 = vadd.f32 %v2683, %v2851
    %2853 = vmatmul.bf16.gmra.mxu0 %v485
    %v2854 = vpop.f32.mrf.mxu0
    %v2855 = vadd.f32 %v2686, %v2854
    %v2856 = vpop.f32.mrf.mxu0
    %v2857 = vadd.f32 %v2688, %v2856
    %2858 = vmatmul.bf16.gmra.mxu0 %v486
    %v2859 = vpop.f32.mrf.mxu0
    %v2860 = vadd.f32 %v2691, %v2859
    %v2861 = vpop.f32.mrf.mxu0
    %v2862 = vadd.f32 %v2693, %v2861
    %2863 = vmatmul.bf16.gmra.mxu0 %v487
    %v2864 = vpop.f32.mrf.mxu0
    %v2865 = vadd.f32 %v2696, %v2864
    %v2866 = vpop.f32.mrf.mxu0
    %v2867 = vadd.f32 %v2698, %v2866
    %2868 = vmatmul.bf16.gmra.mxu0 %v488
    %v2869 = vpop.f32.mrf.mxu0
    %v2870 = vadd.f32 %v2701, %v2869
    %v2871 = vpop.f32.mrf.mxu0
    %v2872 = vadd.f32 %v2703, %v2871
    %2873 = vmatmul.bf16.gmra.mxu0 %v489
    %v2874 = vpop.f32.mrf.mxu0
    %v2875 = vadd.f32 %v2706, %v2874
    %v2876 = vpop.f32.mrf.mxu0
    %v2877 = vadd.f32 %v2708, %v2876
    %2878 = vmatmul.bf16.gmra.mxu0 %v490
    %v2879 = vpop.f32.mrf.mxu0
    %v2880 = vadd.f32 %v2711, %v2879
    %v2881 = vpop.f32.mrf.mxu0
    %v2882 = vadd.f32 %v2713, %v2881
    %2883 = vmatmul.bf16.gmra.mxu0 %v491
    %v2884 = vpop.f32.mrf.mxu0
    %v2885 = vadd.f32 %v2716, %v2884
    %v2886 = vpop.f32.mrf.mxu0
    %v2887 = vadd.f32 %v2718, %v2886
    %2888 = vmatmul.bf16.gmra.mxu0 %v492
    %v2889 = vpop.f32.mrf.mxu0
    %v2890 = vadd.f32 %v2721, %v2889
    %v2891 = vpop.f32.mrf.mxu0
    %v2892 = vadd.f32 %v2723, %v2891
    %2893 = vmatmul.bf16.gmra.mxu0 %v493
    %v2894 = vpop.f32.mrf.mxu0
    %v2895 = vadd.f32 %v2726, %v2894
    %v2896 = vpop.f32.mrf.mxu0
    %v2897 = vadd.f32 %v2728, %v2896
    %2898 = vmatmul.bf16.gmra.mxu0 %v494
    %v2899 = vpop.f32.mrf.mxu0
    %v2900 = vadd.f32 %v2731, %v2899
    %v2901 = vpop.f32.mrf.mxu0
    %v2902 = vadd.f32 %v2733, %v2901
    %2903 = vmatmul.bf16.gmra.mxu0 %v495
    %v2904 = vpop.f32.mrf.mxu0
    %v2905 = vadd.f32 %v2736, %v2904
    %v2906 = vpop.f32.mrf.mxu0
    %v2907 = vadd.f32 %v2738, %v2906
    %2908 = vmatmul.bf16.gmra.mxu0 %v496
    %v2909 = vpop.f32.mrf.mxu0
    %v2910 = vadd.f32 %v2741, %v2909
    %v2911 = vpop.f32.mrf.mxu0
    %v2912 = vadd.f32 %v2743, %v2911
    %2913 = vmatmul.bf16.gmra.mxu0 %v497
    %v2914 = vpop.f32.mrf.mxu0
    %v2915 = vadd.f32 %v2746, %v2914
    %v2916 = vpop.f32.mrf.mxu0
    %v2917 = vadd.f32 %v2748, %v2916
    %2918 = vmatmul.bf16.gmra.mxu0 %v498
    %v2919 = vpop.f32.mrf.mxu0
    %v2920 = vadd.f32 %v2751, %v2919
    %v2921 = vpop.f32.mrf.mxu0
    %v2922 = vadd.f32 %v2753, %v2921
    %2923 = vmatmul.bf16.gmra.mxu0 %v499
    %v2924 = vpop.f32.mrf.mxu0
    %v2925 = vadd.f32 %v2756, %v2924
    %v2926 = vpop.f32.mrf.mxu0
    %v2927 = vadd.f32 %v2758, %v2926
    %2928 = vmatmul.bf16.gmra.mxu0 %v500
    %v2929 = vpop.f32.mrf.mxu0
    %v2930 = vadd.f32 %v2761, %v2929
    %v2931 = vpop.f32.mrf.mxu0
    %v2932 = vadd.f32 %v2763, %v2931
    %2933 = vdwg.mxu0
    %2934 = vmatpush.bf16.msra.mxu0 %v2497
    %2935 = vmatpush.bf16.msra.mxu0 %v2493
    %2936 = vmatpush.bf16.msra.mxu0 %v2489
    %2937 = vmatpush.bf16.msra.mxu0 %v2485
    %2938 = vmatpush.bf16.msra.mxu0 %v2481
    %2939 = vmatpush.bf16.msra.mxu0 %v2477
    %2940 = vmatpush.bf16.msra.mxu0 %v2473
    %2941 = vmatpush.bf16.msra.mxu0 %v2469
    %2942 = vmatmul.bf16.gmra.mxu0 %v2203
    %v2943 = vpop.f32.mrf.mxu0
    %v2944 = vadd.f32 %v2269, %v2943
    %v2945 = vpop.f32.mrf.mxu0
    %v2946 = vadd.f32 %v2269, %v2945
    %2947 = vmatmul.bf16.gmra.mxu0 %v2204
    %v2948 = vpop.f32.mrf.mxu0
    %v2949 = vadd.f32 %v2269, %v2948
    %v2950 = vpop.f32.mrf.mxu0
    %v2951 = vadd.f32 %v2269, %v2950
    %2952 = vmatmul.bf16.gmra.mxu0 %v2205
    %v2953 = vpop.f32.mrf.mxu0
    %v2954 = vadd.f32 %v2269, %v2953
    %v2955 = vpop.f32.mrf.mxu0
    %v2956 = vadd.f32 %v2269, %v2955
    %2957 = vmatmul.bf16.gmra.mxu0 %v2206
    %v2958 = vpop.f32.mrf.mxu0
    %v2959 = vadd.f32 %v2269, %v2958
    %v2960 = vpop.f32.mrf.mxu0
    %v2961 = vadd.f32 %v2269, %v2960
    %2962 = vmatmul.bf16.gmra.mxu0 %v2207
    %v2963 = vpop.f32.mrf.mxu0
    %v2964 = vadd.f32 %v2269, %v2963
    %v2965 = vpop.f32.mrf.mxu0
    %v2966 = vadd.f32 %v2269, %v2965
    %2967 = vmatmul.bf16.gmra.mxu0 %v2208
    %v2968 = vpop.f32.mrf.mxu0
    %v2969 = vadd.f32 %v2269, %v2968
    %v2970 = vpop.f32.mrf.mxu0
    %v2971 = vadd.f32 %v2269, %v2970
    %2972 = vmatmul.bf16.gmra.mxu0 %v2209
    %v2973 = vpop.f32.mrf.mxu0
    %v2974 = vadd.f32 %v2269, %v2973
    %v2975 = vpop.f32.mrf.mxu0
    %v2976 = vadd.f32 %v2269, %v2975
    %2977 = vmatmul.bf16.gmra.mxu0 %v2210
    %v2978 = vpop.f32.mrf.mxu0
    %v2979 = vadd.f32 %v2269, %v2978
    %v2980 = vpop.f32.mrf.mxu0
    %v2981 = vadd.f32 %v2269, %v2980
    %2982 = vmatmul.bf16.gmra.mxu0 %v2211
    %v2983 = vpop.f32.mrf.mxu0
    %v2984 = vadd.f32 %v2269, %v2983
    %v2985 = vpop.f32.mrf.mxu0
    %v2986 = vadd.f32 %v2269, %v2985
    %2987 = vmatmul.bf16.gmra.mxu0 %v2212
    %v2988 = vpop.f32.mrf.mxu0
    %v2989 = vadd.f32 %v2269, %v2988
    %v2990 = vpop.f32.mrf.mxu0
    %v2991 = vadd.f32 %v2269, %v2990
    %2992 = vmatmul.bf16.gmra.mxu0 %v2213
    %v2993 = vpop.f32.mrf.mxu0
    %v2994 = vadd.f32 %v2269, %v2993
    %v2995 = vpop.f32.mrf.mxu0
    %v2996 = vadd.f32 %v2269, %v2995
    %2997 = vmatmul.bf16.gmra.mxu0 %v2214
    %v2998 = vpop.f32.mrf.mxu0
    %v2999 = vadd.f32 %v2269, %v2998
    %v3000 = vpop.f32.mrf.mxu0
    %v3001 = vadd.f32 %v2269, %v3000
    %3002 = vmatmul.bf16.gmra.mxu0 %v2215
    %v3003 = vpop.f32.mrf.mxu0
    %v3004 = vadd.f32 %v2269, %v3003
    %v3005 = vpop.f32.mrf.mxu0
    %v3006 = vadd.f32 %v2269, %v3005
    %3007 = vmatmul.bf16.gmra.mxu0 %v2216
    %v3008 = vpop.f32.mrf.mxu0
    %v3009 = vadd.f32 %v2269, %v3008
    %v3010 = vpop.f32.mrf.mxu0
    %v3011 = vadd.f32 %v2269, %v3010
    %3012 = vmatmul.bf16.gmra.mxu0 %v2217
    %v3013 = vpop.f32.mrf.mxu0
    %v3014 = vadd.f32 %v2269, %v3013
    %v3015 = vpop.f32.mrf.mxu0
    %v3016 = vadd.f32 %v2269, %v3015
    %3017 = vmatmul.bf16.gmra.mxu0 %v2218
    %v3018 = vpop.f32.mrf.mxu0
    %v3019 = vadd.f32 %v2269, %v3018
    %v3020 = vpop.f32.mrf.mxu0
    %v3021 = vadd.f32 %v2269, %v3020
    %3022 = vmatmul.bf16.gmra.mxu0 %v2219
    %v3023 = vpop.f32.mrf.mxu0
    %v3024 = vadd.f32 %v2269, %v3023
    %v3025 = vpop.f32.mrf.mxu0
    %v3026 = vadd.f32 %v2269, %v3025
    %3027 = vmatmul.bf16.gmra.mxu0 %v2220
    %v3028 = vpop.f32.mrf.mxu0
    %v3029 = vadd.f32 %v2269, %v3028
    %v3030 = vpop.f32.mrf.mxu0
    %v3031 = vadd.f32 %v2269, %v3030
    %3032 = vmatmul.bf16.gmra.mxu0 %v2221
    %v3033 = vpop.f32.mrf.mxu0
    %v3034 = vadd.f32 %v2269, %v3033
    %v3035 = vpop.f32.mrf.mxu0
    %v3036 = vadd.f32 %v2269, %v3035
    %3037 = vmatmul.bf16.gmra.mxu0 %v2222
    %v3038 = vpop.f32.mrf.mxu0
    %v3039 = vadd.f32 %v2269, %v3038
    %v3040 = vpop.f32.mrf.mxu0
    %v3041 = vadd.f32 %v2269, %v3040
    %3042 = vmatmul.bf16.gmra.mxu0 %v2223
    %v3043 = vpop.f32.mrf.mxu0
    %v3044 = vadd.f32 %v2269, %v3043
    %v3045 = vpop.f32.mrf.mxu0
    %v3046 = vadd.f32 %v2269, %v3045
    %3047 = vmatmul.bf16.gmra.mxu0 %v2224
    %v3048 = vpop.f32.mrf.mxu0
    %v3049 = vadd.f32 %v2269, %v3048
    %v3050 = vpop.f32.mrf.mxu0
    %v3051 = vadd.f32 %v2269, %v3050
    %3052 = vmatmul.bf16.gmra.mxu0 %v2225
    %v3053 = vpop.f32.mrf.mxu0
    %v3054 = vadd.f32 %v2269, %v3053
    %v3055 = vpop.f32.mrf.mxu0
    %v3056 = vadd.f32 %v2269, %v3055
    %3057 = vmatmul.bf16.gmra.mxu0 %v2226
    %v3058 = vpop.f32.mrf.mxu0
    %v3059 = vadd.f32 %v2269, %v3058
    %v3060 = vpop.f32.mrf.mxu0
    %v3061 = vadd.f32 %v2269, %v3060
    %3062 = vmatmul.bf16.gmra.mxu0 %v2227
    %v3063 = vpop.f32.mrf.mxu0
    %v3064 = vadd.f32 %v2269, %v3063
    %v3065 = vpop.f32.mrf.mxu0
    %v3066 = vadd.f32 %v2269, %v3065
    %3067 = vmatmul.bf16.gmra.mxu0 %v2228
    %v3068 = vpop.f32.mrf.mxu0
    %v3069 = vadd.f32 %v2269, %v3068
    %v3070 = vpop.f32.mrf.mxu0
    %v3071 = vadd.f32 %v2269, %v3070
    %3072 = vmatmul.bf16.gmra.mxu0 %v2229
    %v3073 = vpop.f32.mrf.mxu0
    %v3074 = vadd.f32 %v2269, %v3073
    %v3075 = vpop.f32.mrf.mxu0
    %v3076 = vadd.f32 %v2269, %v3075
    %3077 = vmatmul.bf16.gmra.mxu0 %v2230
    %v3078 = vpop.f32.mrf.mxu0
    %v3079 = vadd.f32 %v2269, %v3078
    %v3080 = vpop.f32.mrf.mxu0
    %v3081 = vadd.f32 %v2269, %v3080
    %3082 = vmatmul.bf16.gmra.mxu0 %v2231
    %v3083 = vpop.f32.mrf.mxu0
    %v3084 = vadd.f32 %v2269, %v3083
    %v3085 = vpop.f32.mrf.mxu0
    %v3086 = vadd.f32 %v2269, %v3085
    %3087 = vmatmul.bf16.gmra.mxu0 %v2232
    %v3088 = vpop.f32.mrf.mxu0
    %v3089 = vadd.f32 %v2269, %v3088
    %v3090 = vpop.f32.mrf.mxu0
    %v3091 = vadd.f32 %v2269, %v3090
    %3092 = vmatmul.bf16.gmra.mxu0 %v2233
    %v3093 = vpop.f32.mrf.mxu0
    %v3094 = vadd.f32 %v2269, %v3093
    %v3095 = vpop.f32.mrf.mxu0
    %v3096 = vadd.f32 %v2269, %v3095
    %3097 = vmatmul.bf16.gmra.mxu0 %v2234
    %v3098 = vpop.f32.mrf.mxu0
    %v3099 = vadd.f32 %v2269, %v3098
    %v3100 = vpop.f32.mrf.mxu0
    %v3101 = vadd.f32 %v2269, %v3100
    %3102 = vdwg.mxu0
    %3103 = vmatpush.bf16.msra.mxu0 %v2529
    %3104 = vmatpush.bf16.msra.mxu0 %v2525
    %3105 = vmatpush.bf16.msra.mxu0 %v2521
    %3106 = vmatpush.bf16.msra.mxu0 %v2517
    %3107 = vmatpush.bf16.msra.mxu0 %v2513
    %3108 = vmatpush.bf16.msra.mxu0 %v2509
    %3109 = vmatpush.bf16.msra.mxu0 %v2505
    %3110 = vmatpush.bf16.msra.mxu0 %v2501
    %3111 = vmatmul.bf16.gmra.mxu0 %v469
    %v3112 = vpop.f32.mrf.mxu0
    %v3113 = vadd.f32 %v2944, %v3112
    %v3114 = vpop.f32.mrf.mxu0
    %v3115 = vadd.f32 %v2946, %v3114
    %3116 = vmatmul.bf16.gmra.mxu0 %v470
    %v3117 = vpop.f32.mrf.mxu0
    %v3118 = vadd.f32 %v2949, %v3117
    %v3119 = vpop.f32.mrf.mxu0
    %v3120 = vadd.f32 %v2951, %v3119
    %3121 = vmatmul.bf16.gmra.mxu0 %v471
    %v3122 = vpop.f32.mrf.mxu0
    %v3123 = vadd.f32 %v2954, %v3122
    %v3124 = vpop.f32.mrf.mxu0
    %v3125 = vadd.f32 %v2956, %v3124
    %3126 = vmatmul.bf16.gmra.mxu0 %v472
    %v3127 = vpop.f32.mrf.mxu0
    %v3128 = vadd.f32 %v2959, %v3127
    %v3129 = vpop.f32.mrf.mxu0
    %v3130 = vadd.f32 %v2961, %v3129
    %3131 = vmatmul.bf16.gmra.mxu0 %v473
    %v3132 = vpop.f32.mrf.mxu0
    %v3133 = vadd.f32 %v2964, %v3132
    %v3134 = vpop.f32.mrf.mxu0
    %v3135 = vadd.f32 %v2966, %v3134
    %3136 = vmatmul.bf16.gmra.mxu0 %v474
    %v3137 = vpop.f32.mrf.mxu0
    %v3138 = vadd.f32 %v2969, %v3137
    %v3139 = vpop.f32.mrf.mxu0
    %v3140 = vadd.f32 %v2971, %v3139
    %3141 = vmatmul.bf16.gmra.mxu0 %v475
    %v3142 = vpop.f32.mrf.mxu0
    %v3143 = vadd.f32 %v2974, %v3142
    %v3144 = vpop.f32.mrf.mxu0
    %v3145 = vadd.f32 %v2976, %v3144
    %3146 = vmatmul.bf16.gmra.mxu0 %v476
    %v3147 = vpop.f32.mrf.mxu0
    %v3148 = vadd.f32 %v2979, %v3147
    %v3149 = vpop.f32.mrf.mxu0
    %v3150 = vadd.f32 %v2981, %v3149
    %3151 = vmatmul.bf16.gmra.mxu0 %v477
    %v3152 = vpop.f32.mrf.mxu0
    %v3153 = vadd.f32 %v2984, %v3152
    %v3154 = vpop.f32.mrf.mxu0
    %v3155 = vadd.f32 %v2986, %v3154
    %3156 = vmatmul.bf16.gmra.mxu0 %v478
    %v3157 = vpop.f32.mrf.mxu0
    %v3158 = vadd.f32 %v2989, %v3157
    %v3159 = vpop.f32.mrf.mxu0
    %v3160 = vadd.f32 %v2991, %v3159
    %3161 = vmatmul.bf16.gmra.mxu0 %v479
    %v3162 = vpop.f32.mrf.mxu0
    %v3163 = vadd.f32 %v2994, %v3162
    %v3164 = vpop.f32.mrf.mxu0
    %v3165 = vadd.f32 %v2996, %v3164
    %3166 = vmatmul.bf16.gmra.mxu0 %v480
    %v3167 = vpop.f32.mrf.mxu0
    %v3168 = vadd.f32 %v2999, %v3167
    %v3169 = vpop.f32.mrf.mxu0
    %v3170 = vadd.f32 %v3001, %v3169
    %3171 = vmatmul.bf16.gmra.mxu0 %v481
    %v3172 = vpop.f32.mrf.mxu0
    %v3173 = vadd.f32 %v3004, %v3172
    %v3174 = vpop.f32.mrf.mxu0
    %v3175 = vadd.f32 %v3006, %v3174
    %3176 = vmatmul.bf16.gmra.mxu0 %v482
    %v3177 = vpop.f32.mrf.mxu0
    %v3178 = vadd.f32 %v3009, %v3177
    %v3179 = vpop.f32.mrf.mxu0
    %v3180 = vadd.f32 %v3011, %v3179
    %3181 = vmatmul.bf16.gmra.mxu0 %v483
    %v3182 = vpop.f32.mrf.mxu0
    %v3183 = vadd.f32 %v3014, %v3182
    %v3184 = vpop.f32.mrf.mxu0
    %v3185 = vadd.f32 %v3016, %v3184
    %3186 = vmatmul.bf16.gmra.mxu0 %v484
    %v3187 = vpop.f32.mrf.mxu0
    %v3188 = vadd.f32 %v3019, %v3187
    %v3189 = vpop.f32.mrf.mxu0
    %v3190 = vadd.f32 %v3021, %v3189
    %3191 = vmatmul.bf16.gmra.mxu0 %v485
    %v3192 = vpop.f32.mrf.mxu0
    %v3193 = vadd.f32 %v3024, %v3192
    %v3194 = vpop.f32.mrf.mxu0
    %v3195 = vadd.f32 %v3026, %v3194
    %3196 = vmatmul.bf16.gmra.mxu0 %v486
    %v3197 = vpop.f32.mrf.mxu0
    %v3198 = vadd.f32 %v3029, %v3197
    %v3199 = vpop.f32.mrf.mxu0
    %v3200 = vadd.f32 %v3031, %v3199
    %3201 = vmatmul.bf16.gmra.mxu0 %v487
    %v3202 = vpop.f32.mrf.mxu0
    %v3203 = vadd.f32 %v3034, %v3202
    %v3204 = vpop.f32.mrf.mxu0
    %v3205 = vadd.f32 %v3036, %v3204
    %3206 = vmatmul.bf16.gmra.mxu0 %v488
    %v3207 = vpop.f32.mrf.mxu0
    %v3208 = vadd.f32 %v3039, %v3207
    %v3209 = vpop.f32.mrf.mxu0
    %v3210 = vadd.f32 %v3041, %v3209
    %3211 = vmatmul.bf16.gmra.mxu0 %v489
    %v3212 = vpop.f32.mrf.mxu0
    %v3213 = vadd.f32 %v3044, %v3212
    %v3214 = vpop.f32.mrf.mxu0
    %v3215 = vadd.f32 %v3046, %v3214
    %3216 = vmatmul.bf16.gmra.mxu0 %v490
    %v3217 = vpop.f32.mrf.mxu0
    %v3218 = vadd.f32 %v3049, %v3217
    %v3219 = vpop.f32.mrf.mxu0
    %v3220 = vadd.f32 %v3051, %v3219
    %3221 = vmatmul.bf16.gmra.mxu0 %v491
    %v3222 = vpop.f32.mrf.mxu0
    %v3223 = vadd.f32 %v3054, %v3222
    %v3224 = vpop.f32.mrf.mxu0
    %v3225 = vadd.f32 %v3056, %v3224
    %3226 = vmatmul.bf16.gmra.mxu0 %v492
    %v3227 = vpop.f32.mrf.mxu0
    %v3228 = vadd.f32 %v3059, %v3227
    %v3229 = vpop.f32.mrf.mxu0
    %v3230 = vadd.f32 %v3061, %v3229
    %3231 = vmatmul.bf16.gmra.mxu0 %v493
    %v3232 = vpop.f32.mrf.mxu0
    %v3233 = vadd.f32 %v3064, %v3232
    %v3234 = vpop.f32.mrf.mxu0
    %v3235 = vadd.f32 %v3066, %v3234
    %3236 = vmatmul.bf16.gmra.mxu0 %v494
    %v3237 = vpop.f32.mrf.mxu0
    %v3238 = vadd.f32 %v3069, %v3237
    %v3239 = vpop.f32.mrf.mxu0
    %v3240 = vadd.f32 %v3071, %v3239
    %3241 = vmatmul.bf16.gmra.mxu0 %v495
    %v3242 = vpop.f32.mrf.mxu0
    %v3243 = vadd.f32 %v3074, %v3242
    %v3244 = vpop.f32.mrf.mxu0
    %v3245 = vadd.f32 %v3076, %v3244
    %3246 = vmatmul.bf16.gmra.mxu0 %v496
    %v3247 = vpop.f32.mrf.mxu0
    %v3248 = vadd.f32 %v3079, %v3247
    %v3249 = vpop.f32.mrf.mxu0
    %v3250 = vadd.f32 %v3081, %v3249
    %3251 = vmatmul.bf16.gmra.mxu0 %v497
    %v3252 = vpop.f32.mrf.mxu0
    %v3253 = vadd.f32 %v3084, %v3252
    %v3254 = vpop.f32.mrf.mxu0
    %v3255 = vadd.f32 %v3086, %v3254
    %3256 = vmatmul.bf16.gmra.mxu0 %v498
    %v3257 = vpop.f32.mrf.mxu0
    %v3258 = vadd.f32 %v3089, %v3257
    %v3259 = vpop.f32.mrf.mxu0
    %v3260 = vadd.f32 %v3091, %v3259
    %3261 = vmatmul.bf16.gmra.mxu0 %v499
    %v3262 = vpop.f32.mrf.mxu0
    %v3263 = vadd.f32 %v3094, %v3262
    %v3264 = vpop.f32.mrf.mxu0
    %v3265 = vadd.f32 %v3096, %v3264
    %3266 = vmatmul.bf16.gmra.mxu0 %v500
    %v3267 = vpop.f32.mrf.mxu0
    %v3268 = vadd.f32 %v3099, %v3267
    %v3269 = vpop.f32.mrf.mxu0
    %v3270 = vadd.f32 %v3101, %v3269
    %3271 = vdwg.mxu0
    %3272 = vmatpush.bf16.msra.mxu0 %v2498
    %3273 = vmatpush.bf16.msra.mxu0 %v2494
    %3274 = vmatpush.bf16.msra.mxu0 %v2490
    %3275 = vmatpush.bf16.msra.mxu0 %v2486
    %3276 = vmatpush.bf16.msra.mxu0 %v2482
    %3277 = vmatpush.bf16.msra.mxu0 %v2478
    %3278 = vmatpush.bf16.msra.mxu0 %v2474
    %3279 = vmatpush.bf16.msra.mxu0 %v2470
    %3280 = vmatmul.bf16.gmra.mxu0 %v2203
    %v3281 = vpop.f32.mrf.mxu0
    %v3282 = vadd.f32 %v2270, %v3281
    %v3283 = vpop.f32.mrf.mxu0
    %v3284 = vadd.f32 %v2270, %v3283
    %3285 = vmatmul.bf16.gmra.mxu0 %v2204
    %v3286 = vpop.f32.mrf.mxu0
    %v3287 = vadd.f32 %v2270, %v3286
    %v3288 = vpop.f32.mrf.mxu0
    %v3289 = vadd.f32 %v2270, %v3288
    %3290 = vmatmul.bf16.gmra.mxu0 %v2205
    %v3291 = vpop.f32.mrf.mxu0
    %v3292 = vadd.f32 %v2270, %v3291
    %v3293 = vpop.f32.mrf.mxu0
    %v3294 = vadd.f32 %v2270, %v3293
    %3295 = vmatmul.bf16.gmra.mxu0 %v2206
    %v3296 = vpop.f32.mrf.mxu0
    %v3297 = vadd.f32 %v2270, %v3296
    %v3298 = vpop.f32.mrf.mxu0
    %v3299 = vadd.f32 %v2270, %v3298
    %3300 = vmatmul.bf16.gmra.mxu0 %v2207
    %v3301 = vpop.f32.mrf.mxu0
    %v3302 = vadd.f32 %v2270, %v3301
    %v3303 = vpop.f32.mrf.mxu0
    %v3304 = vadd.f32 %v2270, %v3303
    %3305 = vmatmul.bf16.gmra.mxu0 %v2208
    %v3306 = vpop.f32.mrf.mxu0
    %v3307 = vadd.f32 %v2270, %v3306
    %v3308 = vpop.f32.mrf.mxu0
    %v3309 = vadd.f32 %v2270, %v3308
    %3310 = vmatmul.bf16.gmra.mxu0 %v2209
    %v3311 = vpop.f32.mrf.mxu0
    %v3312 = vadd.f32 %v2270, %v3311
    %v3313 = vpop.f32.mrf.mxu0
    %v3314 = vadd.f32 %v2270, %v3313
    %3315 = vmatmul.bf16.gmra.mxu0 %v2210
    %v3316 = vpop.f32.mrf.mxu0
    %v3317 = vadd.f32 %v2270, %v3316
    %v3318 = vpop.f32.mrf.mxu0
    %v3319 = vadd.f32 %v2270, %v3318
    %3320 = vmatmul.bf16.gmra.mxu0 %v2211
    %v3321 = vpop.f32.mrf.mxu0
    %v3322 = vadd.f32 %v2270, %v3321
    %v3323 = vpop.f32.mrf.mxu0
    %v3324 = vadd.f32 %v2270, %v3323
    %3325 = vmatmul.bf16.gmra.mxu0 %v2212
    %v3326 = vpop.f32.mrf.mxu0
    %v3327 = vadd.f32 %v2270, %v3326
    %v3328 = vpop.f32.mrf.mxu0
    %v3329 = vadd.f32 %v2270, %v3328
    %3330 = vmatmul.bf16.gmra.mxu0 %v2213
    %v3331 = vpop.f32.mrf.mxu0
    %v3332 = vadd.f32 %v2270, %v3331
    %v3333 = vpop.f32.mrf.mxu0
    %v3334 = vadd.f32 %v2270, %v3333
    %3335 = vmatmul.bf16.gmra.mxu0 %v2214
    %v3336 = vpop.f32.mrf.mxu0
    %v3337 = vadd.f32 %v2270, %v3336
    %v3338 = vpop.f32.mrf.mxu0
    %v3339 = vadd.f32 %v2270, %v3338
    %3340 = vmatmul.bf16.gmra.mxu0 %v2215
    %v3341 = vpop.f32.mrf.mxu0
    %v3342 = vadd.f32 %v2270, %v3341
    %v3343 = vpop.f32.mrf.mxu0
    %v3344 = vadd.f32 %v2270, %v3343
    %3345 = vmatmul.bf16.gmra.mxu0 %v2216
    %v3346 = vpop.f32.mrf.mxu0
    %v3347 = vadd.f32 %v2270, %v3346
    %v3348 = vpop.f32.mrf.mxu0
    %v3349 = vadd.f32 %v2270, %v3348
    %3350 = vmatmul.bf16.gmra.mxu0 %v2217
    %v3351 = vpop.f32.mrf.mxu0
    %v3352 = vadd.f32 %v2270, %v3351
    %v3353 = vpop.f32.mrf.mxu0
    %v3354 = vadd.f32 %v2270, %v3353
    %3355 = vmatmul.bf16.gmra.mxu0 %v2218
    %v3356 = vpop.f32.mrf.mxu0
    %v3357 = vadd.f32 %v2270, %v3356
    %v3358 = vpop.f32.mrf.mxu0
    %v3359 = vadd.f32 %v2270, %v3358
    %3360 = vmatmul.bf16.gmra.mxu0 %v2219
    %v3361 = vpop.f32.mrf.mxu0
    %v3362 = vadd.f32 %v2270, %v3361
    %v3363 = vpop.f32.mrf.mxu0
    %v3364 = vadd.f32 %v2270, %v3363
    %3365 = vmatmul.bf16.gmra.mxu0 %v2220
    %v3366 = vpop.f32.mrf.mxu0
    %v3367 = vadd.f32 %v2270, %v3366
    %v3368 = vpop.f32.mrf.mxu0
    %v3369 = vadd.f32 %v2270, %v3368
    %3370 = vmatmul.bf16.gmra.mxu0 %v2221
    %v3371 = vpop.f32.mrf.mxu0
    %v3372 = vadd.f32 %v2270, %v3371
    %v3373 = vpop.f32.mrf.mxu0
    %v3374 = vadd.f32 %v2270, %v3373
    %3375 = vmatmul.bf16.gmra.mxu0 %v2222
    %v3376 = vpop.f32.mrf.mxu0
    %v3377 = vadd.f32 %v2270, %v3376
    %v3378 = vpop.f32.mrf.mxu0
    %v3379 = vadd.f32 %v2270, %v3378
    %3380 = vmatmul.bf16.gmra.mxu0 %v2223
    %v3381 = vpop.f32.mrf.mxu0
    %v3382 = vadd.f32 %v2270, %v3381
    %v3383 = vpop.f32.mrf.mxu0
    %v3384 = vadd.f32 %v2270, %v3383
    %3385 = vmatmul.bf16.gmra.mxu0 %v2224
    %v3386 = vpop.f32.mrf.mxu0
    %v3387 = vadd.f32 %v2270, %v3386
    %v3388 = vpop.f32.mrf.mxu0
    %v3389 = vadd.f32 %v2270, %v3388
    %3390 = vmatmul.bf16.gmra.mxu0 %v2225
    %v3391 = vpop.f32.mrf.mxu0
    %v3392 = vadd.f32 %v2270, %v3391
    %v3393 = vpop.f32.mrf.mxu0
    %v3394 = vadd.f32 %v2270, %v3393
    %3395 = vmatmul.bf16.gmra.mxu0 %v2226
    %v3396 = vpop.f32.mrf.mxu0
    %v3397 = vadd.f32 %v2270, %v3396
    %v3398 = vpop.f32.mrf.mxu0
    %v3399 = vadd.f32 %v2270, %v3398
    %3400 = vmatmul.bf16.gmra.mxu0 %v2227
    %v3401 = vpop.f32.mrf.mxu0
    %v3402 = vadd.f32 %v2270, %v3401
    %v3403 = vpop.f32.mrf.mxu0
    %v3404 = vadd.f32 %v2270, %v3403
    %3405 = vmatmul.bf16.gmra.mxu0 %v2228
    %v3406 = vpop.f32.mrf.mxu0
    %v3407 = vadd.f32 %v2270, %v3406
    %v3408 = vpop.f32.mrf.mxu0
    %v3409 = vadd.f32 %v2270, %v3408
    %3410 = vmatmul.bf16.gmra.mxu0 %v2229
    %v3411 = vpop.f32.mrf.mxu0
    %v3412 = vadd.f32 %v2270, %v3411
    %v3413 = vpop.f32.mrf.mxu0
    %v3414 = vadd.f32 %v2270, %v3413
    %3415 = vmatmul.bf16.gmra.mxu0 %v2230
    %v3416 = vpop.f32.mrf.mxu0
    %v3417 = vadd.f32 %v2270, %v3416
    %v3418 = vpop.f32.mrf.mxu0
    %v3419 = vadd.f32 %v2270, %v3418
    %3420 = vmatmul.bf16.gmra.mxu0 %v2231
    %v3421 = vpop.f32.mrf.mxu0
    %v3422 = vadd.f32 %v2270, %v3421
    %v3423 = vpop.f32.mrf.mxu0
    %v3424 = vadd.f32 %v2270, %v3423
    %3425 = vmatmul.bf16.gmra.mxu0 %v2232
    %v3426 = vpop.f32.mrf.mxu0
    %v3427 = vadd.f32 %v2270, %v3426
    %v3428 = vpop.f32.mrf.mxu0
    %v3429 = vadd.f32 %v2270, %v3428
    %3430 = vmatmul.bf16.gmra.mxu0 %v2233
    %v3431 = vpop.f32.mrf.mxu0
    %v3432 = vadd.f32 %v2270, %v3431
    %v3433 = vpop.f32.mrf.mxu0
    %v3434 = vadd.f32 %v2270, %v3433
    %3435 = vmatmul.bf16.gmra.mxu0 %v2234
    %v3436 = vpop.f32.mrf.mxu0
    %v3437 = vadd.f32 %v2270, %v3436
    %v3438 = vpop.f32.mrf.mxu0
    %v3439 = vadd.f32 %v2270, %v3438
    %3440 = vdwg.mxu0
    %3441 = vmatpush.bf16.msra.mxu0 %v2530
    %3442 = vmatpush.bf16.msra.mxu0 %v2526
    %3443 = vmatpush.bf16.msra.mxu0 %v2522
    %3444 = vmatpush.bf16.msra.mxu0 %v2518
    %3445 = vmatpush.bf16.msra.mxu0 %v2514
    %3446 = vmatpush.bf16.msra.mxu0 %v2510
    %3447 = vmatpush.bf16.msra.mxu0 %v2506
    %3448 = vmatpush.bf16.msra.mxu0 %v2502
    %3449 = vmatmul.bf16.gmra.mxu0 %v469
    %v3450 = vpop.f32.mrf.mxu0
    %v3451 = vadd.f32 %v3282, %v3450
    %v3452 = vpop.f32.mrf.mxu0
    %v3453 = vadd.f32 %v3284, %v3452
    %3454 = vmatmul.bf16.gmra.mxu0 %v470
    %v3455 = vpop.f32.mrf.mxu0
    %v3456 = vadd.f32 %v3287, %v3455
    %v3457 = vpop.f32.mrf.mxu0
    %v3458 = vadd.f32 %v3289, %v3457
    %3459 = vmatmul.bf16.gmra.mxu0 %v471
    %v3460 = vpop.f32.mrf.mxu0
    %v3461 = vadd.f32 %v3292, %v3460
    %v3462 = vpop.f32.mrf.mxu0
    %v3463 = vadd.f32 %v3294, %v3462
    %3464 = vmatmul.bf16.gmra.mxu0 %v472
    %v3465 = vpop.f32.mrf.mxu0
    %v3466 = vadd.f32 %v3297, %v3465
    %v3467 = vpop.f32.mrf.mxu0
    %v3468 = vadd.f32 %v3299, %v3467
    %3469 = vmatmul.bf16.gmra.mxu0 %v473
    %v3470 = vpop.f32.mrf.mxu0
    %v3471 = vadd.f32 %v3302, %v3470
    %v3472 = vpop.f32.mrf.mxu0
    %v3473 = vadd.f32 %v3304, %v3472
    %3474 = vmatmul.bf16.gmra.mxu0 %v474
    %v3475 = vpop.f32.mrf.mxu0
    %v3476 = vadd.f32 %v3307, %v3475
    %v3477 = vpop.f32.mrf.mxu0
    %v3478 = vadd.f32 %v3309, %v3477
    %3479 = vmatmul.bf16.gmra.mxu0 %v475
    %v3480 = vpop.f32.mrf.mxu0
    %v3481 = vadd.f32 %v3312, %v3480
    %v3482 = vpop.f32.mrf.mxu0
    %v3483 = vadd.f32 %v3314, %v3482
    %3484 = vmatmul.bf16.gmra.mxu0 %v476
    %v3485 = vpop.f32.mrf.mxu0
    %v3486 = vadd.f32 %v3317, %v3485
    %v3487 = vpop.f32.mrf.mxu0
    %v3488 = vadd.f32 %v3319, %v3487
    %3489 = vmatmul.bf16.gmra.mxu0 %v477
    %v3490 = vpop.f32.mrf.mxu0
    %v3491 = vadd.f32 %v3322, %v3490
    %v3492 = vpop.f32.mrf.mxu0
    %v3493 = vadd.f32 %v3324, %v3492
    %3494 = vmatmul.bf16.gmra.mxu0 %v478
    %v3495 = vpop.f32.mrf.mxu0
    %v3496 = vadd.f32 %v3327, %v3495
    %v3497 = vpop.f32.mrf.mxu0
    %v3498 = vadd.f32 %v3329, %v3497
    %3499 = vmatmul.bf16.gmra.mxu0 %v479
    %v3500 = vpop.f32.mrf.mxu0
    %v3501 = vadd.f32 %v3332, %v3500
    %v3502 = vpop.f32.mrf.mxu0
    %v3503 = vadd.f32 %v3334, %v3502
    %3504 = vmatmul.bf16.gmra.mxu0 %v480
    %v3505 = vpop.f32.mrf.mxu0
    %v3506 = vadd.f32 %v3337, %v3505
    %v3507 = vpop.f32.mrf.mxu0
    %v3508 = vadd.f32 %v3339, %v3507
    %3509 = vmatmul.bf16.gmra.mxu0 %v481
    %v3510 = vpop.f32.mrf.mxu0
    %v3511 = vadd.f32 %v3342, %v3510
    %v3512 = vpop.f32.mrf.mxu0
    %v3513 = vadd.f32 %v3344, %v3512
    %3514 = vmatmul.bf16.gmra.mxu0 %v482
    %v3515 = vpop.f32.mrf.mxu0
    %v3516 = vadd.f32 %v3347, %v3515
    %v3517 = vpop.f32.mrf.mxu0
    %v3518 = vadd.f32 %v3349, %v3517
    %3519 = vmatmul.bf16.gmra.mxu0 %v483
    %v3520 = vpop.f32.mrf.mxu0
    %v3521 = vadd.f32 %v3352, %v3520
    %v3522 = vpop.f32.mrf.mxu0
    %v3523 = vadd.f32 %v3354, %v3522
    %3524 = vmatmul.bf16.gmra.mxu0 %v484
    %v3525 = vpop.f32.mrf.mxu0
    %v3526 = vadd.f32 %v3357, %v3525
    %v3527 = vpop.f32.mrf.mxu0
    %v3528 = vadd.f32 %v3359, %v3527
    %3529 = vmatmul.bf16.gmra.mxu0 %v485
    %v3530 = vpop.f32.mrf.mxu0
    %v3531 = vadd.f32 %v3362, %v3530
    %v3532 = vpop.f32.mrf.mxu0
    %v3533 = vadd.f32 %v3364, %v3532
    %3534 = vmatmul.bf16.gmra.mxu0 %v486
    %v3535 = vpop.f32.mrf.mxu0
    %v3536 = vadd.f32 %v3367, %v3535
    %v3537 = vpop.f32.mrf.mxu0
    %v3538 = vadd.f32 %v3369, %v3537
    %3539 = vmatmul.bf16.gmra.mxu0 %v487
    %v3540 = vpop.f32.mrf.mxu0
    %v3541 = vadd.f32 %v3372, %v3540
    %v3542 = vpop.f32.mrf.mxu0
    %v3543 = vadd.f32 %v3374, %v3542
    %3544 = vmatmul.bf16.gmra.mxu0 %v488
    %v3545 = vpop.f32.mrf.mxu0
    %v3546 = vadd.f32 %v3377, %v3545
    %v3547 = vpop.f32.mrf.mxu0
    %v3548 = vadd.f32 %v3379, %v3547
    %3549 = vmatmul.bf16.gmra.mxu0 %v489
    %v3550 = vpop.f32.mrf.mxu0
    %v3551 = vadd.f32 %v3382, %v3550
    %v3552 = vpop.f32.mrf.mxu0
    %v3553 = vadd.f32 %v3384, %v3552
    %3554 = vmatmul.bf16.gmra.mxu0 %v490
    %v3555 = vpop.f32.mrf.mxu0
    %v3556 = vadd.f32 %v3387, %v3555
    %v3557 = vpop.f32.mrf.mxu0
    %v3558 = vadd.f32 %v3389, %v3557
    %3559 = vmatmul.bf16.gmra.mxu0 %v491
    %v3560 = vpop.f32.mrf.mxu0
    %v3561 = vadd.f32 %v3392, %v3560
    %v3562 = vpop.f32.mrf.mxu0
    %v3563 = vadd.f32 %v3394, %v3562
    %3564 = vmatmul.bf16.gmra.mxu0 %v492
    %v3565 = vpop.f32.mrf.mxu0
    %v3566 = vadd.f32 %v3397, %v3565
    %v3567 = vpop.f32.mrf.mxu0
    %v3568 = vadd.f32 %v3399, %v3567
    %3569 = vmatmul.bf16.gmra.mxu0 %v493
    %v3570 = vpop.f32.mrf.mxu0
    %v3571 = vadd.f32 %v3402, %v3570
    %v3572 = vpop.f32.mrf.mxu0
    %v3573 = vadd.f32 %v3404, %v3572
    %3574 = vmatmul.bf16.gmra.mxu0 %v494
    %v3575 = vpop.f32.mrf.mxu0
    %v3576 = vadd.f32 %v3407, %v3575
    %v3577 = vpop.f32.mrf.mxu0
    %v3578 = vadd.f32 %v3409, %v3577
    %3579 = vmatmul.bf16.gmra.mxu0 %v495
    %v3580 = vpop.f32.mrf.mxu0
    %v3581 = vadd.f32 %v3412, %v3580
    %v3582 = vpop.f32.mrf.mxu0
    %v3583 = vadd.f32 %v3414, %v3582
    %3584 = vmatmul.bf16.gmra.mxu0 %v496
    %v3585 = vpop.f32.mrf.mxu0
    %v3586 = vadd.f32 %v3417, %v3585
    %v3587 = vpop.f32.mrf.mxu0
    %v3588 = vadd.f32 %v3419, %v3587
    %3589 = vmatmul.bf16.gmra.mxu0 %v497
    %v3590 = vpop.f32.mrf.mxu0
    %v3591 = vadd.f32 %v3422, %v3590
    %v3592 = vpop.f32.mrf.mxu0
    %v3593 = vadd.f32 %v3424, %v3592
    %3594 = vmatmul.bf16.gmra.mxu0 %v498
    %v3595 = vpop.f32.mrf.mxu0
    %v3596 = vadd.f32 %v3427, %v3595
    %v3597 = vpop.f32.mrf.mxu0
    %v3598 = vadd.f32 %v3429, %v3597
    %3599 = vmatmul.bf16.gmra.mxu0 %v499
    %v3600 = vpop.f32.mrf.mxu0
    %v3601 = vadd.f32 %v3432, %v3600
    %v3602 = vpop.f32.mrf.mxu0
    %v3603 = vadd.f32 %v3434, %v3602
    %3604 = vmatmul.bf16.gmra.mxu0 %v500
    %v3605 = vpop.f32.mrf.mxu0
    %v3606 = vadd.f32 %v3437, %v3605
    %v3607 = vpop.f32.mrf.mxu0
    %v3608 = vadd.f32 %v3439, %v3607
    %3609 = vdwg.mxu0
    %3610 = vmatpush.bf16.msra.mxu0 %v2499
    %3611 = vmatpush.bf16.msra.mxu0 %v2495
    %3612 = vmatpush.bf16.msra.mxu0 %v2491
    %3613 = vmatpush.bf16.msra.mxu0 %v2487
    %3614 = vmatpush.bf16.msra.mxu0 %v2483
    %3615 = vmatpush.bf16.msra.mxu0 %v2479
    %3616 = vmatpush.bf16.msra.mxu0 %v2475
    %3617 = vmatpush.bf16.msra.mxu0 %v2471
    %3618 = vmatmul.bf16.gmra.mxu0 %v2203
    %v3619 = vpop.f32.mrf.mxu0
    %v3620 = vadd.f32 %v2271, %v3619
    %v3621 = vpop.f32.mrf.mxu0
    %v3622 = vadd.f32 %v2271, %v3621
    %3623 = vmatmul.bf16.gmra.mxu0 %v2204
    %v3624 = vpop.f32.mrf.mxu0
    %v3625 = vadd.f32 %v2271, %v3624
    %v3626 = vpop.f32.mrf.mxu0
    %v3627 = vadd.f32 %v2271, %v3626
    %3628 = vmatmul.bf16.gmra.mxu0 %v2205
    %v3629 = vpop.f32.mrf.mxu0
    %v3630 = vadd.f32 %v2271, %v3629
    %v3631 = vpop.f32.mrf.mxu0
    %v3632 = vadd.f32 %v2271, %v3631
    %3633 = vmatmul.bf16.gmra.mxu0 %v2206
    %v3634 = vpop.f32.mrf.mxu0
    %v3635 = vadd.f32 %v2271, %v3634
    %v3636 = vpop.f32.mrf.mxu0
    %v3637 = vadd.f32 %v2271, %v3636
    %3638 = vmatmul.bf16.gmra.mxu0 %v2207
    %v3639 = vpop.f32.mrf.mxu0
    %v3640 = vadd.f32 %v2271, %v3639
    %v3641 = vpop.f32.mrf.mxu0
    %v3642 = vadd.f32 %v2271, %v3641
    %3643 = vmatmul.bf16.gmra.mxu0 %v2208
    %v3644 = vpop.f32.mrf.mxu0
    %v3645 = vadd.f32 %v2271, %v3644
    %v3646 = vpop.f32.mrf.mxu0
    %v3647 = vadd.f32 %v2271, %v3646
    %3648 = vmatmul.bf16.gmra.mxu0 %v2209
    %v3649 = vpop.f32.mrf.mxu0
    %v3650 = vadd.f32 %v2271, %v3649
    %v3651 = vpop.f32.mrf.mxu0
    %v3652 = vadd.f32 %v2271, %v3651
    %3653 = vmatmul.bf16.gmra.mxu0 %v2210
    %v3654 = vpop.f32.mrf.mxu0
    %v3655 = vadd.f32 %v2271, %v3654
    %v3656 = vpop.f32.mrf.mxu0
    %v3657 = vadd.f32 %v2271, %v3656
    %3658 = vmatmul.bf16.gmra.mxu0 %v2211
    %v3659 = vpop.f32.mrf.mxu0
    %v3660 = vadd.f32 %v2271, %v3659
    %v3661 = vpop.f32.mrf.mxu0
    %v3662 = vadd.f32 %v2271, %v3661
    %3663 = vmatmul.bf16.gmra.mxu0 %v2212
    %v3664 = vpop.f32.mrf.mxu0
    %v3665 = vadd.f32 %v2271, %v3664
    %v3666 = vpop.f32.mrf.mxu0
    %v3667 = vadd.f32 %v2271, %v3666
    %3668 = vmatmul.bf16.gmra.mxu0 %v2213
    %v3669 = vpop.f32.mrf.mxu0
    %v3670 = vadd.f32 %v2271, %v3669
    %v3671 = vpop.f32.mrf.mxu0
    %v3672 = vadd.f32 %v2271, %v3671
    %3673 = vmatmul.bf16.gmra.mxu0 %v2214
    %v3674 = vpop.f32.mrf.mxu0
    %v3675 = vadd.f32 %v2271, %v3674
    %v3676 = vpop.f32.mrf.mxu0
    %v3677 = vadd.f32 %v2271, %v3676
    %3678 = vmatmul.bf16.gmra.mxu0 %v2215
    %v3679 = vpop.f32.mrf.mxu0
    %v3680 = vadd.f32 %v2271, %v3679
    %v3681 = vpop.f32.mrf.mxu0
    %v3682 = vadd.f32 %v2271, %v3681
    %3683 = vmatmul.bf16.gmra.mxu0 %v2216
    %v3684 = vpop.f32.mrf.mxu0
    %v3685 = vadd.f32 %v2271, %v3684
    %v3686 = vpop.f32.mrf.mxu0
    %v3687 = vadd.f32 %v2271, %v3686
    %3688 = vmatmul.bf16.gmra.mxu0 %v2217
    %v3689 = vpop.f32.mrf.mxu0
    %v3690 = vadd.f32 %v2271, %v3689
    %v3691 = vpop.f32.mrf.mxu0
    %v3692 = vadd.f32 %v2271, %v3691
    %3693 = vmatmul.bf16.gmra.mxu0 %v2218
    %v3694 = vpop.f32.mrf.mxu0
    %v3695 = vadd.f32 %v2271, %v3694
    %v3696 = vpop.f32.mrf.mxu0
    %v3697 = vadd.f32 %v2271, %v3696
    %3698 = vmatmul.bf16.gmra.mxu0 %v2219
    %v3699 = vpop.f32.mrf.mxu0
    %v3700 = vadd.f32 %v2271, %v3699
    %v3701 = vpop.f32.mrf.mxu0
    %v3702 = vadd.f32 %v2271, %v3701
    %3703 = vmatmul.bf16.gmra.mxu0 %v2220
    %v3704 = vpop.f32.mrf.mxu0
    %v3705 = vadd.f32 %v2271, %v3704
    %v3706 = vpop.f32.mrf.mxu0
    %v3707 = vadd.f32 %v2271, %v3706
    %3708 = vmatmul.bf16.gmra.mxu0 %v2221
    %v3709 = vpop.f32.mrf.mxu0
    %v3710 = vadd.f32 %v2271, %v3709
    %v3711 = vpop.f32.mrf.mxu0
    %v3712 = vadd.f32 %v2271, %v3711
    %3713 = vmatmul.bf16.gmra.mxu0 %v2222
    %v3714 = vpop.f32.mrf.mxu0
    %v3715 = vadd.f32 %v2271, %v3714
    %v3716 = vpop.f32.mrf.mxu0
    %v3717 = vadd.f32 %v2271, %v3716
    %3718 = vmatmul.bf16.gmra.mxu0 %v2223
    %v3719 = vpop.f32.mrf.mxu0
    %v3720 = vadd.f32 %v2271, %v3719
    %v3721 = vpop.f32.mrf.mxu0
    %v3722 = vadd.f32 %v2271, %v3721
    %3723 = vmatmul.bf16.gmra.mxu0 %v2224
    %v3724 = vpop.f32.mrf.mxu0
    %v3725 = vadd.f32 %v2271, %v3724
    %v3726 = vpop.f32.mrf.mxu0
    %v3727 = vadd.f32 %v2271, %v3726
    %3728 = vmatmul.bf16.gmra.mxu0 %v2225
    %v3729 = vpop.f32.mrf.mxu0
    %v3730 = vadd.f32 %v2271, %v3729
    %v3731 = vpop.f32.mrf.mxu0
    %v3732 = vadd.f32 %v2271, %v3731
    %3733 = vmatmul.bf16.gmra.mxu0 %v2226
    %v3734 = vpop.f32.mrf.mxu0
    %v3735 = vadd.f32 %v2271, %v3734
    %v3736 = vpop.f32.mrf.mxu0
    %v3737 = vadd.f32 %v2271, %v3736
    %3738 = vmatmul.bf16.gmra.mxu0 %v2227
    %v3739 = vpop.f32.mrf.mxu0
    %v3740 = vadd.f32 %v2271, %v3739
    %v3741 = vpop.f32.mrf.mxu0
    %v3742 = vadd.f32 %v2271, %v3741
    %3743 = vmatmul.bf16.gmra.mxu0 %v2228
    %v3744 = vpop.f32.mrf.mxu0
    %v3745 = vadd.f32 %v2271, %v3744
    %v3746 = vpop.f32.mrf.mxu0
    %v3747 = vadd.f32 %v2271, %v3746
    %3748 = vmatmul.bf16.gmra.mxu0 %v2229
    %v3749 = vpop.f32.mrf.mxu0
    %v3750 = vadd.f32 %v2271, %v3749
    %v3751 = vpop.f32.mrf.mxu0
    %v3752 = vadd.f32 %v2271, %v3751
    %3753 = vmatmul.bf16.gmra.mxu0 %v2230
    %v3754 = vpop.f32.mrf.mxu0
    %v3755 = vadd.f32 %v2271, %v3754
    %v3756 = vpop.f32.mrf.mxu0
    %v3757 = vadd.f32 %v2271, %v3756
    %3758 = vmatmul.bf16.gmra.mxu0 %v2231
    %v3759 = vpop.f32.mrf.mxu0
    %v3760 = vadd.f32 %v2271, %v3759
    %v3761 = vpop.f32.mrf.mxu0
    %v3762 = vadd.f32 %v2271, %v3761
    %3763 = vmatmul.bf16.gmra.mxu0 %v2232
    %v3764 = vpop.f32.mrf.mxu0
    %v3765 = vadd.f32 %v2271, %v3764
    %v3766 = vpop.f32.mrf.mxu0
    %v3767 = vadd.f32 %v2271, %v3766
    %3768 = vmatmul.bf16.gmra.mxu0 %v2233
    %v3769 = vpop.f32.mrf.mxu0
    %v3770 = vadd.f32 %v2271, %v3769
    %v3771 = vpop.f32.mrf.mxu0
    %v3772 = vadd.f32 %v2271, %v3771
    %3773 = vmatmul.bf16.gmra.mxu0 %v2234
    %v3774 = vpop.f32.mrf.mxu0
    %v3775 = vadd.f32 %v2271, %v3774
    %v3776 = vpop.f32.mrf.mxu0
    %v3777 = vadd.f32 %v2271, %v3776
    %3778 = vdwg.mxu0
    %3779 = vmatpush.bf16.msra.mxu0 %v2531
    %3780 = vmatpush.bf16.msra.mxu0 %v2527
    %3781 = vmatpush.bf16.msra.mxu0 %v2523
    %3782 = vmatpush.bf16.msra.mxu0 %v2519
    %3783 = vmatpush.bf16.msra.mxu0 %v2515
    %3784 = vmatpush.bf16.msra.mxu0 %v2511
    %3785 = vmatpush.bf16.msra.mxu0 %v2507
    %3786 = vmatpush.bf16.msra.mxu0 %v2503
    %3787 = vmatmul.bf16.gmra.mxu0 %v469
    %v3788 = vpop.f32.mrf.mxu0
    %v3789 = vadd.f32 %v3620, %v3788
    %v3790 = vpop.f32.mrf.mxu0
    %v3791 = vadd.f32 %v3622, %v3790
    %3792 = vmatmul.bf16.gmra.mxu0 %v470
    %v3793 = vpop.f32.mrf.mxu0
    %v3794 = vadd.f32 %v3625, %v3793
    %v3795 = vpop.f32.mrf.mxu0
    %v3796 = vadd.f32 %v3627, %v3795
    %3797 = vmatmul.bf16.gmra.mxu0 %v471
    %v3798 = vpop.f32.mrf.mxu0
    %v3799 = vadd.f32 %v3630, %v3798
    %v3800 = vpop.f32.mrf.mxu0
    %v3801 = vadd.f32 %v3632, %v3800
    %3802 = vmatmul.bf16.gmra.mxu0 %v472
    %v3803 = vpop.f32.mrf.mxu0
    %v3804 = vadd.f32 %v3635, %v3803
    %v3805 = vpop.f32.mrf.mxu0
    %v3806 = vadd.f32 %v3637, %v3805
    %3807 = vmatmul.bf16.gmra.mxu0 %v473
    %v3808 = vpop.f32.mrf.mxu0
    %v3809 = vadd.f32 %v3640, %v3808
    %v3810 = vpop.f32.mrf.mxu0
    %v3811 = vadd.f32 %v3642, %v3810
    %3812 = vmatmul.bf16.gmra.mxu0 %v474
    %v3813 = vpop.f32.mrf.mxu0
    %v3814 = vadd.f32 %v3645, %v3813
    %v3815 = vpop.f32.mrf.mxu0
    %v3816 = vadd.f32 %v3647, %v3815
    %3817 = vmatmul.bf16.gmra.mxu0 %v475
    %v3818 = vpop.f32.mrf.mxu0
    %v3819 = vadd.f32 %v3650, %v3818
    %v3820 = vpop.f32.mrf.mxu0
    %v3821 = vadd.f32 %v3652, %v3820
    %3822 = vmatmul.bf16.gmra.mxu0 %v476
    %v3823 = vpop.f32.mrf.mxu0
    %v3824 = vadd.f32 %v3655, %v3823
    %v3825 = vpop.f32.mrf.mxu0
    %v3826 = vadd.f32 %v3657, %v3825
    %3827 = vmatmul.bf16.gmra.mxu0 %v477
    %v3828 = vpop.f32.mrf.mxu0
    %v3829 = vadd.f32 %v3660, %v3828
    %v3830 = vpop.f32.mrf.mxu0
    %v3831 = vadd.f32 %v3662, %v3830
    %3832 = vmatmul.bf16.gmra.mxu0 %v478
    %v3833 = vpop.f32.mrf.mxu0
    %v3834 = vadd.f32 %v3665, %v3833
    %v3835 = vpop.f32.mrf.mxu0
    %v3836 = vadd.f32 %v3667, %v3835
    %3837 = vmatmul.bf16.gmra.mxu0 %v479
    %v3838 = vpop.f32.mrf.mxu0
    %v3839 = vadd.f32 %v3670, %v3838
    %v3840 = vpop.f32.mrf.mxu0
    %v3841 = vadd.f32 %v3672, %v3840
    %3842 = vmatmul.bf16.gmra.mxu0 %v480
    %v3843 = vpop.f32.mrf.mxu0
    %v3844 = vadd.f32 %v3675, %v3843
    %v3845 = vpop.f32.mrf.mxu0
    %v3846 = vadd.f32 %v3677, %v3845
    %3847 = vmatmul.bf16.gmra.mxu0 %v481
    %v3848 = vpop.f32.mrf.mxu0
    %v3849 = vadd.f32 %v3680, %v3848
    %v3850 = vpop.f32.mrf.mxu0
    %v3851 = vadd.f32 %v3682, %v3850
    %3852 = vmatmul.bf16.gmra.mxu0 %v482
    %v3853 = vpop.f32.mrf.mxu0
    %v3854 = vadd.f32 %v3685, %v3853
    %v3855 = vpop.f32.mrf.mxu0
    %v3856 = vadd.f32 %v3687, %v3855
    %3857 = vmatmul.bf16.gmra.mxu0 %v483
    %v3858 = vpop.f32.mrf.mxu0
    %v3859 = vadd.f32 %v3690, %v3858
    %v3860 = vpop.f32.mrf.mxu0
    %v3861 = vadd.f32 %v3692, %v3860
    %3862 = vmatmul.bf16.gmra.mxu0 %v484
    %v3863 = vpop.f32.mrf.mxu0
    %v3864 = vadd.f32 %v3695, %v3863
    %v3865 = vpop.f32.mrf.mxu0
    %v3866 = vadd.f32 %v3697, %v3865
    %3867 = vmatmul.bf16.gmra.mxu0 %v485
    %v3868 = vpop.f32.mrf.mxu0
    %v3869 = vadd.f32 %v3700, %v3868
    %v3870 = vpop.f32.mrf.mxu0
    %v3871 = vadd.f32 %v3702, %v3870
    %3872 = vmatmul.bf16.gmra.mxu0 %v486
    %v3873 = vpop.f32.mrf.mxu0
    %v3874 = vadd.f32 %v3705, %v3873
    %v3875 = vpop.f32.mrf.mxu0
    %v3876 = vadd.f32 %v3707, %v3875
    %3877 = vmatmul.bf16.gmra.mxu0 %v487
    %v3878 = vpop.f32.mrf.mxu0
    %v3879 = vadd.f32 %v3710, %v3878
    %v3880 = vpop.f32.mrf.mxu0
    %v3881 = vadd.f32 %v3712, %v3880
    %3882 = vmatmul.bf16.gmra.mxu0 %v488
    %v3883 = vpop.f32.mrf.mxu0
    %v3884 = vadd.f32 %v3715, %v3883
    %v3885 = vpop.f32.mrf.mxu0
    %v3886 = vadd.f32 %v3717, %v3885
    %3887 = vmatmul.bf16.gmra.mxu0 %v489
    %v3888 = vpop.f32.mrf.mxu0
    %v3889 = vadd.f32 %v3720, %v3888
    %v3890 = vpop.f32.mrf.mxu0
    %v3891 = vadd.f32 %v3722, %v3890
    %3892 = vmatmul.bf16.gmra.mxu0 %v490
    %v3893 = vpop.f32.mrf.mxu0
    %v3894 = vadd.f32 %v3725, %v3893
    %v3895 = vpop.f32.mrf.mxu0
    %v3896 = vadd.f32 %v3727, %v3895
    %3897 = vmatmul.bf16.gmra.mxu0 %v491
    %v3898 = vpop.f32.mrf.mxu0
    %v3899 = vadd.f32 %v3730, %v3898
    %v3900 = vpop.f32.mrf.mxu0
    %v3901 = vadd.f32 %v3732, %v3900
    %3902 = vmatmul.bf16.gmra.mxu0 %v492
    %v3903 = vpop.f32.mrf.mxu0
    %v3904 = vadd.f32 %v3735, %v3903
    %v3905 = vpop.f32.mrf.mxu0
    %v3906 = vadd.f32 %v3737, %v3905
    %3907 = vmatmul.bf16.gmra.mxu0 %v493
    %v3908 = vpop.f32.mrf.mxu0
    %v3909 = vadd.f32 %v3740, %v3908
    %v3910 = vpop.f32.mrf.mxu0
    %v3911 = vadd.f32 %v3742, %v3910
    %3912 = vmatmul.bf16.gmra.mxu0 %v494
    %v3913 = vpop.f32.mrf.mxu0
    %v3914 = vadd.f32 %v3745, %v3913
    %v3915 = vpop.f32.mrf.mxu0
    %v3916 = vadd.f32 %v3747, %v3915
    %3917 = vmatmul.bf16.gmra.mxu0 %v495
    %v3918 = vpop.f32.mrf.mxu0
    %v3919 = vadd.f32 %v3750, %v3918
    %v3920 = vpop.f32.mrf.mxu0
    %v3921 = vadd.f32 %v3752, %v3920
    %3922 = vmatmul.bf16.gmra.mxu0 %v496
    %v3923 = vpop.f32.mrf.mxu0
    %v3924 = vadd.f32 %v3755, %v3923
    %v3925 = vpop.f32.mrf.mxu0
    %v3926 = vadd.f32 %v3757, %v3925
    %3927 = vmatmul.bf16.gmra.mxu0 %v497
    %v3928 = vpop.f32.mrf.mxu0
    %v3929 = vadd.f32 %v3760, %v3928
    %v3930 = vpop.f32.mrf.mxu0
    %v3931 = vadd.f32 %v3762, %v3930
    %3932 = vmatmul.bf16.gmra.mxu0 %v498
    %v3933 = vpop.f32.mrf.mxu0
    %v3934 = vadd.f32 %v3765, %v3933
    %v3935 = vpop.f32.mrf.mxu0
    %v3936 = vadd.f32 %v3767, %v3935
    %3937 = vmatmul.bf16.gmra.mxu0 %v499
    %v3938 = vpop.f32.mrf.mxu0
    %v3939 = vadd.f32 %v3770, %v3938
    %v3940 = vpop.f32.mrf.mxu0
    %v3941 = vadd.f32 %v3772, %v3940
    %3942 = vmatmul.bf16.gmra.mxu0 %v500
    %v3943 = vpop.f32.mrf.mxu0
    %v3944 = vadd.f32 %v3775, %v3943
    %v3945 = vpop.f32.mrf.mxu0
    %v3946 = vadd.f32 %v3777, %v3945
    %3947 = vdwg.mxu0
    %v3948 = vmul.f32 %v2775, 0.5
    %v3949 = vmul.f32 %v2777, 0.5
    %v3950 = vmul.f32 %v2780, 0.5
    %v3951 = vmul.f32 %v2782, 0.5
    %v3952 = vmul.f32 %v2785, 0.5
    %v3953 = vmul.f32 %v2787, 0.5
    %v3954 = vmul.f32 %v2790, 0.5
    %v3955 = vmul.f32 %v2792, 0.5
    %v3956 = vmul.f32 %v2795, 0.5
    %v3957 = vmul.f32 %v2797, 0.5
    %v3958 = vmul.f32 %v2800, 0.5
    %v3959 = vmul.f32 %v2802, 0.5
    %v3960 = vmul.f32 %v2805, 0.5
    %v3961 = vmul.f32 %v2807, 0.5
    %v3962 = vmul.f32 %v2810, 0.5
    %v3963 = vmul.f32 %v2812, 0.5
    %v3964 = vmul.f32 %v2815, 0.5
    %v3965 = vmul.f32 %v2817, 0.5
    %v3966 = vmul.f32 %v2820, 0.5
    %v3967 = vmul.f32 %v2822, 0.5
    %v3968 = vmul.f32 %v2825, 0.5
    %v3969 = vmul.f32 %v2827, 0.5
    %v3970 = vmul.f32 %v2830, 0.5
    %v3971 = vmul.f32 %v2832, 0.5
    %v3972 = vmul.f32 %v2835, 0.5
    %v3973 = vmul.f32 %v2837, 0.5
    %v3974 = vmul.f32 %v2840, 0.5
    %v3975 = vmul.f32 %v2842, 0.5
    %v3976 = vmul.f32 %v2845, 0.5
    %v3977 = vmul.f32 %v2847, 0.5
    %v3978 = vmul.f32 %v2850, 0.5
    %v3979 = vmul.f32 %v2852, 0.5
    %v3980 = vmul.f32 %v2855, 0.5
    %v3981 = vmul.f32 %v2857, 0.5
    %v3982 = vmul.f32 %v2860, 0.5
    %v3983 = vmul.f32 %v2862, 0.5
    %v3984 = vmul.f32 %v2865, 0.5
    %v3985 = vmul.f32 %v2867, 0.5
    %v3986 = vmul.f32 %v2870, 0.5
    %v3987 = vmul.f32 %v2872, 0.5
    %v3988 = vmul.f32 %v2875, 0.5
    %v3989 = vmul.f32 %v2877, 0.5
    %v3990 = vmul.f32 %v2880, 0.5
    %v3991 = vmul.f32 %v2882, 0.5
    %v3992 = vmul.f32 %v2885, 0.5
    %v3993 = vmul.f32 %v2887, 0.5
    %v3994 = vmul.f32 %v2890, 0.5
    %v3995 = vmul.f32 %v2892, 0.5
    %v3996 = vmul.f32 %v2895, 0.5
    %v3997 = vmul.f32 %v2897, 0.5
    %v3998 = vmul.f32 %v2900, 0.5
    %v3999 = vmul.f32 %v2902, 0.5
    %v4000 = vmul.f32 %v2905, 0.5
    %v4001 = vmul.f32 %v2907, 0.5
    %v4002 = vmul.f32 %v2910, 0.5
    %v4003 = vmul.f32 %v2912, 0.5
    %v4004 = vmul.f32 %v2915, 0.5
    %v4005 = vmul.f32 %v2917, 0.5
    %v4006 = vmul.f32 %v2920, 0.5
    %v4007 = vmul.f32 %v2922, 0.5
    %v4008 = vmul.f32 %v2925, 0.5
    %v4009 = vmul.f32 %v2927, 0.5
    %v4010 = vmul.f32 %v2930, 0.5
    %v4011 = vmul.f32 %v2932, 0.5
    %v4012 = vtanh.pop %v3948
    %v4013 = vtanh.pop %v3949
    %v4014 = vtanh.pop %v3950
    %v4015 = vtanh.pop %v3951
    %v4016 = vtanh.pop %v3952
    %v4017 = vtanh.pop %v3953
    %v4018 = vtanh.pop %v3954
    %v4019 = vtanh.pop %v3955
    %v4020 = vtanh.pop %v3956
    %v4021 = vtanh.pop %v3957
    %v4022 = vtanh.pop %v3958
    %v4023 = vtanh.pop %v3959
    %v4024 = vtanh.pop %v3960
    %v4025 = vtanh.pop %v3961
    %v4026 = vtanh.pop %v3962
    %v4027 = vtanh.pop %v3963
    %v4028 = vtanh.pop %v3964
    %v4029 = vtanh.pop %v3965
    %v4030 = vtanh.pop %v3966
    %v4031 = vtanh.pop %v3967
    %v4032 = vtanh.pop %v3968
    %v4033 = vtanh.pop %v3969
    %v4034 = vtanh.pop %v3970
    %v4035 = vtanh.pop %v3971
    %v4036 = vtanh.pop %v3972
    %v4037 = vtanh.pop %v3973
    %v4038 = vtanh.pop %v3974
    %v4039 = vtanh.pop %v3975
    %v4040 = vtanh.pop %v3976
    %v4041 = vtanh.pop %v3977
    %v4042 = vtanh.pop %v3978
    %v4043 = vtanh.pop %v3979
    %v4044 = vtanh.pop %v3980
    %v4045 = vtanh.pop %v3981
    %v4046 = vtanh.pop %v3982
    %v4047 = vtanh.pop %v3983
    %v4048 = vtanh.pop %v3984
    %v4049 = vtanh.pop %v3985
    %v4050 = vtanh.pop %v3986
    %v4051 = vtanh.pop %v3987
    %v4052 = vtanh.pop %v3988
    %v4053 = vtanh.pop %v3989
    %v4054 = vtanh.pop %v3990
    %v4055 = vtanh.pop %v3991
    %v4056 = vtanh.pop %v3992
    %v4057 = vtanh.pop %v3993
    %v4058 = vtanh.pop %v3994
    %v4059 = vtanh.pop %v3995
    %v4060 = vtanh.pop %v3996
    %v4061 = vtanh.pop %v3997
    %v4062 = vtanh.pop %v3998
    %v4063 = vtanh.pop %v3999
    %v4064 = vtanh.pop %v4000
    %v4065 = vtanh.pop %v4001
    %v4066 = vtanh.pop %v4002
    %v4067 = vtanh.pop %v4003
    %v4068 = vtanh.pop %v4004
    %v4069 = vtanh.pop %v4005
    %v4070 = vtanh.pop %v4006
    %v4071 = vtanh.pop %v4007
    %v4072 = vtanh.pop %v4008
    %v4073 = vtanh.pop %v4009
    %v4074 = vtanh.pop %v4010
    %v4075 = vtanh.pop %v4011
    %v4076 = vadd.f32 %v4012, 1.0
    %v4077 = vadd.f32 %v4013, 1.0
    %v4078 = vadd.f32 %v4014, 1.0
    %v4079 = vadd.f32 %v4015, 1.0
    %v4080 = vadd.f32 %v4016, 1.0
    %v4081 = vadd.f32 %v4017, 1.0
    %v4082 = vadd.f32 %v4018, 1.0
    %v4083 = vadd.f32 %v4019, 1.0
    %v4084 = vadd.f32 %v4020, 1.0
    %v4085 = vadd.f32 %v4021, 1.0
    %v4086 = vadd.f32 %v4022, 1.0
    %v4087 = vadd.f32 %v4023, 1.0
    %v4088 = vadd.f32 %v4024, 1.0
    %v4089 = vadd.f32 %v4025, 1.0
    %v4090 = vadd.f32 %v4026, 1.0
    %v4091 = vadd.f32 %v4027, 1.0
    %v4092 = vadd.f32 %v4028, 1.0
    %v4093 = vadd.f32 %v4029, 1.0
    %v4094 = vadd.f32 %v4030, 1.0
    %v4095 = vadd.f32 %v4031, 1.0
    %v4096 = vadd.f32 %v4032, 1.0
    %v4097 = vadd.f32 %v4033, 1.0
    %v4098 = vadd.f32 %v4034, 1.0
    %v4099 = vadd.f32 %v4035, 1.0
    %v4100 = vadd.f32 %v4036, 1.0
    %v4101 = vadd.f32 %v4037, 1.0
    %v4102 = vadd.f32 %v4038, 1.0
    %v4103 = vadd.f32 %v4039, 1.0
    %v4104 = vadd.f32 %v4040, 1.0
    %v4105 = vadd.f32 %v4041, 1.0
    %v4106 = vadd.f32 %v4042, 1.0
    %v4107 = vadd.f32 %v4043, 1.0
    %v4108 = vadd.f32 %v4044, 1.0
    %v4109 = vadd.f32 %v4045, 1.0
    %v4110 = vadd.f32 %v4046, 1.0
    %v4111 = vadd.f32 %v4047, 1.0
    %v4112 = vadd.f32 %v4048, 1.0
    %v4113 = vadd.f32 %v4049, 1.0
    %v4114 = vadd.f32 %v4050, 1.0
    %v4115 = vadd.f32 %v4051, 1.0
    %v4116 = vadd.f32 %v4052, 1.0
    %v4117 = vadd.f32 %v4053, 1.0
    %v4118 = vadd.f32 %v4054, 1.0
    %v4119 = vadd.f32 %v4055, 1.0
    %v4120 = vadd.f32 %v4056, 1.0
    %v4121 = vadd.f32 %v4057, 1.0
    %v4122 = vadd.f32 %v4058, 1.0
    %v4123 = vadd.f32 %v4059, 1.0
    %v4124 = vadd.f32 %v4060, 1.0
    %v4125 = vadd.f32 %v4061, 1.0
    %v4126 = vadd.f32 %v4062, 1.0
    %v4127 = vadd.f32 %v4063, 1.0
    %v4128 = vadd.f32 %v4064, 1.0
    %v4129 = vadd.f32 %v4065, 1.0
    %v4130 = vadd.f32 %v4066, 1.0
    %v4131 = vadd.f32 %v4067, 1.0
    %v4132 = vadd.f32 %v4068, 1.0
    %v4133 = vadd.f32 %v4069, 1.0
    %v4134 = vadd.f32 %v4070, 1.0
    %v4135 = vadd.f32 %v4071, 1.0
    %v4136 = vadd.f32 %v4072, 1.0
    %v4137 = vadd.f32 %v4073, 1.0
    %v4138 = vadd.f32 %v4074, 1.0
    %v4139 = vadd.f32 %v4075, 1.0
    %v4140 = vmul.f32 %v4076, 0.5
    %v4141 = vmul.f32 %v4077, 0.5
    %v4142 = vmul.f32 %v4078, 0.5
    %v4143 = vmul.f32 %v4079, 0.5
    %v4144 = vmul.f32 %v4080, 0.5
    %v4145 = vmul.f32 %v4081, 0.5
    %v4146 = vmul.f32 %v4082, 0.5
    %v4147 = vmul.f32 %v4083, 0.5
    %v4148 = vmul.f32 %v4084, 0.5
    %v4149 = vmul.f32 %v4085, 0.5
    %v4150 = vmul.f32 %v4086, 0.5
    %v4151 = vmul.f32 %v4087, 0.5
    %v4152 = vmul.f32 %v4088, 0.5
    %v4153 = vmul.f32 %v4089, 0.5
    %v4154 = vmul.f32 %v4090, 0.5
    %v4155 = vmul.f32 %v4091, 0.5
    %v4156 = vmul.f32 %v4092, 0.5
    %v4157 = vmul.f32 %v4093, 0.5
    %v4158 = vmul.f32 %v4094, 0.5
    %v4159 = vmul.f32 %v4095, 0.5
    %v4160 = vmul.f32 %v4096, 0.5
    %v4161 = vmul.f32 %v4097, 0.5
    %v4162 = vmul.f32 %v4098, 0.5
    %v4163 = vmul.f32 %v4099, 0.5
    %v4164 = vmul.f32 %v4100, 0.5
    %v4165 = vmul.f32 %v4101, 0.5
    %v4166 = vmul.f32 %v4102, 0.5
    %v4167 = vmul.f32 %v4103, 0.5
    %v4168 = vmul.f32 %v4104, 0.5
    %v4169 = vmul.f32 %v4105, 0.5
    %v4170 = vmul.f32 %v4106, 0.5
    %v4171 = vmul.f32 %v4107, 0.5
    %v4172 = vmul.f32 %v4108, 0.5
    %v4173 = vmul.f32 %v4109, 0.5
    %v4174 = vmul.f32 %v4110, 0.5
    %v4175 = vmul.f32 %v4111, 0.5
    %v4176 = vmul.f32 %v4112, 0.5
    %v4177 = vmul.f32 %v4113, 0.5
    %v4178 = vmul.f32 %v4114, 0.5
    %v4179 = vmul.f32 %v4115, 0.5
    %v4180 = vmul.f32 %v4116, 0.5
    %v4181 = vmul.f32 %v4117, 0.5
    %v4182 = vmul.f32 %v4118, 0.5
    %v4183 = vmul.f32 %v4119, 0.5
    %v4184 = vmul.f32 %v4120, 0.5
    %v4185 = vmul.f32 %v4121, 0.5
    %v4186 = vmul.f32 %v4122, 0.5
    %v4187 = vmul.f32 %v4123, 0.5
    %v4188 = vmul.f32 %v4124, 0.5
    %v4189 = vmul.f32 %v4125, 0.5
    %v4190 = vmul.f32 %v4126, 0.5
    %v4191 = vmul.f32 %v4127, 0.5
    %v4192 = vmul.f32 %v4128, 0.5
    %v4193 = vmul.f32 %v4129, 0.5
    %v4194 = vmul.f32 %v4130, 0.5
    %v4195 = vmul.f32 %v4131, 0.5
    %v4196 = vmul.f32 %v4132, 0.5
    %v4197 = vmul.f32 %v4133, 0.5
    %v4198 = vmul.f32 %v4134, 0.5
    %v4199 = vmul.f32 %v4135, 0.5
    %v4200 = vmul.f32 %v4136, 0.5
    %v4201 = vmul.f32 %v4137, 0.5
    %v4202 = vmul.f32 %v4138, 0.5
    %v4203 = vmul.f32 %v4139, 0.5
    %v4204 = vmul.f32 %v3113, 0.5
    %v4205 = vmul.f32 %v3115, 0.5
    %v4206 = vmul.f32 %v3118, 0.5
    %v4207 = vmul.f32 %v3120, 0.5
    %v4208 = vmul.f32 %v3123, 0.5
    %v4209 = vmul.f32 %v3125, 0.5
    %v4210 = vmul.f32 %v3128, 0.5
    %v4211 = vmul.f32 %v3130, 0.5
    %v4212 = vmul.f32 %v3133, 0.5
    %v4213 = vmul.f32 %v3135, 0.5
    %v4214 = vmul.f32 %v3138, 0.5
    %v4215 = vmul.f32 %v3140, 0.5
    %v4216 = vmul.f32 %v3143, 0.5
    %v4217 = vmul.f32 %v3145, 0.5
    %v4218 = vmul.f32 %v3148, 0.5
    %v4219 = vmul.f32 %v3150, 0.5
    %v4220 = vmul.f32 %v3153, 0.5
    %v4221 = vmul.f32 %v3155, 0.5
    %v4222 = vmul.f32 %v3158, 0.5
    %v4223 = vmul.f32 %v3160, 0.5
    %v4224 = vmul.f32 %v3163, 0.5
    %v4225 = vmul.f32 %v3165, 0.5
    %v4226 = vmul.f32 %v3168, 0.5
    %v4227 = vmul.f32 %v3170, 0.5
    %v4228 = vmul.f32 %v3173, 0.5
    %v4229 = vmul.f32 %v3175, 0.5
    %v4230 = vmul.f32 %v3178, 0.5
    %v4231 = vmul.f32 %v3180, 0.5
    %v4232 = vmul.f32 %v3183, 0.5
    %v4233 = vmul.f32 %v3185, 0.5
    %v4234 = vmul.f32 %v3188, 0.5
    %v4235 = vmul.f32 %v3190, 0.5
    %v4236 = vmul.f32 %v3193, 0.5
    %v4237 = vmul.f32 %v3195, 0.5
    %v4238 = vmul.f32 %v3198, 0.5
    %v4239 = vmul.f32 %v3200, 0.5
    %v4240 = vmul.f32 %v3203, 0.5
    %v4241 = vmul.f32 %v3205, 0.5
    %v4242 = vmul.f32 %v3208, 0.5
    %v4243 = vmul.f32 %v3210, 0.5
    %v4244 = vmul.f32 %v3213, 0.5
    %v4245 = vmul.f32 %v3215, 0.5
    %v4246 = vmul.f32 %v3218, 0.5
    %v4247 = vmul.f32 %v3220, 0.5
    %v4248 = vmul.f32 %v3223, 0.5
    %v4249 = vmul.f32 %v3225, 0.5
    %v4250 = vmul.f32 %v3228, 0.5
    %v4251 = vmul.f32 %v3230, 0.5
    %v4252 = vmul.f32 %v3233, 0.5
    %v4253 = vmul.f32 %v3235, 0.5
    %v4254 = vmul.f32 %v3238, 0.5
    %v4255 = vmul.f32 %v3240, 0.5
    %v4256 = vmul.f32 %v3243, 0.5
    %v4257 = vmul.f32 %v3245, 0.5
    %v4258 = vmul.f32 %v3248, 0.5
    %v4259 = vmul.f32 %v3250, 0.5
    %v4260 = vmul.f32 %v3253, 0.5
    %v4261 = vmul.f32 %v3255, 0.5
    %v4262 = vmul.f32 %v3258, 0.5
    %v4263 = vmul.f32 %v3260, 0.5
    %v4264 = vmul.f32 %v3263, 0.5
    %v4265 = vmul.f32 %v3265, 0.5
    %v4266 = vmul.f32 %v3268, 0.5
    %v4267 = vmul.f32 %v3270, 0.5
    %v4268 = vtanh.pop %v4204
    %v4269 = vtanh.pop %v4205
    %v4270 = vtanh.pop %v4206
    %v4271 = vtanh.pop %v4207
    %v4272 = vtanh.pop %v4208
    %v4273 = vtanh.pop %v4209
    %v4274 = vtanh.pop %v4210
    %v4275 = vtanh.pop %v4211
    %v4276 = vtanh.pop %v4212
    %v4277 = vtanh.pop %v4213
    %v4278 = vtanh.pop %v4214
    %v4279 = vtanh.pop %v4215
    %v4280 = vtanh.pop %v4216
    %v4281 = vtanh.pop %v4217
    %v4282 = vtanh.pop %v4218
    %v4283 = vtanh.pop %v4219
    %v4284 = vtanh.pop %v4220
    %v4285 = vtanh.pop %v4221
    %v4286 = vtanh.pop %v4222
    %v4287 = vtanh.pop %v4223
    %v4288 = vtanh.pop %v4224
    %v4289 = vtanh.pop %v4225
    %v4290 = vtanh.pop %v4226
    %v4291 = vtanh.pop %v4227
    %v4292 = vtanh.pop %v4228
    %v4293 = vtanh.pop %v4229
    %v4294 = vtanh.pop %v4230
    %v4295 = vtanh.pop %v4231
    %v4296 = vtanh.pop %v4232
    %v4297 = vtanh.pop %v4233
    %v4298 = vtanh.pop %v4234
    %v4299 = vtanh.pop %v4235
    %v4300 = vtanh.pop %v4236
    %v4301 = vtanh.pop %v4237
    %v4302 = vtanh.pop %v4238
    %v4303 = vtanh.pop %v4239
    %v4304 = vtanh.pop %v4240
    %v4305 = vtanh.pop %v4241
    %v4306 = vtanh.pop %v4242
    %v4307 = vtanh.pop %v4243
    %v4308 = vtanh.pop %v4244
    %v4309 = vtanh.pop %v4245
    %v4310 = vtanh.pop %v4246
    %v4311 = vtanh.pop %v4247
    %v4312 = vtanh.pop %v4248
    %v4313 = vtanh.pop %v4249
    %v4314 = vtanh.pop %v4250
    %v4315 = vtanh.pop %v4251
    %v4316 = vtanh.pop %v4252
    %v4317 = vtanh.pop %v4253
    %v4318 = vtanh.pop %v4254
    %v4319 = vtanh.pop %v4255
    %v4320 = vtanh.pop %v4256
    %v4321 = vtanh.pop %v4257
    %v4322 = vtanh.pop %v4258
    %v4323 = vtanh.pop %v4259
    %v4324 = vtanh.pop %v4260
    %v4325 = vtanh.pop %v4261
    %v4326 = vtanh.pop %v4262
    %v4327 = vtanh.pop %v4263
    %v4328 = vtanh.pop %v4264
    %v4329 = vtanh.pop %v4265
    %v4330 = vtanh.pop %v4266
    %v4331 = vtanh.pop %v4267
    %v4332 = vadd.f32 %v4268, 1.0
    %v4333 = vadd.f32 %v4269, 1.0
    %v4334 = vadd.f32 %v4270, 1.0
    %v4335 = vadd.f32 %v4271, 1.0
    %v4336 = vadd.f32 %v4272, 1.0
    %v4337 = vadd.f32 %v4273, 1.0
    %v4338 = vadd.f32 %v4274, 1.0
    %v4339 = vadd.f32 %v4275, 1.0
    %v4340 = vadd.f32 %v4276, 1.0
    %v4341 = vadd.f32 %v4277, 1.0
    %v4342 = vadd.f32 %v4278, 1.0
    %v4343 = vadd.f32 %v4279, 1.0
    %v4344 = vadd.f32 %v4280, 1.0
    %v4345 = vadd.f32 %v4281, 1.0
    %v4346 = vadd.f32 %v4282, 1.0
    %v4347 = vadd.f32 %v4283, 1.0
    %v4348 = vadd.f32 %v4284, 1.0
    %v4349 = vadd.f32 %v4285, 1.0
    %v4350 = vadd.f32 %v4286, 1.0
    %v4351 = vadd.f32 %v4287, 1.0
    %v4352 = vadd.f32 %v4288, 1.0
    %v4353 = vadd.f32 %v4289, 1.0
    %v4354 = vadd.f32 %v4290, 1.0
    %v4355 = vadd.f32 %v4291, 1.0
    %v4356 = vadd.f32 %v4292, 1.0
    %v4357 = vadd.f32 %v4293, 1.0
    %v4358 = vadd.f32 %v4294, 1.0
    %v4359 = vadd.f32 %v4295, 1.0
    %v4360 = vadd.f32 %v4296, 1.0
    %v4361 = vadd.f32 %v4297, 1.0
    %v4362 = vadd.f32 %v4298, 1.0
    %v4363 = vadd.f32 %v4299, 1.0
    %v4364 = vadd.f32 %v4300, 1.0
    %v4365 = vadd.f32 %v4301, 1.0
    %v4366 = vadd.f32 %v4302, 1.0
    %v4367 = vadd.f32 %v4303, 1.0
    %v4368 = vadd.f32 %v4304, 1.0
    %v4369 = vadd.f32 %v4305, 1.0
    %v4370 = vadd.f32 %v4306, 1.0
    %v4371 = vadd.f32 %v4307, 1.0
    %v4372 = vadd.f32 %v4308, 1.0
    %v4373 = vadd.f32 %v4309, 1.0
    %v4374 = vadd.f32 %v4310, 1.0
    %v4375 = vadd.f32 %v4311, 1.0
    %v4376 = vadd.f32 %v4312, 1.0
    %v4377 = vadd.f32 %v4313, 1.0
    %v4378 = vadd.f32 %v4314, 1.0
    %v4379 = vadd.f32 %v4315, 1.0
    %v4380 = vadd.f32 %v4316, 1.0
    %v4381 = vadd.f32 %v4317, 1.0
    %v4382 = vadd.f32 %v4318, 1.0
    %v4383 = vadd.f32 %v4319, 1.0
    %v4384 = vadd.f32 %v4320, 1.0
    %v4385 = vadd.f32 %v4321, 1.0
    %v4386 = vadd.f32 %v4322, 1.0
    %v4387 = vadd.f32 %v4323, 1.0
    %v4388 = vadd.f32 %v4324, 1.0
    %v4389 = vadd.f32 %v4325, 1.0
    %v4390 = vadd.f32 %v4326, 1.0
    %v4391 = vadd.f32 %v4327, 1.0
    %v4392 = vadd.f32 %v4328, 1.0
    %v4393 = vadd.f32 %v4329, 1.0
    %v4394 = vadd.f32 %v4330, 1.0
    %v4395 = vadd.f32 %v4331, 1.0
    %v4396 = vmul.f32 %v4332, 0.5
    %v4397 = vmul.f32 %v4333, 0.5
    %v4398 = vmul.f32 %v4334, 0.5
    %v4399 = vmul.f32 %v4335, 0.5
    %v4400 = vmul.f32 %v4336, 0.5
    %v4401 = vmul.f32 %v4337, 0.5
    %v4402 = vmul.f32 %v4338, 0.5
    %v4403 = vmul.f32 %v4339, 0.5
    %v4404 = vmul.f32 %v4340, 0.5
    %v4405 = vmul.f32 %v4341, 0.5
    %v4406 = vmul.f32 %v4342, 0.5
    %v4407 = vmul.f32 %v4343, 0.5
    %v4408 = vmul.f32 %v4344, 0.5
    %v4409 = vmul.f32 %v4345, 0.5
    %v4410 = vmul.f32 %v4346, 0.5
    %v4411 = vmul.f32 %v4347, 0.5
    %v4412 = vmul.f32 %v4348, 0.5
    %v4413 = vmul.f32 %v4349, 0.5
    %v4414 = vmul.f32 %v4350, 0.5
    %v4415 = vmul.f32 %v4351, 0.5
    %v4416 = vmul.f32 %v4352, 0.5
    %v4417 = vmul.f32 %v4353, 0.5
    %v4418 = vmul.f32 %v4354, 0.5
    %v4419 = vmul.f32 %v4355, 0.5
    %v4420 = vmul.f32 %v4356, 0.5
    %v4421 = vmul.f32 %v4357, 0.5
    %v4422 = vmul.f32 %v4358, 0.5
    %v4423 = vmul.f32 %v4359, 0.5
    %v4424 = vmul.f32 %v4360, 0.5
    %v4425 = vmul.f32 %v4361, 0.5
    %v4426 = vmul.f32 %v4362, 0.5
    %v4427 = vmul.f32 %v4363, 0.5
    %v4428 = vmul.f32 %v4364, 0.5
    %v4429 = vmul.f32 %v4365, 0.5
    %v4430 = vmul.f32 %v4366, 0.5
    %v4431 = vmul.f32 %v4367, 0.5
    %v4432 = vmul.f32 %v4368, 0.5
    %v4433 = vmul.f32 %v4369, 0.5
    %v4434 = vmul.f32 %v4370, 0.5
    %v4435 = vmul.f32 %v4371, 0.5
    %v4436 = vmul.f32 %v4372, 0.5
    %v4437 = vmul.f32 %v4373, 0.5
    %v4438 = vmul.f32 %v4374, 0.5
    %v4439 = vmul.f32 %v4375, 0.5
    %v4440 = vmul.f32 %v4376, 0.5
    %v4441 = vmul.f32 %v4377, 0.5
    %v4442 = vmul.f32 %v4378, 0.5
    %v4443 = vmul.f32 %v4379, 0.5
    %v4444 = vmul.f32 %v4380, 0.5
    %v4445 = vmul.f32 %v4381, 0.5
    %v4446 = vmul.f32 %v4382, 0.5
    %v4447 = vmul.f32 %v4383, 0.5
    %v4448 = vmul.f32 %v4384, 0.5
    %v4449 = vmul.f32 %v4385, 0.5
    %v4450 = vmul.f32 %v4386, 0.5
    %v4451 = vmul.f32 %v4387, 0.5
    %v4452 = vmul.f32 %v4388, 0.5
    %v4453 = vmul.f32 %v4389, 0.5
    %v4454 = vmul.f32 %v4390, 0.5
    %v4455 = vmul.f32 %v4391, 0.5
    %v4456 = vmul.f32 %v4392, 0.5
    %v4457 = vmul.f32 %v4393, 0.5
    %v4458 = vmul.f32 %v4394, 0.5
    %v4459 = vmul.f32 %v4395, 0.5
    %v4460 = vmul.f32 %v4140, %v3789
    %v4461 = vmul.f32 %v4141, %v3791
    %v4462 = vmul.f32 %v4142, %v3794
    %v4463 = vmul.f32 %v4143, %v3796
    %v4464 = vmul.f32 %v4144, %v3799
    %v4465 = vmul.f32 %v4145, %v3801
    %v4466 = vmul.f32 %v4146, %v3804
    %v4467 = vmul.f32 %v4147, %v3806
    %v4468 = vmul.f32 %v4148, %v3809
    %v4469 = vmul.f32 %v4149, %v3811
    %v4470 = vmul.f32 %v4150, %v3814
    %v4471 = vmul.f32 %v4151, %v3816
    %v4472 = vmul.f32 %v4152, %v3819
    %v4473 = vmul.f32 %v4153, %v3821
    %v4474 = vmul.f32 %v4154, %v3824
    %v4475 = vmul.f32 %v4155, %v3826
    %v4476 = vmul.f32 %v4156, %v3829
    %v4477 = vmul.f32 %v4157, %v3831
    %v4478 = vmul.f32 %v4158, %v3834
    %v4479 = vmul.f32 %v4159, %v3836
    %v4480 = vmul.f32 %v4160, %v3839
    %v4481 = vmul.f32 %v4161, %v3841
    %v4482 = vmul.f32 %v4162, %v3844
    %v4483 = vmul.f32 %v4163, %v3846
    %v4484 = vmul.f32 %v4164, %v3849
    %v4485 = vmul.f32 %v4165, %v3851
    %v4486 = vmul.f32 %v4166, %v3854
    %v4487 = vmul.f32 %v4167, %v3856
    %v4488 = vmul.f32 %v4168, %v3859
    %v4489 = vmul.f32 %v4169, %v3861
    %v4490 = vmul.f32 %v4170, %v3864
    %v4491 = vmul.f32 %v4171, %v3866
    %v4492 = vmul.f32 %v4172, %v3869
    %v4493 = vmul.f32 %v4173, %v3871
    %v4494 = vmul.f32 %v4174, %v3874
    %v4495 = vmul.f32 %v4175, %v3876
    %v4496 = vmul.f32 %v4176, %v3879
    %v4497 = vmul.f32 %v4177, %v3881
    %v4498 = vmul.f32 %v4178, %v3884
    %v4499 = vmul.f32 %v4179, %v3886
    %v4500 = vmul.f32 %v4180, %v3889
    %v4501 = vmul.f32 %v4181, %v3891
    %v4502 = vmul.f32 %v4182, %v3894
    %v4503 = vmul.f32 %v4183, %v3896
    %v4504 = vmul.f32 %v4184, %v3899
    %v4505 = vmul.f32 %v4185, %v3901
    %v4506 = vmul.f32 %v4186, %v3904
    %v4507 = vmul.f32 %v4187, %v3906
    %v4508 = vmul.f32 %v4188, %v3909
    %v4509 = vmul.f32 %v4189, %v3911
    %v4510 = vmul.f32 %v4190, %v3914
    %v4511 = vmul.f32 %v4191, %v3916
    %v4512 = vmul.f32 %v4192, %v3919
    %v4513 = vmul.f32 %v4193, %v3921
    %v4514 = vmul.f32 %v4194, %v3924
    %v4515 = vmul.f32 %v4195, %v3926
    %v4516 = vmul.f32 %v4196, %v3929
    %v4517 = vmul.f32 %v4197, %v3931
    %v4518 = vmul.f32 %v4198, %v3934
    %v4519 = vmul.f32 %v4199, %v3936
    %v4520 = vmul.f32 %v4200, %v3939
    %v4521 = vmul.f32 %v4201, %v3941
    %v4522 = vmul.f32 %v4202, %v3944
    %v4523 = vmul.f32 %v4203, %v3946
    %v4524 = vadd.f32 %v3451, %v4460
    %v4525 = vadd.f32 %v3453, %v4461
    %v4526 = vadd.f32 %v3456, %v4462
    %v4527 = vadd.f32 %v3458, %v4463
    %v4528 = vadd.f32 %v3461, %v4464
    %v4529 = vadd.f32 %v3463, %v4465
    %v4530 = vadd.f32 %v3466, %v4466
    %v4531 = vadd.f32 %v3468, %v4467
    %v4532 = vadd.f32 %v3471, %v4468
    %v4533 = vadd.f32 %v3473, %v4469
    %v4534 = vadd.f32 %v3476, %v4470
    %v4535 = vadd.f32 %v3478, %v4471
    %v4536 = vadd.f32 %v3481, %v4472
    %v4537 = vadd.f32 %v3483, %v4473
    %v4538 = vadd.f32 %v3486, %v4474
    %v4539 = vadd.f32 %v3488, %v4475
    %v4540 = vadd.f32 %v3491, %v4476
    %v4541 = vadd.f32 %v3493, %v4477
    %v4542 = vadd.f32 %v3496, %v4478
    %v4543 = vadd.f32 %v3498, %v4479
    %v4544 = vadd.f32 %v3501, %v4480
    %v4545 = vadd.f32 %v3503, %v4481
    %v4546 = vadd.f32 %v3506, %v4482
    %v4547 = vadd.f32 %v3508, %v4483
    %v4548 = vadd.f32 %v3511, %v4484
    %v4549 = vadd.f32 %v3513, %v4485
    %v4550 = vadd.f32 %v3516, %v4486
    %v4551 = vadd.f32 %v3518, %v4487
    %v4552 = vadd.f32 %v3521, %v4488
    %v4553 = vadd.f32 %v3523, %v4489
    %v4554 = vadd.f32 %v3526, %v4490
    %v4555 = vadd.f32 %v3528, %v4491
    %v4556 = vadd.f32 %v3531, %v4492
    %v4557 = vadd.f32 %v3533, %v4493
    %v4558 = vadd.f32 %v3536, %v4494
    %v4559 = vadd.f32 %v3538, %v4495
    %v4560 = vadd.f32 %v3541, %v4496
    %v4561 = vadd.f32 %v3543, %v4497
    %v4562 = vadd.f32 %v3546, %v4498
    %v4563 = vadd.f32 %v3548, %v4499
    %v4564 = vadd.f32 %v3551, %v4500
    %v4565 = vadd.f32 %v3553, %v4501
    %v4566 = vadd.f32 %v3556, %v4502
    %v4567 = vadd.f32 %v3558, %v4503
    %v4568 = vadd.f32 %v3561, %v4504
    %v4569 = vadd.f32 %v3563, %v4505
    %v4570 = vadd.f32 %v3566, %v4506
    %v4571 = vadd.f32 %v3568, %v4507
    %v4572 = vadd.f32 %v3571, %v4508
    %v4573 = vadd.f32 %v3573, %v4509
    %v4574 = vadd.f32 %v3576, %v4510
    %v4575 = vadd.f32 %v3578, %v4511
    %v4576 = vadd.f32 %v3581, %v4512
    %v4577 = vadd.f32 %v3583, %v4513
    %v4578 = vadd.f32 %v3586, %v4514
    %v4579 = vadd.f32 %v3588, %v4515
    %v4580 = vadd.f32 %v3591, %v4516
    %v4581 = vadd.f32 %v3593, %v4517
    %v4582 = vadd.f32 %v3596, %v4518
    %v4583 = vadd.f32 %v3598, %v4519
    %v4584 = vadd.f32 %v3601, %v4520
    %v4585 = vadd.f32 %v3603, %v4521
    %v4586 = vadd.f32 %v3606, %v4522
    %v4587 = vadd.f32 %v3608, %v4523
    %v4588 = vtanh.pop %v4524
    %v4589 = vtanh.pop %v4525
    %v4590 = vtanh.pop %v4526
    %v4591 = vtanh.pop %v4527
    %v4592 = vtanh.pop %v4528
    %v4593 = vtanh.pop %v4529
    %v4594 = vtanh.pop %v4530
    %v4595 = vtanh.pop %v4531
    %v4596 = vtanh.pop %v4532
    %v4597 = vtanh.pop %v4533
    %v4598 = vtanh.pop %v4534
    %v4599 = vtanh.pop %v4535
    %v4600 = vtanh.pop %v4536
    %v4601 = vtanh.pop %v4537
    %v4602 = vtanh.pop %v4538
    %v4603 = vtanh.pop %v4539
    %v4604 = vtanh.pop %v4540
    %v4605 = vtanh.pop %v4541
    %v4606 = vtanh.pop %v4542
    %v4607 = vtanh.pop %v4543
    %v4608 = vtanh.pop %v4544
    %v4609 = vtanh.pop %v4545
    %v4610 = vtanh.pop %v4546
    %v4611 = vtanh.pop %v4547
    %v4612 = vtanh.pop %v4548
    %v4613 = vtanh.pop %v4549
    %v4614 = vtanh.pop %v4550
    %v4615 = vtanh.pop %v4551
    %v4616 = vtanh.pop %v4552
    %v4617 = vtanh.pop %v4553
    %v4618 = vtanh.pop %v4554
    %v4619 = vtanh.pop %v4555
    %v4620 = vtanh.pop %v4556
    %v4621 = vtanh.pop %v4557
    %v4622 = vtanh.pop %v4558
    %v4623 = vtanh.pop %v4559
    %v4624 = vtanh.pop %v4560
    %v4625 = vtanh.pop %v4561
    %v4626 = vtanh.pop %v4562
    %v4627 = vtanh.pop %v4563
    %v4628 = vtanh.pop %v4564
    %v4629 = vtanh.pop %v4565
    %v4630 = vtanh.pop %v4566
    %v4631 = vtanh.pop %v4567
    %v4632 = vtanh.pop %v4568
    %v4633 = vtanh.pop %v4569
    %v4634 = vtanh.pop %v4570
    %v4635 = vtanh.pop %v4571
    %v4636 = vtanh.pop %v4572
    %v4637 = vtanh.pop %v4573
    %v4638 = vtanh.pop %v4574
    %v4639 = vtanh.pop %v4575
    %v4640 = vtanh.pop %v4576
    %v4641 = vtanh.pop %v4577
    %v4642 = vtanh.pop %v4578
    %v4643 = vtanh.pop %v4579
    %v4644 = vtanh.pop %v4580
    %v4645 = vtanh.pop %v4581
    %v4646 = vtanh.pop %v4582
    %v4647 = vtanh.pop %v4583
    %v4648 = vtanh.pop %v4584
    %v4649 = vtanh.pop %v4585
    %v4650 = vtanh.pop %v4586
    %v4651 = vtanh.pop %v4587
    %v4652 = vsub.f32 %v210, %v4588
    %v4653 = vsub.f32 %v211, %v4589
    %v4654 = vsub.f32 %v212, %v4590
    %v4655 = vsub.f32 %v213, %v4591
    %v4656 = vsub.f32 %v214, %v4592
    %v4657 = vsub.f32 %v215, %v4593
    %v4658 = vsub.f32 %v216, %v4594
    %v4659 = vsub.f32 %v217, %v4595
    %v4660 = vsub.f32 %v218, %v4596
    %v4661 = vsub.f32 %v219, %v4597
    %v4662 = vsub.f32 %v220, %v4598
    %v4663 = vsub.f32 %v221, %v4599
    %v4664 = vsub.f32 %v222, %v4600
    %v4665 = vsub.f32 %v223, %v4601
    %v4666 = vsub.f32 %v224, %v4602
    %v4667 = vsub.f32 %v225, %v4603
    %v4668 = vsub.f32 %v226, %v4604
    %v4669 = vsub.f32 %v227, %v4605
    %v4670 = vsub.f32 %v228, %v4606
    %v4671 = vsub.f32 %v229, %v4607
    %v4672 = vsub.f32 %v230, %v4608
    %v4673 = vsub.f32 %v231, %v4609
    %v4674 = vsub.f32 %v232, %v4610
    %v4675 = vsub.f32 %v233, %v4611
    %v4676 = vsub.f32 %v234, %v4612
    %v4677 = vsub.f32 %v235, %v4613
    %v4678 = vsub.f32 %v236, %v4614
    %v4679 = vsub.f32 %v237, %v4615
    %v4680 = vsub.f32 %v238, %v4616
    %v4681 = vsub.f32 %v239, %v4617
    %v4682 = vsub.f32 %v240, %v4618
    %v4683 = vsub.f32 %v241, %v4619
    %v4684 = vsub.f32 %v242, %v4620
    %v4685 = vsub.f32 %v243, %v4621
    %v4686 = vsub.f32 %v244, %v4622
    %v4687 = vsub.f32 %v245, %v4623
    %v4688 = vsub.f32 %v246, %v4624
    %v4689 = vsub.f32 %v247, %v4625
    %v4690 = vsub.f32 %v248, %v4626
    %v4691 = vsub.f32 %v249, %v4627
    %v4692 = vsub.f32 %v250, %v4628
    %v4693 = vsub.f32 %v251, %v4629
    %v4694 = vsub.f32 %v252, %v4630
    %v4695 = vsub.f32 %v253, %v4631
    %v4696 = vsub.f32 %v254, %v4632
    %v4697 = vsub.f32 %v255, %v4633
    %v4698 = vsub.f32 %v256, %v4634
    %v4699 = vsub.f32 %v257, %v4635
    %v4700 = vsub.f32 %v258, %v4636
    %v4701 = vsub.f32 %v259, %v4637
    %v4702 = vsub.f32 %v260, %v4638
    %v4703 = vsub.f32 %v261, %v4639
    %v4704 = vsub.f32 %v262, %v4640
    %v4705 = vsub.f32 %v263, %v4641
    %v4706 = vsub.f32 %v264, %v4642
    %v4707 = vsub.f32 %v265, %v4643
    %v4708 = vsub.f32 %v266, %v4644
    %v4709 = vsub.f32 %v267, %v4645
    %v4710 = vsub.f32 %v268, %v4646
    %v4711 = vsub.f32 %v269, %v4647
    %v4712 = vsub.f32 %v270, %v4648
    %v4713 = vsub.f32 %v271, %v4649
    %v4714 = vsub.f32 %v272, %v4650
    %v4715 = vsub.f32 %v273, %v4651
    %v4716 = vmul.f32 %v4396, %v4652
    %v4717 = vmul.f32 %v4397, %v4653
    %v4718 = vmul.f32 %v4398, %v4654
    %v4719 = vmul.f32 %v4399, %v4655
    %v4720 = vmul.f32 %v4400, %v4656
    %v4721 = vmul.f32 %v4401, %v4657
    %v4722 = vmul.f32 %v4402, %v4658
    %v4723 = vmul.f32 %v4403, %v4659
    %v4724 = vmul.f32 %v4404, %v4660
    %v4725 = vmul.f32 %v4405, %v4661
    %v4726 = vmul.f32 %v4406, %v4662
    %v4727 = vmul.f32 %v4407, %v4663
    %v4728 = vmul.f32 %v4408, %v4664
    %v4729 = vmul.f32 %v4409, %v4665
    %v4730 = vmul.f32 %v4410, %v4666
    %v4731 = vmul.f32 %v4411, %v4667
    %v4732 = vmul.f32 %v4412, %v4668
    %v4733 = vmul.f32 %v4413, %v4669
    %v4734 = vmul.f32 %v4414, %v4670
    %v4735 = vmul.f32 %v4415, %v4671
    %v4736 = vmul.f32 %v4416, %v4672
    %v4737 = vmul.f32 %v4417, %v4673
    %v4738 = vmul.f32 %v4418, %v4674
    %v4739 = vmul.f32 %v4419, %v4675
    %v4740 = vmul.f32 %v4420, %v4676
    %v4741 = vmul.f32 %v4421, %v4677
    %v4742 = vmul.f32 %v4422, %v4678
    %v4743 = vmul.f32 %v4423, %v4679
    %v4744 = vmul.f32 %v4424, %v4680
    %v4745 = vmul.f32 %v4425, %v4681
    %v4746 = vmul.f32 %v4426, %v4682
    %v4747 = vmul.f32 %v4427, %v4683
    %v4748 = vmul.f32 %v4428, %v4684
    %v4749 = vmul.f32 %v4429, %v4685
    %v4750 = vmul.f32 %v4430, %v4686
    %v4751 = vmul.f32 %v4431, %v4687
    %v4752 = vmul.f32 %v4432, %v4688
    %v4753 = vmul.f32 %v4433, %v4689
    %v4754 = vmul.f32 %v4434, %v4690
    %v4755 = vmul.f32 %v4435, %v4691
    %v4756 = vmul.f32 %v4436, %v4692
    %v4757 = vmul.f32 %v4437, %v4693
    %v4758 = vmul.f32 %v4438, %v4694
    %v4759 = vmul.f32 %v4439, %v4695
    %v4760 = vmul.f32 %v4440, %v4696
    %v4761 = vmul.f32 %v4441, %v4697
    %v4762 = vmul.f32 %v4442, %v4698
    %v4763 = vmul.f32 %v4443, %v4699
    %v4764 = vmul.f32 %v4444, %v4700
    %v4765 = vmul.f32 %v4445, %v4701
    %v4766 = vmul.f32 %v4446, %v4702
    %v4767 = vmul.f32 %v4447, %v4703
    %v4768 = vmul.f32 %v4448, %v4704
    %v4769 = vmul.f32 %v4449, %v4705
    %v4770 = vmul.f32 %v4450, %v4706
    %v4771 = vmul.f32 %v4451, %v4707
    %v4772 = vmul.f32 %v4452, %v4708
    %v4773 = vmul.f32 %v4453, %v4709
    %v4774 = vmul.f32 %v4454, %v4710
    %v4775 = vmul.f32 %v4455, %v4711
    %v4776 = vmul.f32 %v4456, %v4712
    %v4777 = vmul.f32 %v4457, %v4713
    %v4778 = vmul.f32 %v4458, %v4714
    %v4779 = vmul.f32 %v4459, %v4715
    %v4780 = vadd.f32 %v4588, %v4716
    %v4781 = vadd.f32 %v4589, %v4717
    %v4782 = vadd.f32 %v4590, %v4718
    %v4783 = vadd.f32 %v4591, %v4719
    %v4784 = vadd.f32 %v4592, %v4720
    %v4785 = vadd.f32 %v4593, %v4721
    %v4786 = vadd.f32 %v4594, %v4722
    %v4787 = vadd.f32 %v4595, %v4723
    %v4788 = vadd.f32 %v4596, %v4724
    %v4789 = vadd.f32 %v4597, %v4725
    %v4790 = vadd.f32 %v4598, %v4726
    %v4791 = vadd.f32 %v4599, %v4727
    %v4792 = vadd.f32 %v4600, %v4728
    %v4793 = vadd.f32 %v4601, %v4729
    %v4794 = vadd.f32 %v4602, %v4730
    %v4795 = vadd.f32 %v4603, %v4731
    %v4796 = vadd.f32 %v4604, %v4732
    %v4797 = vadd.f32 %v4605, %v4733
    %v4798 = vadd.f32 %v4606, %v4734
    %v4799 = vadd.f32 %v4607, %v4735
    %v4800 = vadd.f32 %v4608, %v4736
    %v4801 = vadd.f32 %v4609, %v4737
    %v4802 = vadd.f32 %v4610, %v4738
    %v4803 = vadd.f32 %v4611, %v4739
    %v4804 = vadd.f32 %v4612, %v4740
    %v4805 = vadd.f32 %v4613, %v4741
    %v4806 = vadd.f32 %v4614, %v4742
    %v4807 = vadd.f32 %v4615, %v4743
    %v4808 = vadd.f32 %v4616, %v4744
    %v4809 = vadd.f32 %v4617, %v4745
    %v4810 = vadd.f32 %v4618, %v4746
    %v4811 = vadd.f32 %v4619, %v4747
    %v4812 = vadd.f32 %v4620, %v4748
    %v4813 = vadd.f32 %v4621, %v4749
    %v4814 = vadd.f32 %v4622, %v4750
    %v4815 = vadd.f32 %v4623, %v4751
    %v4816 = vadd.f32 %v4624, %v4752
    %v4817 = vadd.f32 %v4625, %v4753
    %v4818 = vadd.f32 %v4626, %v4754
    %v4819 = vadd.f32 %v4627, %v4755
    %v4820 = vadd.f32 %v4628, %v4756
    %v4821 = vadd.f32 %v4629, %v4757
    %v4822 = vadd.f32 %v4630, %v4758
    %v4823 = vadd.f32 %v4631, %v4759
    %v4824 = vadd.f32 %v4632, %v4760
    %v4825 = vadd.f32 %v4633, %v4761
    %v4826 = vadd.f32 %v4634, %v4762
    %v4827 = vadd.f32 %v4635, %v4763
    %v4828 = vadd.f32 %v4636, %v4764
    %v4829 = vadd.f32 %v4637, %v4765
    %v4830 = vadd.f32 %v4638, %v4766
    %v4831 = vadd.f32 %v4639, %v4767
    %v4832 = vadd.f32 %v4640, %v4768
    %v4833 = vadd.f32 %v4641, %v4769
    %v4834 = vadd.f32 %v4642, %v4770
    %v4835 = vadd.f32 %v4643, %v4771
    %v4836 = vadd.f32 %v4644, %v4772
    %v4837 = vadd.f32 %v4645, %v4773
    %v4838 = vadd.f32 %v4646, %v4774
    %v4839 = vadd.f32 %v4647, %v4775
    %v4840 = vadd.f32 %v4648, %v4776
    %v4841 = vadd.f32 %v4649, %v4777
    %v4842 = vadd.f32 %v4650, %v4778
    %v4843 = vadd.f32 %v4651, %v4779
    %4844 = vst [vmem:[#allocation5] sm:$0xff] %v4780
    %4845 = vst [vmem:[#allocation5 + $0x8] sm:$0xff] %v4781
    %4846 = vst [vmem:[#allocation5 + $0x10] sm:$0xff] %v4782
    %4847 = vst [vmem:[#allocation5 + $0x18] sm:$0xff] %v4783
    %4848 = vst [vmem:[#allocation5 + $0x20] sm:$0xff] %v4784
    %4849 = vst [vmem:[#allocation5 + $0x28] sm:$0xff] %v4785
    %4850 = vst [vmem:[#allocation5 + $0x30] sm:$0xff] %v4786
    %4851 = vst [vmem:[#allocation5 + $0x38] sm:$0xff] %v4787
    %4852 = vst [vmem:[#allocation5 + $0x40] sm:$0xff] %v4788
    %4853 = vst [vmem:[#allocation5 + $0x48] sm:$0xff] %v4789
    %4854 = vst [vmem:[#allocation5 + $0x50] sm:$0xff] %v4790
    %4855 = vst [vmem:[#allocation5 + $0x58] sm:$0xff] %v4791
    %4856 = vst [vmem:[#allocation5 + $0x60] sm:$0xff] %v4792
    %4857 = vst [vmem:[#allocation5 + $0x68] sm:$0xff] %v4793
    %4858 = vst [vmem:[#allocation5 + $0x70] sm:$0xff] %v4794
    %4859 = vst [vmem:[#allocation5 + $0x78] sm:$0xff] %v4795
    %4860 = vst [vmem:[#allocation5 + $0x80] sm:$0xff] %v4796
    %4861 = vst [vmem:[#allocation5 + $0x88] sm:$0xff] %v4797
    %4862 = vst [vmem:[#allocation5 + $0x90] sm:$0xff] %v4798
    %4863 = vst [vmem:[#allocation5 + $0x98] sm:$0xff] %v4799
    %4864 = vst [vmem:[#allocation5 + $0xa0] sm:$0xff] %v4800
    %4865 = vst [vmem:[#allocation5 + $0xa8] sm:$0xff] %v4801
    %4866 = vst [vmem:[#allocation5 + $0xb0] sm:$0xff] %v4802
    %4867 = vst [vmem:[#allocation5 + $0xb8] sm:$0xff] %v4803
    %4868 = vst [vmem:[#allocation5 + $0xc0] sm:$0xff] %v4804
    %4869 = vst [vmem:[#allocation5 + $0xc8] sm:$0xff] %v4805
    %4870 = vst [vmem:[#allocation5 + $0xd0] sm:$0xff] %v4806
    %4871 = vst [vmem:[#allocation5 + $0xd8] sm:$0xff] %v4807
    %4872 = vst [vmem:[#allocation5 + $0xe0] sm:$0xff] %v4808
    %4873 = vst [vmem:[#allocation5 + $0xe8] sm:$0xff] %v4809
    %4874 = vst [vmem:[#allocation5 + $0xf0] sm:$0xff] %v4810
    %4875 = vst [vmem:[#allocation5 + $0xf8] sm:$0xff] %v4811
    %4876 = vst [vmem:[#allocation5 + $0x100] sm:$0xff] %v4812
    %4877 = vst [vmem:[#allocation5 + $0x108] sm:$0xff] %v4813
    %4878 = vst [vmem:[#allocation5 + $0x110] sm:$0xff] %v4814
    %4879 = vst [vmem:[#allocation5 + $0x118] sm:$0xff] %v4815
    %4880 = vst [vmem:[#allocation5 + $0x120] sm:$0xff] %v4816
    %4881 = vst [vmem:[#allocation5 + $0x128] sm:$0xff] %v4817
    %4882 = vst [vmem:[#allocation5 + $0x130] sm:$0xff] %v4818
    %4883 = vst [vmem:[#allocation5 + $0x138] sm:$0xff] %v4819
    %4884 = vst [vmem:[#allocation5 + $0x140] sm:$0xff] %v4820
    %4885 = vst [vmem:[#allocation5 + $0x148] sm:$0xff] %v4821
    %4886 = vst [vmem:[#allocation5 + $0x150] sm:$0xff] %v4822
    %4887 = vst [vmem:[#allocation5 + $0x158] sm:$0xff] %v4823
    %4888 = vst [vmem:[#allocation5 + $0x160] sm:$0xff] %v4824
    %4889 = vst [vmem:[#allocation5 + $0x168] sm:$0xff] %v4825
    %4890 = vst [vmem:[#allocation5 + $0x170] sm:$0xff] %v4826
    %4891 = vst [vmem:[#allocation5 + $0x178] sm:$0xff] %v4827
    %4892 = vst [vmem:[#allocation5 + $0x180] sm:$0xff] %v4828
    %4893 = vst [vmem:[#allocation5 + $0x188] sm:$0xff] %v4829
    %4894 = vst [vmem:[#allocation5 + $0x190] sm:$0xff] %v4830
    %4895 = vst [vmem:[#allocation5 + $0x198] sm:$0xff] %v4831
    %4896 = vst [vmem:[#allocation5 + $0x1a0] sm:$0xff] %v4832
    %4897 = vst [vmem:[#allocation5 + $0x1a8] sm:$0xff] %v4833
    %4898 = vst [vmem:[#allocation5 + $0x1b0] sm:$0xff] %v4834
    %4899 = vst [vmem:[#allocation5 + $0x1b8] sm:$0xff] %v4835
    %4900 = vst [vmem:[#allocation5 + $0x1c0] sm:$0xff] %v4836
    %4901 = vst [vmem:[#allocation5 + $0x1c8] sm:$0xff] %v4837
    %4902 = vst [vmem:[#allocation5 + $0x1d0] sm:$0xff] %v4838
    %4903 = vst [vmem:[#allocation5 + $0x1d8] sm:$0xff] %v4839
    %4904 = vst [vmem:[#allocation5 + $0x1e0] sm:$0xff] %v4840
    %4905 = vst [vmem:[#allocation5 + $0x1e8] sm:$0xff] %v4841
    %4906 = vst [vmem:[#allocation5 + $0x1f0] sm:$0xff] %v4842
    %4907 = vst [vmem:[#allocation5 + $0x1f8] sm:$0xff] %v4843
    // Predicated region
    $region38: #{_mp_forward.1} parent=1 // pred_check
      _
    $region39: #{_mp_forward.1} parent=1 // pred_check_branch
      %4909 = sbr.rel (0) target = $region41
    $region40: #{_mp_forward.1} parent=1 // pred_region
      %4911 = vsyncadd [#allocation4], 0
      %s4912 = sshll.u32 [#allocation5], 4
      %s4913 = int_to_ptr.vmem [resolvable:$true] %s4912
      %s4914 = sshll.u32 %s8, 4
      %s4915 = int_to_ptr.hbm [resolvable:$true] %s4914
      %4920 = dma.vmem_to_hbm [thread:$0]  %s4913, 8192, %s4915, [#allocation4], 128, 128, 8
    $region41: #{_mp_forward.1} parent=1 // pred_fallthru
      _
    // Predicated region
    $region42: #{_mp_forward.1} parent=1 // pred_check
      _
    $region43: #{_mp_forward.1} parent=1 // pred_check_branch
      %4922 = sbr.rel (0) target = $region45
    $region44: #{_mp_forward.1} parent=1 // pred_region
      %4924 = dma.done [#allocation4], 8192
    $region45: #{_mp_forward.1} parent=1 // pred_fallthru
      _
    %4925 = vsyncpa [#allocation3], 1
    %4926 = vsyncpa [#allocation4], 1

</llo_original>
